<compile_context>
chip_gen: v7x
topology: tpu7x:2x2x1
jax: 0.10.0
libtpu: 0.0.40
codegen_flags: <defaults>
</compile_context>

<pallas_src>
import functools
import math

import jax
import jax.numpy as jnp
from jax import lax
from jax.experimental import pallas as pl
from jax.experimental.pallas import tpu as pltpu

DIM_INPUT = 8    # forced by nn.GRU(input_size=8) receiving raw seqs
HID = 6          # GRU hidden_size
OUT = 2          # outputLayer out_features
OUT_PAD = 128    # lane-dense output slab width (wrapper slices back to OUT)


def _round_up(x, m):
    return ((x + m - 1) // m) * m


def variable_rnn_kernel(seqs_ref, len_ref,
                        w_ih0_ref, b0_ref, w_hh0_ref, bhh0n_ref,
                        w1_ref, b1_ref, w_out_ref, b_out_ref,
                        out_ref):
    b_blk, T, D = seqs_ref.shape
    H = HID

    lengths = len_ref[...]                       # (b_blk, 1) int32
    last_t = lengths - 1

    w_ih0 = w_ih0_ref[...]                       # (D, 3H)
    b0 = b0_ref[...]                             # (1, 3H)  b_ih0 + [b_hh0_r, b_hh0_z, 0]
    w_hh0 = w_hh0_ref[...]                       # (H, 3H)
    bhh0n = bhh0n_ref[...]                       # (1, H)   b_hh0_n (stays inside r*(...))
    w1 = w1_ref[...]                             # (2H, 6H) blockdiag(W_ih1, W_hh1)
    b1 = b1_ref[...]                             # (1, 6H)  biases folded (n-gate split kept)

    # ---- Hoisted layer-0 input projection: one bulk MXU matmul for all T steps.
    x_flat = seqs_ref[...].reshape(b_blk * T, D)
    gi0_all = jnp.dot(x_flat, w_ih0, preferred_element_type=jnp.float32) + b0
    gi0_all = gi0_all.reshape(b_blk, T, 3 * H)

    h0 = jnp.zeros((b_blk, H), jnp.float32)
    h1 = jnp.zeros((b_blk, H), jnp.float32)
    sel = jnp.zeros((b_blk, H), jnp.float32)

    # ---- Fully-unrolled recurrence (T static & small): 2 MXU ops / step.
    for t in range(T):
        g0 = gi0_all[:, t, :]                                    # static slice (b_blk, 3H)

        # layer 0: only the h-dependent matmul remains on the serial path
        gh0 = jnp.dot(h0, w_hh0, preferred_element_type=jnp.float32)
        r0 = jax.nn.sigmoid(g0[:, :H] + gh0[:, :H])
        z0 = jax.nn.sigmoid(g0[:, H:2 * H] + gh0[:, H:2 * H])
        n0 = jnp.tanh(g0[:, 2 * H:] + r0 * (gh0[:, 2 * H:] + bhh0n))
        h0 = (1.0 - z0) * n0 + z0 * h0

        # layer 1: gi and gh fused into one matmul via blockdiag weights
        g1 = jnp.dot(jnp.concatenate([h0, h1], axis=1), w1,
                     preferred_element_type=jnp.float32) + b1     # (b_blk, 6H)
        r1 = jax.nn.sigmoid(g1[:, :H] + g1[:, 3 * H:4 * H])
        z1 = jax.nn.sigmoid(g1[:, H:2 * H] + g1[:, 4 * H:5 * H])
        n1 = jnp.tanh(g1[:, 2 * H:3 * H] + r1 * g1[:, 5 * H:6 * H])
        h1 = (1.0 - z1) * n1 + z1 * h1

        # last-valid-step gather (== pad_packed_sequence + b[lengths[i]-1])
        sel = jnp.where(last_t == t, h1, sel)

    y = jnp.tanh(sel)
    out_ref[...] = (jnp.dot(y, w_out_ref[...],
                            preferred_element_type=jnp.float32) + b_out_ref[...])


def _fold_params(params):
    """Fold biases / build fused weight layouts consumed by the kernel."""
    H = HID
    zH = jnp.zeros((1, H), jnp.float32)

    # layer 0: fold b_ih0 fully + b_hh0 (r, z) into the hoisted gi0 bias;
    # keep b_hh0_n separate (it sits inside r*(W_hh_n·h + b_hh_n)).
    b_hh0 = params["b_hh0"]
    b0_fold = params["b_ih0"] + jnp.concatenate([b_hh0[:, :2 * H], zH], axis=1)
    b_hh0_n = b_hh0[:, 2 * H:]

    # layer 1: blockdiag(W_ih1, W_hh1) so gi1/gh1 come out of one matmul.
    z3 = jnp.zeros((H, 3 * H), jnp.float32)
    w1cat = jnp.concatenate(
        [jnp.concatenate([params["w_ih1"], z3], axis=1),
         jnp.concatenate([z3, params["w_hh1"]], axis=1)], axis=0)      # (2H, 6H)
    b_hh1 = params["b_hh1"]
    b1_lo = params["b_ih1"] + jnp.concatenate([b_hh1[:, :2 * H], zH], axis=1)
    b1_hi = jnp.concatenate([jnp.zeros((1, 2 * H), jnp.float32),
                             b_hh1[:, 2 * H:]], axis=1)
    b1_full = jnp.concatenate([b1_lo, b1_hi], axis=1)                  # (1, 6H)

    # output Linear padded to a lane-dense 128-wide slab (zero extra columns).
    w_out_pad = jnp.zeros((H, OUT_PAD), jnp.float32).at[:, :OUT].set(params["w_out"])
    b_out_pad = jnp.zeros((1, OUT_PAD), jnp.float32).at[:, :OUT].set(params["b_out"])

    return (params["w_ih0"], b0_fold, params["w_hh0"], b_hh0_n,
            w1cat, b1_full, w_out_pad, b_out_pad)


def variable_rnn_forward(seqs, lengths, params):
    """seqs: (B, T, D) float32 batch-first; lengths: (B,) int (sorted desc)."""
    B, T, D = seqs.shape
    assert D == DIM_INPUT

    # batch tile: multiple of 8 (f32 sublanes); grows with B, capped for VMEM
    # headroom on v7x (64 MiB physical per TC).
    b_blk = min(_round_up(B, 8), 128)
    B_pad = _round_up(B, b_blk)

    seqs_p = jnp.pad(seqs.astype(jnp.float32),
                     ((0, B_pad - B), (0, 0), (0, 0)))
    len_p = jnp.pad(lengths.astype(jnp.int32), (0, B_pad - B),
                    constant_values=1).reshape(B_pad, 1)

    w_ih0, b0, w_hh0, bhh0n, w1, b1, w_out_pad, b_out_pad = _fold_params(params)
    args = (seqs_p, len_p, w_ih0, b0, w_hh0, bhh0n, w1, b1, w_out_pad, b_out_pad)

    grid = (B_pad // b_blk,)
    in_specs = [
        pl.BlockSpec((b_blk, T, D), lambda b: (b, 0, 0)),      # seqs (batch tile)
        pl.BlockSpec((b_blk, 1), lambda b: (b, 0)),            # lengths (batch tile)
        pl.BlockSpec((D, 3 * HID), lambda b: (0, 0)),          # w_ih0
        pl.BlockSpec((1, 3 * HID), lambda b: (0, 0)),          # b0 (folded)
        pl.BlockSpec((HID, 3 * HID), lambda b: (0, 0)),        # w_hh0
        pl.BlockSpec((1, HID), lambda b: (0, 0)),              # b_hh0_n
        pl.BlockSpec((2 * HID, 6 * HID), lambda b: (0, 0)),    # blockdiag(W_ih1, W_hh1)
        pl.BlockSpec((1, 6 * HID), lambda b: (0, 0)),          # b1 (folded)
        pl.BlockSpec((HID, OUT_PAD), lambda b: (0, 0)),        # w_out (lane-padded)
        pl.BlockSpec((1, OUT_PAD), lambda b: (0, 0)),          # b_out (lane-padded)
    ]
    out_specs = pl.BlockSpec((b_blk, OUT_PAD), lambda b: (b, 0))

    out_full = pl.pallas_call(
        variable_rnn_kernel,
        out_shape=jax.ShapeDtypeStruct((B_pad, OUT_PAD), jnp.float32),
        grid=grid,
        in_specs=in_specs,
        out_specs=out_specs,
        compiler_params=pltpu.CompilerParams(
            dimension_semantics=("parallel",),       # batch tiles across TCs (v7x: 2)
            vmem_limit_bytes=32 * 1024 * 1024),      # safe on v5e/v6e/v7x
    )(*args)

    return out_full[:B, :OUT]


def init_params(key):
    """Deterministic PyTorch-style uniform init. Weights stored transposed
    (in_features, out_features) so the kernel right-multiplies."""
    ks = jax.random.split(key, 12)

    def u(k, shape, bound):
        return jax.random.uniform(k, shape, jnp.float32, -bound, bound)

    b_lin_in = 1.0 / math.sqrt(DIM_INPUT)
    b_gru = 1.0 / math.sqrt(HID)
    b_lin_out = 1.0 / math.sqrt(HID)

    return {
        # self.input = Linear(dimInput, 8): initialized for fidelity but its
        # output is discarded by the original forward (never reaches the GRU).
        "w_in": u(ks[0], (DIM_INPUT, 8), b_lin_in),
        "b_in": u(ks[1], (1, 8), b_lin_in),
        # GRU layer 0 (input 8 -> hidden 6), gate order [r, z, n]
        "w_ih0": u(ks[2], (8, 3 * HID), b_gru),
        "w_hh0": u(ks[3], (HID, 3 * HID), b_gru),
        "b_ih0": u(ks[4], (1, 3 * HID), b_gru),
        "b_hh0": u(ks[5], (1, 3 * HID), b_gru),
        # GRU layer 1 (input 6 -> hidden 6)
        "w_ih1": u(ks[6], (HID, 3 * HID), b_gru),
        "w_hh1": u(ks[7], (HID, 3 * HID), b_gru),
        "b_ih1": u(ks[8], (1, 3 * HID), b_gru),
        "b_hh1": u(ks[9], (1, 3 * HID), b_gru),
        # outputLayer = Linear(6, 2)
        "w_out": u(ks[10], (HID, OUT), b_lin_out),
        "b_out": u(ks[11], (1, OUT), b_lin_out),
    }


def _gru_cell_ref(x, h, w_ih, w_hh, b_ih, b_hh):
    """PyTorch GRU cell (gate order [r, z, n]) for the pure-JAX reference."""
    gi = x @ w_ih + b_ih
    gh = h @ w_hh + b_hh
    i_r, i_z, i_n = gi[:, :HID], gi[:, HID:2 * HID], gi[:, 2 * HID:]
    h_r, h_z, h_n = gh[:, :HID], gh[:, HID:2 * HID], gh[:, 2 * HID:]
    r = jax.nn.sigmoid(i_r + h_r)
    z = jax.nn.sigmoid(i_z + h_z)
    n = jnp.tanh(i_n + r * h_n)
    return (1.0 - z) * n + z * h


def reference_forward(seqs, lengths, params):
    """Pure-JAX reference mirroring the PyTorch forward semantics."""
    B, T, _ = seqs.shape
    h0 = jnp.zeros((B, HID), jnp.float32)
    h1 = jnp.zeros((B, HID), jnp.float32)
    sel = jnp.zeros((B, HID), jnp.float32)
    for t in range(T):
        x_t = seqs[:, t, :]
        h0 = _gru_cell_ref(x_t, h0, params["w_ih0"], params["w_hh0"],
                           params["b_ih0"], params["b_hh0"])
        h1 = _gru_cell_ref(h0, h1, params["w_ih1"], params["w_hh1"],
                           params["b_ih1"], params["b_hh1"])
        sel = jnp.where((lengths.reshape(B, 1) - 1) == t, h1, sel)
    return jnp.tanh(sel) @ params["w_out"] + params["b_out"]


if __name__ == "__main__":
    key = jax.random.PRNGKey(0)
    k_params, k_data = jax.random.split(key)
    params = init_params(k_params)

    B, T = 2, 8
    seqs = jax.random.normal(k_data, (B, T, DIM_INPUT), jnp.float32)
    # pack_padded_sequence (enforce_sorted default) requires descending lengths.
    lengths = jnp.array([8, 5], dtype=jnp.int32)

    out = variable_rnn_forward(seqs, lengths, params)
    out = jax.block_until_ready(out)
    assert out.shape == (B, OUT)

    ref = reference_forward(seqs, lengths, params)
    assert jnp.allclose(out, ref, rtol=1e-5, atol=1e-5), (out, ref)

    print("KERNEL_OK")
</pallas_src>

<mosaic_0001>
module attributes {stable_mosaic.version = 11 : i64} {
  func.func @variable_rnn_kernel(%arg0: i32, %arg1: memref<8x8x8xf32, #tpu.memory_space<vmem>>, %arg2: memref<8x1xi32, #tpu.memory_space<vmem>>, %arg3: memref<8x18xf32, #tpu.memory_space<vmem>>, %arg4: memref<1x18xf32, #tpu.memory_space<vmem>>, %arg5: memref<6x18xf32, #tpu.memory_space<vmem>>, %arg6: memref<1x6xf32, #tpu.memory_space<vmem>>, %arg7: memref<12x36xf32, #tpu.memory_space<vmem>>, %arg8: memref<1x36xf32, #tpu.memory_space<vmem>>, %arg9: memref<6x128xf32, #tpu.memory_space<vmem>>, %arg10: memref<1x128xf32, #tpu.memory_space<vmem>>, %arg11: memref<8x128xf32, #tpu.memory_space<vmem>>) attributes {dimension_semantics = [#tpu.dimension_semantics<parallel>], iteration_bounds = array<i64: 1>, scalar_prefetch = 0 : i64, scratch_operands = 0 : i64, tpu.core_type = #tpu.core_type<tc>, window_params = [{transform_indices = @transform_0, window_bounds = array<i64: 8, 8, 8>}, {transform_indices = @transform_1, window_bounds = array<i64: 8, 1>}, {pipeline_mode = #tpu.pipeline_mode<synchronous>, transform_indices = @transform_2, window_bounds = array<i64: 8, 18>}, {pipeline_mode = #tpu.pipeline_mode<synchronous>, transform_indices = @transform_3, window_bounds = array<i64: 1, 18>}, {pipeline_mode = #tpu.pipeline_mode<synchronous>, transform_indices = @transform_4, window_bounds = array<i64: 6, 18>}, {pipeline_mode = #tpu.pipeline_mode<synchronous>, transform_indices = @transform_5, window_bounds = array<i64: 1, 6>}, {pipeline_mode = #tpu.pipeline_mode<synchronous>, transform_indices = @transform_6, window_bounds = array<i64: 12, 36>}, {pipeline_mode = #tpu.pipeline_mode<synchronous>, transform_indices = @transform_7, window_bounds = array<i64: 1, 36>}, {pipeline_mode = #tpu.pipeline_mode<synchronous>, transform_indices = @transform_8, window_bounds = array<i64: 6, 128>}, {pipeline_mode = #tpu.pipeline_mode<synchronous>, transform_indices = @transform_9, window_bounds = array<i64: 1, 128>}, {transform_indices = @transform_10, window_bounds = array<i64: 8, 128>}]} {
    %c0 = arith.constant 0 : index
    %c0_0 = arith.constant 0 : index
    %0 = vector.load %arg2[%c0, %c0_0] : memref<8x1xi32, #tpu.memory_space<vmem>>, vector<8x1xi32>
    %c1_i32 = arith.constant 1 : i32
    %1 = vector.broadcast %c1_i32 : i32 to vector<8x1xi32>
    %2 = arith.subi %0, %1 : vector<8x1xi32>
    %c0_1 = arith.constant 0 : index
    %c0_2 = arith.constant 0 : index
    %3 = vector.load %arg3[%c0_1, %c0_2] : memref<8x18xf32, #tpu.memory_space<vmem>>, vector<8x18xf32>
    %c0_3 = arith.constant 0 : index
    %c0_4 = arith.constant 0 : index
    %4 = vector.load %arg4[%c0_3, %c0_4] : memref<1x18xf32, #tpu.memory_space<vmem>>, vector<1x18xf32>
    %c0_5 = arith.constant 0 : index
    %c0_6 = arith.constant 0 : index
    %5 = vector.load %arg5[%c0_5, %c0_6] : memref<6x18xf32, #tpu.memory_space<vmem>>, vector<6x18xf32>
    %c0_7 = arith.constant 0 : index
    %c0_8 = arith.constant 0 : index
    %6 = vector.load %arg6[%c0_7, %c0_8] : memref<1x6xf32, #tpu.memory_space<vmem>>, vector<1x6xf32>
    %c0_9 = arith.constant 0 : index
    %c0_10 = arith.constant 0 : index
    %7 = vector.load %arg7[%c0_9, %c0_10] : memref<12x36xf32, #tpu.memory_space<vmem>>, vector<12x36xf32>
    %c0_11 = arith.constant 0 : index
    %c0_12 = arith.constant 0 : index
    %8 = vector.load %arg8[%c0_11, %c0_12] : memref<1x36xf32, #tpu.memory_space<vmem>>, vector<1x36xf32>
    %c0_13 = arith.constant 0 : index
    %c0_14 = arith.constant 0 : index
    %c0_15 = arith.constant 0 : index
    %9 = vector.load %arg1[%c0_13, %c0_14, %c0_15] : memref<8x8x8xf32, #tpu.memory_space<vmem>>, vector<8x8x8xf32>
    %10 = vector.shape_cast %9 : vector<8x8x8xf32> to vector<64x8xf32>
    %cst = arith.constant dense<0.000000e+00> : vector<64x18xf32>
    %11 = tpu.matmul %10, %3, %cst {dimension_numbers = #tpu.dot_dimension_numbers<[1], [0], [0], [1], [0, 0, 1, 1], [], []>} : vector<64x8xf32>, vector<8x18xf32>, vector<64x18xf32> -> vector<64x18xf32>
    %12 = vector.broadcast %4 : vector<1x18xf32> to vector<64x18xf32>
    %13 = arith.addf %11, %12 : vector<64x18xf32>
    %14 = vector.shape_cast %13 : vector<64x18xf32> to vector<8x8x18xf32>
    %cst_16 = arith.constant 0.000000e+00 : f32
    %15 = vector.broadcast %cst_16 : f32 to vector<8x6xf32>
    %cst_17 = arith.constant 0.000000e+00 : f32
    %16 = vector.broadcast %cst_17 : f32 to vector<8x6xf32>
    %cst_18 = arith.constant 0.000000e+00 : f32
    %17 = vector.broadcast %cst_18 : f32 to vector<8x6xf32>
    %18 = vector.extract_strided_slice %14 {offsets = [0, 0, 0], sizes = [8, 1, 18], strides = [1, 1, 1]} : vector<8x8x18xf32> to vector<8x1x18xf32>
    %19 = vector.shape_cast %18 : vector<8x1x18xf32> to vector<8x18xf32>
    %cst_19 = arith.constant dense<0.000000e+00> : vector<8x18xf32>
    %20 = tpu.matmul %15, %5, %cst_19 {dimension_numbers = #tpu.dot_dimension_numbers<[1], [0], [0], [1], [0, 0, 1, 1], [], []>} : vector<8x6xf32>, vector<6x18xf32>, vector<8x18xf32> -> vector<8x18xf32>
    %21 = vector.extract_strided_slice %19 {offsets = [0, 0], sizes = [8, 6], strides = [1, 1]} : vector<8x18xf32> to vector<8x6xf32>
    %22 = vector.extract_strided_slice %20 {offsets = [0, 0], sizes = [8, 6], strides = [1, 1]} : vector<8x18xf32> to vector<8x6xf32>
    %23 = arith.addf %21, %22 : vector<8x6xf32>
    %24 = arith.negf %23 : vector<8x6xf32>
    %25 = math.exp %24 : vector<8x6xf32>
    %cst_20 = arith.constant 1.000000e+00 : f32
    %26 = vector.broadcast %cst_20 : f32 to vector<8x6xf32>
    %27 = arith.addf %26, %25 : vector<8x6xf32>
    %28 = arith.divf %26, %27 : vector<8x6xf32>
    %29 = vector.extract_strided_slice %19 {offsets = [0, 6], sizes = [8, 6], strides = [1, 1]} : vector<8x18xf32> to vector<8x6xf32>
    %30 = vector.extract_strided_slice %20 {offsets = [0, 6], sizes = [8, 6], strides = [1, 1]} : vector<8x18xf32> to vector<8x6xf32>
    %31 = arith.addf %29, %30 : vector<8x6xf32>
    %32 = arith.negf %31 : vector<8x6xf32>
    %33 = math.exp %32 : vector<8x6xf32>
    %cst_21 = arith.constant 1.000000e+00 : f32
    %34 = vector.broadcast %cst_21 : f32 to vector<8x6xf32>
    %35 = arith.addf %34, %33 : vector<8x6xf32>
    %36 = arith.divf %34, %35 : vector<8x6xf32>
    %37 = vector.extract_strided_slice %19 {offsets = [0, 12], sizes = [8, 6], strides = [1, 1]} : vector<8x18xf32> to vector<8x6xf32>
    %38 = vector.extract_strided_slice %20 {offsets = [0, 12], sizes = [8, 6], strides = [1, 1]} : vector<8x18xf32> to vector<8x6xf32>
    %39 = vector.broadcast %6 : vector<1x6xf32> to vector<8x6xf32>
    %40 = arith.addf %38, %39 : vector<8x6xf32>
    %41 = arith.mulf %28, %40 : vector<8x6xf32>
    %42 = arith.addf %37, %41 : vector<8x6xf32>
    %43 = math.tanh %42 : vector<8x6xf32>
    %cst_22 = arith.constant 1.000000e+00 : f32
    %44 = vector.broadcast %cst_22 : f32 to vector<8x6xf32>
    %45 = arith.subf %44, %36 : vector<8x6xf32>
    %46 = arith.mulf %45, %43 : vector<8x6xf32>
    %47 = arith.mulf %36, %15 : vector<8x6xf32>
    %48 = arith.addf %46, %47 : vector<8x6xf32>
    %49 = tpu.concatenate %48, %16 in 1 : vector<8x6xf32>, vector<8x6xf32> -> vector<8x12xf32>
    %cst_23 = arith.constant dense<0.000000e+00> : vector<8x36xf32>
    %50 = tpu.matmul %49, %7, %cst_23 {dimension_numbers = #tpu.dot_dimension_numbers<[1], [0], [0], [1], [0, 0, 1, 1], [], []>} : vector<8x12xf32>, vector<12x36xf32>, vector<8x36xf32> -> vector<8x36xf32>
    %51 = vector.broadcast %8 : vector<1x36xf32> to vector<8x36xf32>
    %52 = arith.addf %50, %51 : vector<8x36xf32>
    %53 = vector.extract_strided_slice %52 {offsets = [0, 0], sizes = [8, 6], strides = [1, 1]} : vector<8x36xf32> to vector<8x6xf32>
    %54 = vector.extract_strided_slice %52 {offsets = [0, 18], sizes = [8, 6], strides = [1, 1]} : vector<8x36xf32> to vector<8x6xf32>
    %55 = arith.addf %53, %54 : vector<8x6xf32>
    %56 = arith.negf %55 : vector<8x6xf32>
    %57 = math.exp %56 : vector<8x6xf32>
    %cst_24 = arith.constant 1.000000e+00 : f32
    %58 = vector.broadcast %cst_24 : f32 to vector<8x6xf32>
    %59 = arith.addf %58, %57 : vector<8x6xf32>
    %60 = arith.divf %58, %59 : vector<8x6xf32>
    %61 = vector.extract_strided_slice %52 {offsets = [0, 6], sizes = [8, 6], strides = [1, 1]} : vector<8x36xf32> to vector<8x6xf32>
    %62 = vector.extract_strided_slice %52 {offsets = [0, 24], sizes = [8, 6], strides = [1, 1]} : vector<8x36xf32> to vector<8x6xf32>
    %63 = arith.addf %61, %62 : vector<8x6xf32>
    %64 = arith.negf %63 : vector<8x6xf32>
    %65 = math.exp %64 : vector<8x6xf32>
    %cst_25 = arith.constant 1.000000e+00 : f32
    %66 = vector.broadcast %cst_25 : f32 to vector<8x6xf32>
    %67 = arith.addf %66, %65 : vector<8x6xf32>
    %68 = arith.divf %66, %67 : vector<8x6xf32>
    %69 = vector.extract_strided_slice %52 {offsets = [0, 12], sizes = [8, 6], strides = [1, 1]} : vector<8x36xf32> to vector<8x6xf32>
    %70 = vector.extract_strided_slice %52 {offsets = [0, 30], sizes = [8, 6], strides = [1, 1]} : vector<8x36xf32> to vector<8x6xf32>
    %71 = arith.mulf %60, %70 : vector<8x6xf32>
    %72 = arith.addf %69, %71 : vector<8x6xf32>
    %73 = math.tanh %72 : vector<8x6xf32>
    %cst_26 = arith.constant 1.000000e+00 : f32
    %74 = vector.broadcast %cst_26 : f32 to vector<8x6xf32>
    %75 = arith.subf %74, %68 : vector<8x6xf32>
    %76 = arith.mulf %75, %73 : vector<8x6xf32>
    %77 = arith.mulf %68, %16 : vector<8x6xf32>
    %78 = arith.addf %76, %77 : vector<8x6xf32>
    %c0_i32 = arith.constant 0 : i32
    %79 = vector.broadcast %c0_i32 : i32 to vector<8x1xi32>
    %80 = arith.cmpi eq, %2, %79 : vector<8x1xi32>
    %81 = vector.shape_cast %80 : vector<8x1xi1> to vector<8x1xi1>
    %82 = vector.broadcast %81 : vector<8x1xi1> to vector<8x6xi1>
    %83 = arith.select %82, %78, %17 : vector<8x6xi1>, vector<8x6xf32>
    %84 = vector.extract_strided_slice %14 {offsets = [0, 1, 0], sizes = [8, 1, 18], strides = [1, 1, 1]} : vector<8x8x18xf32> to vector<8x1x18xf32>
    %85 = vector.shape_cast %84 : vector<8x1x18xf32> to vector<8x18xf32>
    %cst_27 = arith.constant dense<0.000000e+00> : vector<8x18xf32>
    %86 = tpu.matmul %48, %5, %cst_27 {dimension_numbers = #tpu.dot_dimension_numbers<[1], [0], [0], [1], [0, 0, 1, 1], [], []>} : vector<8x6xf32>, vector<6x18xf32>, vector<8x18xf32> -> vector<8x18xf32>
    %87 = vector.extract_strided_slice %85 {offsets = [0, 0], sizes = [8, 6], strides = [1, 1]} : vector<8x18xf32> to vector<8x6xf32>
    %88 = vector.extract_strided_slice %86 {offsets = [0, 0], sizes = [8, 6], strides = [1, 1]} : vector<8x18xf32> to vector<8x6xf32>
    %89 = arith.addf %87, %88 : vector<8x6xf32>
    %90 = arith.negf %89 : vector<8x6xf32>
    %91 = math.exp %90 : vector<8x6xf32>
    %cst_28 = arith.constant 1.000000e+00 : f32
    %92 = vector.broadcast %cst_28 : f32 to vector<8x6xf32>
    %93 = arith.addf %92, %91 : vector<8x6xf32>
    %94 = arith.divf %92, %93 : vector<8x6xf32>
    %95 = vector.extract_strided_slice %85 {offsets = [0, 6], sizes = [8, 6], strides = [1, 1]} : vector<8x18xf32> to vector<8x6xf32>
    %96 = vector.extract_strided_slice %86 {offsets = [0, 6], sizes = [8, 6], strides = [1, 1]} : vector<8x18xf32> to vector<8x6xf32>
    %97 = arith.addf %95, %96 : vector<8x6xf32>
    %98 = arith.negf %97 : vector<8x6xf32>
    %99 = math.exp %98 : vector<8x6xf32>
    %cst_29 = arith.constant 1.000000e+00 : f32
    %100 = vector.broadcast %cst_29 : f32 to vector<8x6xf32>
    %101 = arith.addf %100, %99 : vector<8x6xf32>
    %102 = arith.divf %100, %101 : vector<8x6xf32>
    %103 = vector.extract_strided_slice %85 {offsets = [0, 12], sizes = [8, 6], strides = [1, 1]} : vector<8x18xf32> to vector<8x6xf32>
    %104 = vector.extract_strided_slice %86 {offsets = [0, 12], sizes = [8, 6], strides = [1, 1]} : vector<8x18xf32> to vector<8x6xf32>
    %105 = vector.broadcast %6 : vector<1x6xf32> to vector<8x6xf32>
    %106 = arith.addf %104, %105 : vector<8x6xf32>
    %107 = arith.mulf %94, %106 : vector<8x6xf32>
    %108 = arith.addf %103, %107 : vector<8x6xf32>
    %109 = math.tanh %108 : vector<8x6xf32>
    %cst_30 = arith.constant 1.000000e+00 : f32
    %110 = vector.broadcast %cst_30 : f32 to vector<8x6xf32>
    %111 = arith.subf %110, %102 : vector<8x6xf32>
    %112 = arith.mulf %111, %109 : vector<8x6xf32>
    %113 = arith.mulf %102, %48 : vector<8x6xf32>
    %114 = arith.addf %112, %113 : vector<8x6xf32>
    %115 = tpu.concatenate %114, %78 in 1 : vector<8x6xf32>, vector<8x6xf32> -> vector<8x12xf32>
    %cst_31 = arith.constant dense<0.000000e+00> : vector<8x36xf32>
    %116 = tpu.matmul %115, %7, %cst_31 {dimension_numbers = #tpu.dot_dimension_numbers<[1], [0], [0], [1], [0, 0, 1, 1], [], []>} : vector<8x12xf32>, vector<12x36xf32>, vector<8x36xf32> -> vector<8x36xf32>
    %117 = vector.broadcast %8 : vector<1x36xf32> to vector<8x36xf32>
    %118 = arith.addf %116, %117 : vector<8x36xf32>
    %119 = vector.extract_strided_slice %118 {offsets = [0, 0], sizes = [8, 6], strides = [1, 1]} : vector<8x36xf32> to vector<8x6xf32>
    %120 = vector.extract_strided_slice %118 {offsets = [0, 18], sizes = [8, 6], strides = [1, 1]} : vector<8x36xf32> to vector<8x6xf32>
    %121 = arith.addf %119, %120 : vector<8x6xf32>
    %122 = arith.negf %121 : vector<8x6xf32>
    %123 = math.exp %122 : vector<8x6xf32>
    %cst_32 = arith.constant 1.000000e+00 : f32
    %124 = vector.broadcast %cst_32 : f32 to vector<8x6xf32>
    %125 = arith.addf %124, %123 : vector<8x6xf32>
    %126 = arith.divf %124, %125 : vector<8x6xf32>
    %127 = vector.extract_strided_slice %118 {offsets = [0, 6], sizes = [8, 6], strides = [1, 1]} : vector<8x36xf32> to vector<8x6xf32>
    %128 = vector.extract_strided_slice %118 {offsets = [0, 24], sizes = [8, 6], strides = [1, 1]} : vector<8x36xf32> to vector<8x6xf32>
    %129 = arith.addf %127, %128 : vector<8x6xf32>
    %130 = arith.negf %129 : vector<8x6xf32>
    %131 = math.exp %130 : vector<8x6xf32>
    %cst_33 = arith.constant 1.000000e+00 : f32
    %132 = vector.broadcast %cst_33 : f32 to vector<8x6xf32>
    %133 = arith.addf %132, %131 : vector<8x6xf32>
    %134 = arith.divf %132, %133 : vector<8x6xf32>
    %135 = vector.extract_strided_slice %118 {offsets = [0, 12], sizes = [8, 6], strides = [1, 1]} : vector<8x36xf32> to vector<8x6xf32>
    %136 = vector.extract_strided_slice %118 {offsets = [0, 30], sizes = [8, 6], strides = [1, 1]} : vector<8x36xf32> to vector<8x6xf32>
    %137 = arith.mulf %126, %136 : vector<8x6xf32>
    %138 = arith.addf %135, %137 : vector<8x6xf32>
    %139 = math.tanh %138 : vector<8x6xf32>
    %cst_34 = arith.constant 1.000000e+00 : f32
    %140 = vector.broadcast %cst_34 : f32 to vector<8x6xf32>
    %141 = arith.subf %140, %134 : vector<8x6xf32>
    %142 = arith.mulf %141, %139 : vector<8x6xf32>
    %143 = arith.mulf %134, %78 : vector<8x6xf32>
    %144 = arith.addf %142, %143 : vector<8x6xf32>
    %c1_i32_35 = arith.constant 1 : i32
    %145 = vector.broadcast %c1_i32_35 : i32 to vector<8x1xi32>
    %146 = arith.cmpi eq, %2, %145 : vector<8x1xi32>
    %147 = vector.shape_cast %146 : vector<8x1xi1> to vector<8x1xi1>
    %148 = vector.broadcast %147 : vector<8x1xi1> to vector<8x6xi1>
    %149 = arith.select %148, %144, %83 : vector<8x6xi1>, vector<8x6xf32>
    %150 = vector.extract_strided_slice %14 {offsets = [0, 2, 0], sizes = [8, 1, 18], strides = [1, 1, 1]} : vector<8x8x18xf32> to vector<8x1x18xf32>
    %151 = vector.shape_cast %150 : vector<8x1x18xf32> to vector<8x18xf32>
    %cst_36 = arith.constant dense<0.000000e+00> : vector<8x18xf32>
    %152 = tpu.matmul %114, %5, %cst_36 {dimension_numbers = #tpu.dot_dimension_numbers<[1], [0], [0], [1], [0, 0, 1, 1], [], []>} : vector<8x6xf32>, vector<6x18xf32>, vector<8x18xf32> -> vector<8x18xf32>
    %153 = vector.extract_strided_slice %151 {offsets = [0, 0], sizes = [8, 6], strides = [1, 1]} : vector<8x18xf32> to vector<8x6xf32>
    %154 = vector.extract_strided_slice %152 {offsets = [0, 0], sizes = [8, 6], strides = [1, 1]} : vector<8x18xf32> to vector<8x6xf32>
    %155 = arith.addf %153, %154 : vector<8x6xf32>
    %156 = arith.negf %155 : vector<8x6xf32>
    %157 = math.exp %156 : vector<8x6xf32>
    %cst_37 = arith.constant 1.000000e+00 : f32
    %158 = vector.broadcast %cst_37 : f32 to vector<8x6xf32>
    %159 = arith.addf %158, %157 : vector<8x6xf32>
    %160 = arith.divf %158, %159 : vector<8x6xf32>
    %161 = vector.extract_strided_slice %151 {offsets = [0, 6], sizes = [8, 6], strides = [1, 1]} : vector<8x18xf32> to vector<8x6xf32>
    %162 = vector.extract_strided_slice %152 {offsets = [0, 6], sizes = [8, 6], strides = [1, 1]} : vector<8x18xf32> to vector<8x6xf32>
    %163 = arith.addf %161, %162 : vector<8x6xf32>
    %164 = arith.negf %163 : vector<8x6xf32>
    %165 = math.exp %164 : vector<8x6xf32>
    %cst_38 = arith.constant 1.000000e+00 : f32
    %166 = vector.broadcast %cst_38 : f32 to vector<8x6xf32>
    %167 = arith.addf %166, %165 : vector<8x6xf32>
    %168 = arith.divf %166, %167 : vector<8x6xf32>
    %169 = vector.extract_strided_slice %151 {offsets = [0, 12], sizes = [8, 6], strides = [1, 1]} : vector<8x18xf32> to vector<8x6xf32>
    %170 = vector.extract_strided_slice %152 {offsets = [0, 12], sizes = [8, 6], strides = [1, 1]} : vector<8x18xf32> to vector<8x6xf32>
    %171 = vector.broadcast %6 : vector<1x6xf32> to vector<8x6xf32>
    %172 = arith.addf %170, %171 : vector<8x6xf32>
    %173 = arith.mulf %160, %172 : vector<8x6xf32>
    %174 = arith.addf %169, %173 : vector<8x6xf32>
    %175 = math.tanh %174 : vector<8x6xf32>
    %cst_39 = arith.constant 1.000000e+00 : f32
    %176 = vector.broadcast %cst_39 : f32 to vector<8x6xf32>
    %177 = arith.subf %176, %168 : vector<8x6xf32>
    %178 = arith.mulf %177, %175 : vector<8x6xf32>
    %179 = arith.mulf %168, %114 : vector<8x6xf32>
    %180 = arith.addf %178, %179 : vector<8x6xf32>
    %181 = tpu.concatenate %180, %144 in 1 : vector<8x6xf32>, vector<8x6xf32> -> vector<8x12xf32>
    %cst_40 = arith.constant dense<0.000000e+00> : vector<8x36xf32>
    %182 = tpu.matmul %181, %7, %cst_40 {dimension_numbers = #tpu.dot_dimension_numbers<[1], [0], [0], [1], [0, 0, 1, 1], [], []>} : vector<8x12xf32>, vector<12x36xf32>, vector<8x36xf32> -> vector<8x36xf32>
    %183 = vector.broadcast %8 : vector<1x36xf32> to vector<8x36xf32>
    %184 = arith.addf %182, %183 : vector<8x36xf32>
    %185 = vector.extract_strided_slice %184 {offsets = [0, 0], sizes = [8, 6], strides = [1, 1]} : vector<8x36xf32> to vector<8x6xf32>
    %186 = vector.extract_strided_slice %184 {offsets = [0, 18], sizes = [8, 6], strides = [1, 1]} : vector<8x36xf32> to vector<8x6xf32>
    %187 = arith.addf %185, %186 : vector<8x6xf32>
    %188 = arith.negf %187 : vector<8x6xf32>
    %189 = math.exp %188 : vector<8x6xf32>
    %cst_41 = arith.constant 1.000000e+00 : f32
    %190 = vector.broadcast %cst_41 : f32 to vector<8x6xf32>
    %191 = arith.addf %190, %189 : vector<8x6xf32>
    %192 = arith.divf %190, %191 : vector<8x6xf32>
    %193 = vector.extract_strided_slice %184 {offsets = [0, 6], sizes = [8, 6], strides = [1, 1]} : vector<8x36xf32> to vector<8x6xf32>
    %194 = vector.extract_strided_slice %184 {offsets = [0, 24], sizes = [8, 6], strides = [1, 1]} : vector<8x36xf32> to vector<8x6xf32>
    %195 = arith.addf %193, %194 : vector<8x6xf32>
    %196 = arith.negf %195 : vector<8x6xf32>
    %197 = math.exp %196 : vector<8x6xf32>
    %cst_42 = arith.constant 1.000000e+00 : f32
    %198 = vector.broadcast %cst_42 : f32 to vector<8x6xf32>
    %199 = arith.addf %198, %197 : vector<8x6xf32>
    %200 = arith.divf %198, %199 : vector<8x6xf32>
    %201 = vector.extract_strided_slice %184 {offsets = [0, 12], sizes = [8, 6], strides = [1, 1]} : vector<8x36xf32> to vector<8x6xf32>
    %202 = vector.extract_strided_slice %184 {offsets = [0, 30], sizes = [8, 6], strides = [1, 1]} : vector<8x36xf32> to vector<8x6xf32>
    %203 = arith.mulf %192, %202 : vector<8x6xf32>
    %204 = arith.addf %201, %203 : vector<8x6xf32>
    %205 = math.tanh %204 : vector<8x6xf32>
    %cst_43 = arith.constant 1.000000e+00 : f32
    %206 = vector.broadcast %cst_43 : f32 to vector<8x6xf32>
    %207 = arith.subf %206, %200 : vector<8x6xf32>
    %208 = arith.mulf %207, %205 : vector<8x6xf32>
    %209 = arith.mulf %200, %144 : vector<8x6xf32>
    %210 = arith.addf %208, %209 : vector<8x6xf32>
    %c2_i32 = arith.constant 2 : i32
    %211 = vector.broadcast %c2_i32 : i32 to vector<8x1xi32>
    %212 = arith.cmpi eq, %2, %211 : vector<8x1xi32>
    %213 = vector.shape_cast %212 : vector<8x1xi1> to vector<8x1xi1>
    %214 = vector.broadcast %213 : vector<8x1xi1> to vector<8x6xi1>
    %215 = arith.select %214, %210, %149 : vector<8x6xi1>, vector<8x6xf32>
    %216 = vector.extract_strided_slice %14 {offsets = [0, 3, 0], sizes = [8, 1, 18], strides = [1, 1, 1]} : vector<8x8x18xf32> to vector<8x1x18xf32>
    %217 = vector.shape_cast %216 : vector<8x1x18xf32> to vector<8x18xf32>
    %cst_44 = arith.constant dense<0.000000e+00> : vector<8x18xf32>
    %218 = tpu.matmul %180, %5, %cst_44 {dimension_numbers = #tpu.dot_dimension_numbers<[1], [0], [0], [1], [0, 0, 1, 1], [], []>} : vector<8x6xf32>, vector<6x18xf32>, vector<8x18xf32> -> vector<8x18xf32>
    %219 = vector.extract_strided_slice %217 {offsets = [0, 0], sizes = [8, 6], strides = [1, 1]} : vector<8x18xf32> to vector<8x6xf32>
    %220 = vector.extract_strided_slice %218 {offsets = [0, 0], sizes = [8, 6], strides = [1, 1]} : vector<8x18xf32> to vector<8x6xf32>
    %221 = arith.addf %219, %220 : vector<8x6xf32>
    %222 = arith.negf %221 : vector<8x6xf32>
    %223 = math.exp %222 : vector<8x6xf32>
    %cst_45 = arith.constant 1.000000e+00 : f32
    %224 = vector.broadcast %cst_45 : f32 to vector<8x6xf32>
    %225 = arith.addf %224, %223 : vector<8x6xf32>
    %226 = arith.divf %224, %225 : vector<8x6xf32>
    %227 = vector.extract_strided_slice %217 {offsets = [0, 6], sizes = [8, 6], strides = [1, 1]} : vector<8x18xf32> to vector<8x6xf32>
    %228 = vector.extract_strided_slice %218 {offsets = [0, 6], sizes = [8, 6], strides = [1, 1]} : vector<8x18xf32> to vector<8x6xf32>
    %229 = arith.addf %227, %228 : vector<8x6xf32>
    %230 = arith.negf %229 : vector<8x6xf32>
    %231 = math.exp %230 : vector<8x6xf32>
    %cst_46 = arith.constant 1.000000e+00 : f32
    %232 = vector.broadcast %cst_46 : f32 to vector<8x6xf32>
    %233 = arith.addf %232, %231 : vector<8x6xf32>
    %234 = arith.divf %232, %233 : vector<8x6xf32>
    %235 = vector.extract_strided_slice %217 {offsets = [0, 12], sizes = [8, 6], strides = [1, 1]} : vector<8x18xf32> to vector<8x6xf32>
    %236 = vector.extract_strided_slice %218 {offsets = [0, 12], sizes = [8, 6], strides = [1, 1]} : vector<8x18xf32> to vector<8x6xf32>
    %237 = vector.broadcast %6 : vector<1x6xf32> to vector<8x6xf32>
    %238 = arith.addf %236, %237 : vector<8x6xf32>
    %239 = arith.mulf %226, %238 : vector<8x6xf32>
    %240 = arith.addf %235, %239 : vector<8x6xf32>
    %241 = math.tanh %240 : vector<8x6xf32>
    %cst_47 = arith.constant 1.000000e+00 : f32
    %242 = vector.broadcast %cst_47 : f32 to vector<8x6xf32>
    %243 = arith.subf %242, %234 : vector<8x6xf32>
    %244 = arith.mulf %243, %241 : vector<8x6xf32>
    %245 = arith.mulf %234, %180 : vector<8x6xf32>
    %246 = arith.addf %244, %245 : vector<8x6xf32>
    %247 = tpu.concatenate %246, %210 in 1 : vector<8x6xf32>, vector<8x6xf32> -> vector<8x12xf32>
    %cst_48 = arith.constant dense<0.000000e+00> : vector<8x36xf32>
    %248 = tpu.matmul %247, %7, %cst_48 {dimension_numbers = #tpu.dot_dimension_numbers<[1], [0], [0], [1], [0, 0, 1, 1], [], []>} : vector<8x12xf32>, vector<12x36xf32>, vector<8x36xf32> -> vector<8x36xf32>
    %249 = vector.broadcast %8 : vector<1x36xf32> to vector<8x36xf32>
    %250 = arith.addf %248, %249 : vector<8x36xf32>
    %251 = vector.extract_strided_slice %250 {offsets = [0, 0], sizes = [8, 6], strides = [1, 1]} : vector<8x36xf32> to vector<8x6xf32>
    %252 = vector.extract_strided_slice %250 {offsets = [0, 18], sizes = [8, 6], strides = [1, 1]} : vector<8x36xf32> to vector<8x6xf32>
    %253 = arith.addf %251, %252 : vector<8x6xf32>
    %254 = arith.negf %253 : vector<8x6xf32>
    %255 = math.exp %254 : vector<8x6xf32>
    %cst_49 = arith.constant 1.000000e+00 : f32
    %256 = vector.broadcast %cst_49 : f32 to vector<8x6xf32>
    %257 = arith.addf %256, %255 : vector<8x6xf32>
    %258 = arith.divf %256, %257 : vector<8x6xf32>
    %259 = vector.extract_strided_slice %250 {offsets = [0, 6], sizes = [8, 6], strides = [1, 1]} : vector<8x36xf32> to vector<8x6xf32>
    %260 = vector.extract_strided_slice %250 {offsets = [0, 24], sizes = [8, 6], strides = [1, 1]} : vector<8x36xf32> to vector<8x6xf32>
    %261 = arith.addf %259, %260 : vector<8x6xf32>
    %262 = arith.negf %261 : vector<8x6xf32>
    %263 = math.exp %262 : vector<8x6xf32>
    %cst_50 = arith.constant 1.000000e+00 : f32
    %264 = vector.broadcast %cst_50 : f32 to vector<8x6xf32>
    %265 = arith.addf %264, %263 : vector<8x6xf32>
    %266 = arith.divf %264, %265 : vector<8x6xf32>
    %267 = vector.extract_strided_slice %250 {offsets = [0, 12], sizes = [8, 6], strides = [1, 1]} : vector<8x36xf32> to vector<8x6xf32>
    %268 = vector.extract_strided_slice %250 {offsets = [0, 30], sizes = [8, 6], strides = [1, 1]} : vector<8x36xf32> to vector<8x6xf32>
    %269 = arith.mulf %258, %268 : vector<8x6xf32>
    %270 = arith.addf %267, %269 : vector<8x6xf32>
    %271 = math.tanh %270 : vector<8x6xf32>
    %cst_51 = arith.constant 1.000000e+00 : f32
    %272 = vector.broadcast %cst_51 : f32 to vector<8x6xf32>
    %273 = arith.subf %272, %266 : vector<8x6xf32>
    %274 = arith.mulf %273, %271 : vector<8x6xf32>
    %275 = arith.mulf %266, %210 : vector<8x6xf32>
    %276 = arith.addf %274, %275 : vector<8x6xf32>
    %c3_i32 = arith.constant 3 : i32
    %277 = vector.broadcast %c3_i32 : i32 to vector<8x1xi32>
    %278 = arith.cmpi eq, %2, %277 : vector<8x1xi32>
    %279 = vector.shape_cast %278 : vector<8x1xi1> to vector<8x1xi1>
    %280 = vector.broadcast %279 : vector<8x1xi1> to vector<8x6xi1>
    %281 = arith.select %280, %276, %215 : vector<8x6xi1>, vector<8x6xf32>
    %282 = vector.extract_strided_slice %14 {offsets = [0, 4, 0], sizes = [8, 1, 18], strides = [1, 1, 1]} : vector<8x8x18xf32> to vector<8x1x18xf32>
    %283 = vector.shape_cast %282 : vector<8x1x18xf32> to vector<8x18xf32>
    %cst_52 = arith.constant dense<0.000000e+00> : vector<8x18xf32>
    %284 = tpu.matmul %246, %5, %cst_52 {dimension_numbers = #tpu.dot_dimension_numbers<[1], [0], [0], [1], [0, 0, 1, 1], [], []>} : vector<8x6xf32>, vector<6x18xf32>, vector<8x18xf32> -> vector<8x18xf32>
    %285 = vector.extract_strided_slice %283 {offsets = [0, 0], sizes = [8, 6], strides = [1, 1]} : vector<8x18xf32> to vector<8x6xf32>
    %286 = vector.extract_strided_slice %284 {offsets = [0, 0], sizes = [8, 6], strides = [1, 1]} : vector<8x18xf32> to vector<8x6xf32>
    %287 = arith.addf %285, %286 : vector<8x6xf32>
    %288 = arith.negf %287 : vector<8x6xf32>
    %289 = math.exp %288 : vector<8x6xf32>
    %cst_53 = arith.constant 1.000000e+00 : f32
    %290 = vector.broadcast %cst_53 : f32 to vector<8x6xf32>
    %291 = arith.addf %290, %289 : vector<8x6xf32>
    %292 = arith.divf %290, %291 : vector<8x6xf32>
    %293 = vector.extract_strided_slice %283 {offsets = [0, 6], sizes = [8, 6], strides = [1, 1]} : vector<8x18xf32> to vector<8x6xf32>
    %294 = vector.extract_strided_slice %284 {offsets = [0, 6], sizes = [8, 6], strides = [1, 1]} : vector<8x18xf32> to vector<8x6xf32>
    %295 = arith.addf %293, %294 : vector<8x6xf32>
    %296 = arith.negf %295 : vector<8x6xf32>
    %297 = math.exp %296 : vector<8x6xf32>
    %cst_54 = arith.constant 1.000000e+00 : f32
    %298 = vector.broadcast %cst_54 : f32 to vector<8x6xf32>
    %299 = arith.addf %298, %297 : vector<8x6xf32>
    %300 = arith.divf %298, %299 : vector<8x6xf32>
    %301 = vector.extract_strided_slice %283 {offsets = [0, 12], sizes = [8, 6], strides = [1, 1]} : vector<8x18xf32> to vector<8x6xf32>
    %302 = vector.extract_strided_slice %284 {offsets = [0, 12], sizes = [8, 6], strides = [1, 1]} : vector<8x18xf32> to vector<8x6xf32>
    %303 = vector.broadcast %6 : vector<1x6xf32> to vector<8x6xf32>
    %304 = arith.addf %302, %303 : vector<8x6xf32>
    %305 = arith.mulf %292, %304 : vector<8x6xf32>
    %306 = arith.addf %301, %305 : vector<8x6xf32>
    %307 = math.tanh %306 : vector<8x6xf32>
    %cst_55 = arith.constant 1.000000e+00 : f32
    %308 = vector.broadcast %cst_55 : f32 to vector<8x6xf32>
    %309 = arith.subf %308, %300 : vector<8x6xf32>
    %310 = arith.mulf %309, %307 : vector<8x6xf32>
    %311 = arith.mulf %300, %246 : vector<8x6xf32>
    %312 = arith.addf %310, %311 : vector<8x6xf32>
    %313 = tpu.concatenate %312, %276 in 1 : vector<8x6xf32>, vector<8x6xf32> -> vector<8x12xf32>
    %cst_56 = arith.constant dense<0.000000e+00> : vector<8x36xf32>
    %314 = tpu.matmul %313, %7, %cst_56 {dimension_numbers = #tpu.dot_dimension_numbers<[1], [0], [0], [1], [0, 0, 1, 1], [], []>} : vector<8x12xf32>, vector<12x36xf32>, vector<8x36xf32> -> vector<8x36xf32>
    %315 = vector.broadcast %8 : vector<1x36xf32> to vector<8x36xf32>
    %316 = arith.addf %314, %315 : vector<8x36xf32>
    %317 = vector.extract_strided_slice %316 {offsets = [0, 0], sizes = [8, 6], strides = [1, 1]} : vector<8x36xf32> to vector<8x6xf32>
    %318 = vector.extract_strided_slice %316 {offsets = [0, 18], sizes = [8, 6], strides = [1, 1]} : vector<8x36xf32> to vector<8x6xf32>
    %319 = arith.addf %317, %318 : vector<8x6xf32>
    %320 = arith.negf %319 : vector<8x6xf32>
    %321 = math.exp %320 : vector<8x6xf32>
    %cst_57 = arith.constant 1.000000e+00 : f32
    %322 = vector.broadcast %cst_57 : f32 to vector<8x6xf32>
    %323 = arith.addf %322, %321 : vector<8x6xf32>
    %324 = arith.divf %322, %323 : vector<8x6xf32>
    %325 = vector.extract_strided_slice %316 {offsets = [0, 6], sizes = [8, 6], strides = [1, 1]} : vector<8x36xf32> to vector<8x6xf32>
    %326 = vector.extract_strided_slice %316 {offsets = [0, 24], sizes = [8, 6], strides = [1, 1]} : vector<8x36xf32> to vector<8x6xf32>
    %327 = arith.addf %325, %326 : vector<8x6xf32>
    %328 = arith.negf %327 : vector<8x6xf32>
    %329 = math.exp %328 : vector<8x6xf32>
    %cst_58 = arith.constant 1.000000e+00 : f32
    %330 = vector.broadcast %cst_58 : f32 to vector<8x6xf32>
    %331 = arith.addf %330, %329 : vector<8x6xf32>
    %332 = arith.divf %330, %331 : vector<8x6xf32>
    %333 = vector.extract_strided_slice %316 {offsets = [0, 12], sizes = [8, 6], strides = [1, 1]} : vector<8x36xf32> to vector<8x6xf32>
    %334 = vector.extract_strided_slice %316 {offsets = [0, 30], sizes = [8, 6], strides = [1, 1]} : vector<8x36xf32> to vector<8x6xf32>
    %335 = arith.mulf %324, %334 : vector<8x6xf32>
    %336 = arith.addf %333, %335 : vector<8x6xf32>
    %337 = math.tanh %336 : vector<8x6xf32>
    %cst_59 = arith.constant 1.000000e+00 : f32
    %338 = vector.broadcast %cst_59 : f32 to vector<8x6xf32>
    %339 = arith.subf %338, %332 : vector<8x6xf32>
    %340 = arith.mulf %339, %337 : vector<8x6xf32>
    %341 = arith.mulf %332, %276 : vector<8x6xf32>
    %342 = arith.addf %340, %341 : vector<8x6xf32>
    %c4_i32 = arith.constant 4 : i32
    %343 = vector.broadcast %c4_i32 : i32 to vector<8x1xi32>
    %344 = arith.cmpi eq, %2, %343 : vector<8x1xi32>
    %345 = vector.shape_cast %344 : vector<8x1xi1> to vector<8x1xi1>
    %346 = vector.broadcast %345 : vector<8x1xi1> to vector<8x6xi1>
    %347 = arith.select %346, %342, %281 : vector<8x6xi1>, vector<8x6xf32>
    %348 = vector.extract_strided_slice %14 {offsets = [0, 5, 0], sizes = [8, 1, 18], strides = [1, 1, 1]} : vector<8x8x18xf32> to vector<8x1x18xf32>
    %349 = vector.shape_cast %348 : vector<8x1x18xf32> to vector<8x18xf32>
    %cst_60 = arith.constant dense<0.000000e+00> : vector<8x18xf32>
    %350 = tpu.matmul %312, %5, %cst_60 {dimension_numbers = #tpu.dot_dimension_numbers<[1], [0], [0], [1], [0, 0, 1, 1], [], []>} : vector<8x6xf32>, vector<6x18xf32>, vector<8x18xf32> -> vector<8x18xf32>
    %351 = vector.extract_strided_slice %349 {offsets = [0, 0], sizes = [8, 6], strides = [1, 1]} : vector<8x18xf32> to vector<8x6xf32>
    %352 = vector.extract_strided_slice %350 {offsets = [0, 0], sizes = [8, 6], strides = [1, 1]} : vector<8x18xf32> to vector<8x6xf32>
    %353 = arith.addf %351, %352 : vector<8x6xf32>
    %354 = arith.negf %353 : vector<8x6xf32>
    %355 = math.exp %354 : vector<8x6xf32>
    %cst_61 = arith.constant 1.000000e+00 : f32
    %356 = vector.broadcast %cst_61 : f32 to vector<8x6xf32>
    %357 = arith.addf %356, %355 : vector<8x6xf32>
    %358 = arith.divf %356, %357 : vector<8x6xf32>
    %359 = vector.extract_strided_slice %349 {offsets = [0, 6], sizes = [8, 6], strides = [1, 1]} : vector<8x18xf32> to vector<8x6xf32>
    %360 = vector.extract_strided_slice %350 {offsets = [0, 6], sizes = [8, 6], strides = [1, 1]} : vector<8x18xf32> to vector<8x6xf32>
    %361 = arith.addf %359, %360 : vector<8x6xf32>
    %362 = arith.negf %361 : vector<8x6xf32>
    %363 = math.exp %362 : vector<8x6xf32>
    %cst_62 = arith.constant 1.000000e+00 : f32
    %364 = vector.broadcast %cst_62 : f32 to vector<8x6xf32>
    %365 = arith.addf %364, %363 : vector<8x6xf32>
    %366 = arith.divf %364, %365 : vector<8x6xf32>
    %367 = vector.extract_strided_slice %349 {offsets = [0, 12], sizes = [8, 6], strides = [1, 1]} : vector<8x18xf32> to vector<8x6xf32>
    %368 = vector.extract_strided_slice %350 {offsets = [0, 12], sizes = [8, 6], strides = [1, 1]} : vector<8x18xf32> to vector<8x6xf32>
    %369 = vector.broadcast %6 : vector<1x6xf32> to vector<8x6xf32>
    %370 = arith.addf %368, %369 : vector<8x6xf32>
    %371 = arith.mulf %358, %370 : vector<8x6xf32>
    %372 = arith.addf %367, %371 : vector<8x6xf32>
    %373 = math.tanh %372 : vector<8x6xf32>
    %cst_63 = arith.constant 1.000000e+00 : f32
    %374 = vector.broadcast %cst_63 : f32 to vector<8x6xf32>
    %375 = arith.subf %374, %366 : vector<8x6xf32>
    %376 = arith.mulf %375, %373 : vector<8x6xf32>
    %377 = arith.mulf %366, %312 : vector<8x6xf32>
    %378 = arith.addf %376, %377 : vector<8x6xf32>
    %379 = tpu.concatenate %378, %342 in 1 : vector<8x6xf32>, vector<8x6xf32> -> vector<8x12xf32>
    %cst_64 = arith.constant dense<0.000000e+00> : vector<8x36xf32>
    %380 = tpu.matmul %379, %7, %cst_64 {dimension_numbers = #tpu.dot_dimension_numbers<[1], [0], [0], [1], [0, 0, 1, 1], [], []>} : vector<8x12xf32>, vector<12x36xf32>, vector<8x36xf32> -> vector<8x36xf32>
    %381 = vector.broadcast %8 : vector<1x36xf32> to vector<8x36xf32>
    %382 = arith.addf %380, %381 : vector<8x36xf32>
    %383 = vector.extract_strided_slice %382 {offsets = [0, 0], sizes = [8, 6], strides = [1, 1]} : vector<8x36xf32> to vector<8x6xf32>
    %384 = vector.extract_strided_slice %382 {offsets = [0, 18], sizes = [8, 6], strides = [1, 1]} : vector<8x36xf32> to vector<8x6xf32>
    %385 = arith.addf %383, %384 : vector<8x6xf32>
    %386 = arith.negf %385 : vector<8x6xf32>
    %387 = math.exp %386 : vector<8x6xf32>
    %cst_65 = arith.constant 1.000000e+00 : f32
    %388 = vector.broadcast %cst_65 : f32 to vector<8x6xf32>
    %389 = arith.addf %388, %387 : vector<8x6xf32>
    %390 = arith.divf %388, %389 : vector<8x6xf32>
    %391 = vector.extract_strided_slice %382 {offsets = [0, 6], sizes = [8, 6], strides = [1, 1]} : vector<8x36xf32> to vector<8x6xf32>
    %392 = vector.extract_strided_slice %382 {offsets = [0, 24], sizes = [8, 6], strides = [1, 1]} : vector<8x36xf32> to vector<8x6xf32>
    %393 = arith.addf %391, %392 : vector<8x6xf32>
    %394 = arith.negf %393 : vector<8x6xf32>
    %395 = math.exp %394 : vector<8x6xf32>
    %cst_66 = arith.constant 1.000000e+00 : f32
    %396 = vector.broadcast %cst_66 : f32 to vector<8x6xf32>
    %397 = arith.addf %396, %395 : vector<8x6xf32>
    %398 = arith.divf %396, %397 : vector<8x6xf32>
    %399 = vector.extract_strided_slice %382 {offsets = [0, 12], sizes = [8, 6], strides = [1, 1]} : vector<8x36xf32> to vector<8x6xf32>
    %400 = vector.extract_strided_slice %382 {offsets = [0, 30], sizes = [8, 6], strides = [1, 1]} : vector<8x36xf32> to vector<8x6xf32>
    %401 = arith.mulf %390, %400 : vector<8x6xf32>
    %402 = arith.addf %399, %401 : vector<8x6xf32>
    %403 = math.tanh %402 : vector<8x6xf32>
    %cst_67 = arith.constant 1.000000e+00 : f32
    %404 = vector.broadcast %cst_67 : f32 to vector<8x6xf32>
    %405 = arith.subf %404, %398 : vector<8x6xf32>
    %406 = arith.mulf %405, %403 : vector<8x6xf32>
    %407 = arith.mulf %398, %342 : vector<8x6xf32>
    %408 = arith.addf %406, %407 : vector<8x6xf32>
    %c5_i32 = arith.constant 5 : i32
    %409 = vector.broadcast %c5_i32 : i32 to vector<8x1xi32>
    %410 = arith.cmpi eq, %2, %409 : vector<8x1xi32>
    %411 = vector.shape_cast %410 : vector<8x1xi1> to vector<8x1xi1>
    %412 = vector.broadcast %411 : vector<8x1xi1> to vector<8x6xi1>
    %413 = arith.select %412, %408, %347 : vector<8x6xi1>, vector<8x6xf32>
    %414 = vector.extract_strided_slice %14 {offsets = [0, 6, 0], sizes = [8, 1, 18], strides = [1, 1, 1]} : vector<8x8x18xf32> to vector<8x1x18xf32>
    %415 = vector.shape_cast %414 : vector<8x1x18xf32> to vector<8x18xf32>
    %cst_68 = arith.constant dense<0.000000e+00> : vector<8x18xf32>
    %416 = tpu.matmul %378, %5, %cst_68 {dimension_numbers = #tpu.dot_dimension_numbers<[1], [0], [0], [1], [0, 0, 1, 1], [], []>} : vector<8x6xf32>, vector<6x18xf32>, vector<8x18xf32> -> vector<8x18xf32>
    %417 = vector.extract_strided_slice %415 {offsets = [0, 0], sizes = [8, 6], strides = [1, 1]} : vector<8x18xf32> to vector<8x6xf32>
    %418 = vector.extract_strided_slice %416 {offsets = [0, 0], sizes = [8, 6], strides = [1, 1]} : vector<8x18xf32> to vector<8x6xf32>
    %419 = arith.addf %417, %418 : vector<8x6xf32>
    %420 = arith.negf %419 : vector<8x6xf32>
    %421 = math.exp %420 : vector<8x6xf32>
    %cst_69 = arith.constant 1.000000e+00 : f32
    %422 = vector.broadcast %cst_69 : f32 to vector<8x6xf32>
    %423 = arith.addf %422, %421 : vector<8x6xf32>
    %424 = arith.divf %422, %423 : vector<8x6xf32>
    %425 = vector.extract_strided_slice %415 {offsets = [0, 6], sizes = [8, 6], strides = [1, 1]} : vector<8x18xf32> to vector<8x6xf32>
    %426 = vector.extract_strided_slice %416 {offsets = [0, 6], sizes = [8, 6], strides = [1, 1]} : vector<8x18xf32> to vector<8x6xf32>
    %427 = arith.addf %425, %426 : vector<8x6xf32>
    %428 = arith.negf %427 : vector<8x6xf32>
    %429 = math.exp %428 : vector<8x6xf32>
    %cst_70 = arith.constant 1.000000e+00 : f32
    %430 = vector.broadcast %cst_70 : f32 to vector<8x6xf32>
    %431 = arith.addf %430, %429 : vector<8x6xf32>
    %432 = arith.divf %430, %431 : vector<8x6xf32>
    %433 = vector.extract_strided_slice %415 {offsets = [0, 12], sizes = [8, 6], strides = [1, 1]} : vector<8x18xf32> to vector<8x6xf32>
    %434 = vector.extract_strided_slice %416 {offsets = [0, 12], sizes = [8, 6], strides = [1, 1]} : vector<8x18xf32> to vector<8x6xf32>
    %435 = vector.broadcast %6 : vector<1x6xf32> to vector<8x6xf32>
    %436 = arith.addf %434, %435 : vector<8x6xf32>
    %437 = arith.mulf %424, %436 : vector<8x6xf32>
    %438 = arith.addf %433, %437 : vector<8x6xf32>
    %439 = math.tanh %438 : vector<8x6xf32>
    %cst_71 = arith.constant 1.000000e+00 : f32
    %440 = vector.broadcast %cst_71 : f32 to vector<8x6xf32>
    %441 = arith.subf %440, %432 : vector<8x6xf32>
    %442 = arith.mulf %441, %439 : vector<8x6xf32>
    %443 = arith.mulf %432, %378 : vector<8x6xf32>
    %444 = arith.addf %442, %443 : vector<8x6xf32>
    %445 = tpu.concatenate %444, %408 in 1 : vector<8x6xf32>, vector<8x6xf32> -> vector<8x12xf32>
    %cst_72 = arith.constant dense<0.000000e+00> : vector<8x36xf32>
    %446 = tpu.matmul %445, %7, %cst_72 {dimension_numbers = #tpu.dot_dimension_numbers<[1], [0], [0], [1], [0, 0, 1, 1], [], []>} : vector<8x12xf32>, vector<12x36xf32>, vector<8x36xf32> -> vector<8x36xf32>
    %447 = vector.broadcast %8 : vector<1x36xf32> to vector<8x36xf32>
    %448 = arith.addf %446, %447 : vector<8x36xf32>
    %449 = vector.extract_strided_slice %448 {offsets = [0, 0], sizes = [8, 6], strides = [1, 1]} : vector<8x36xf32> to vector<8x6xf32>
    %450 = vector.extract_strided_slice %448 {offsets = [0, 18], sizes = [8, 6], strides = [1, 1]} : vector<8x36xf32> to vector<8x6xf32>
    %451 = arith.addf %449, %450 : vector<8x6xf32>
    %452 = arith.negf %451 : vector<8x6xf32>
    %453 = math.exp %452 : vector<8x6xf32>
    %cst_73 = arith.constant 1.000000e+00 : f32
    %454 = vector.broadcast %cst_73 : f32 to vector<8x6xf32>
    %455 = arith.addf %454, %453 : vector<8x6xf32>
    %456 = arith.divf %454, %455 : vector<8x6xf32>
    %457 = vector.extract_strided_slice %448 {offsets = [0, 6], sizes = [8, 6], strides = [1, 1]} : vector<8x36xf32> to vector<8x6xf32>
    %458 = vector.extract_strided_slice %448 {offsets = [0, 24], sizes = [8, 6], strides = [1, 1]} : vector<8x36xf32> to vector<8x6xf32>
    %459 = arith.addf %457, %458 : vector<8x6xf32>
    %460 = arith.negf %459 : vector<8x6xf32>
    %461 = math.exp %460 : vector<8x6xf32>
    %cst_74 = arith.constant 1.000000e+00 : f32
    %462 = vector.broadcast %cst_74 : f32 to vector<8x6xf32>
    %463 = arith.addf %462, %461 : vector<8x6xf32>
    %464 = arith.divf %462, %463 : vector<8x6xf32>
    %465 = vector.extract_strided_slice %448 {offsets = [0, 12], sizes = [8, 6], strides = [1, 1]} : vector<8x36xf32> to vector<8x6xf32>
    %466 = vector.extract_strided_slice %448 {offsets = [0, 30], sizes = [8, 6], strides = [1, 1]} : vector<8x36xf32> to vector<8x6xf32>
    %467 = arith.mulf %456, %466 : vector<8x6xf32>
    %468 = arith.addf %465, %467 : vector<8x6xf32>
    %469 = math.tanh %468 : vector<8x6xf32>
    %cst_75 = arith.constant 1.000000e+00 : f32
    %470 = vector.broadcast %cst_75 : f32 to vector<8x6xf32>
    %471 = arith.subf %470, %464 : vector<8x6xf32>
    %472 = arith.mulf %471, %469 : vector<8x6xf32>
    %473 = arith.mulf %464, %408 : vector<8x6xf32>
    %474 = arith.addf %472, %473 : vector<8x6xf32>
    %c6_i32 = arith.constant 6 : i32
    %475 = vector.broadcast %c6_i32 : i32 to vector<8x1xi32>
    %476 = arith.cmpi eq, %2, %475 : vector<8x1xi32>
    %477 = vector.shape_cast %476 : vector<8x1xi1> to vector<8x1xi1>
    %478 = vector.broadcast %477 : vector<8x1xi1> to vector<8x6xi1>
    %479 = arith.select %478, %474, %413 : vector<8x6xi1>, vector<8x6xf32>
    %480 = vector.extract_strided_slice %14 {offsets = [0, 7, 0], sizes = [8, 1, 18], strides = [1, 1, 1]} : vector<8x8x18xf32> to vector<8x1x18xf32>
    %481 = vector.shape_cast %480 : vector<8x1x18xf32> to vector<8x18xf32>
    %cst_76 = arith.constant dense<0.000000e+00> : vector<8x18xf32>
    %482 = tpu.matmul %444, %5, %cst_76 {dimension_numbers = #tpu.dot_dimension_numbers<[1], [0], [0], [1], [0, 0, 1, 1], [], []>} : vector<8x6xf32>, vector<6x18xf32>, vector<8x18xf32> -> vector<8x18xf32>
    %483 = vector.extract_strided_slice %481 {offsets = [0, 0], sizes = [8, 6], strides = [1, 1]} : vector<8x18xf32> to vector<8x6xf32>
    %484 = vector.extract_strided_slice %482 {offsets = [0, 0], sizes = [8, 6], strides = [1, 1]} : vector<8x18xf32> to vector<8x6xf32>
    %485 = arith.addf %483, %484 : vector<8x6xf32>
    %486 = arith.negf %485 : vector<8x6xf32>
    %487 = math.exp %486 : vector<8x6xf32>
    %cst_77 = arith.constant 1.000000e+00 : f32
    %488 = vector.broadcast %cst_77 : f32 to vector<8x6xf32>
    %489 = arith.addf %488, %487 : vector<8x6xf32>
    %490 = arith.divf %488, %489 : vector<8x6xf32>
    %491 = vector.extract_strided_slice %481 {offsets = [0, 6], sizes = [8, 6], strides = [1, 1]} : vector<8x18xf32> to vector<8x6xf32>
    %492 = vector.extract_strided_slice %482 {offsets = [0, 6], sizes = [8, 6], strides = [1, 1]} : vector<8x18xf32> to vector<8x6xf32>
    %493 = arith.addf %491, %492 : vector<8x6xf32>
    %494 = arith.negf %493 : vector<8x6xf32>
    %495 = math.exp %494 : vector<8x6xf32>
    %cst_78 = arith.constant 1.000000e+00 : f32
    %496 = vector.broadcast %cst_78 : f32 to vector<8x6xf32>
    %497 = arith.addf %496, %495 : vector<8x6xf32>
    %498 = arith.divf %496, %497 : vector<8x6xf32>
    %499 = vector.extract_strided_slice %481 {offsets = [0, 12], sizes = [8, 6], strides = [1, 1]} : vector<8x18xf32> to vector<8x6xf32>
    %500 = vector.extract_strided_slice %482 {offsets = [0, 12], sizes = [8, 6], strides = [1, 1]} : vector<8x18xf32> to vector<8x6xf32>
    %501 = vector.broadcast %6 : vector<1x6xf32> to vector<8x6xf32>
    %502 = arith.addf %500, %501 : vector<8x6xf32>
    %503 = arith.mulf %490, %502 : vector<8x6xf32>
    %504 = arith.addf %499, %503 : vector<8x6xf32>
    %505 = math.tanh %504 : vector<8x6xf32>
    %cst_79 = arith.constant 1.000000e+00 : f32
    %506 = vector.broadcast %cst_79 : f32 to vector<8x6xf32>
    %507 = arith.subf %506, %498 : vector<8x6xf32>
    %508 = arith.mulf %507, %505 : vector<8x6xf32>
    %509 = arith.mulf %498, %444 : vector<8x6xf32>
    %510 = arith.addf %508, %509 : vector<8x6xf32>
    %511 = tpu.concatenate %510, %474 in 1 : vector<8x6xf32>, vector<8x6xf32> -> vector<8x12xf32>
    %cst_80 = arith.constant dense<0.000000e+00> : vector<8x36xf32>
    %512 = tpu.matmul %511, %7, %cst_80 {dimension_numbers = #tpu.dot_dimension_numbers<[1], [0], [0], [1], [0, 0, 1, 1], [], []>} : vector<8x12xf32>, vector<12x36xf32>, vector<8x36xf32> -> vector<8x36xf32>
    %513 = vector.broadcast %8 : vector<1x36xf32> to vector<8x36xf32>
    %514 = arith.addf %512, %513 : vector<8x36xf32>
    %515 = vector.extract_strided_slice %514 {offsets = [0, 0], sizes = [8, 6], strides = [1, 1]} : vector<8x36xf32> to vector<8x6xf32>
    %516 = vector.extract_strided_slice %514 {offsets = [0, 18], sizes = [8, 6], strides = [1, 1]} : vector<8x36xf32> to vector<8x6xf32>
    %517 = arith.addf %515, %516 : vector<8x6xf32>
    %518 = arith.negf %517 : vector<8x6xf32>
    %519 = math.exp %518 : vector<8x6xf32>
    %cst_81 = arith.constant 1.000000e+00 : f32
    %520 = vector.broadcast %cst_81 : f32 to vector<8x6xf32>
    %521 = arith.addf %520, %519 : vector<8x6xf32>
    %522 = arith.divf %520, %521 : vector<8x6xf32>
    %523 = vector.extract_strided_slice %514 {offsets = [0, 6], sizes = [8, 6], strides = [1, 1]} : vector<8x36xf32> to vector<8x6xf32>
    %524 = vector.extract_strided_slice %514 {offsets = [0, 24], sizes = [8, 6], strides = [1, 1]} : vector<8x36xf32> to vector<8x6xf32>
    %525 = arith.addf %523, %524 : vector<8x6xf32>
    %526 = arith.negf %525 : vector<8x6xf32>
    %527 = math.exp %526 : vector<8x6xf32>
    %cst_82 = arith.constant 1.000000e+00 : f32
    %528 = vector.broadcast %cst_82 : f32 to vector<8x6xf32>
    %529 = arith.addf %528, %527 : vector<8x6xf32>
    %530 = arith.divf %528, %529 : vector<8x6xf32>
    %531 = vector.extract_strided_slice %514 {offsets = [0, 12], sizes = [8, 6], strides = [1, 1]} : vector<8x36xf32> to vector<8x6xf32>
    %532 = vector.extract_strided_slice %514 {offsets = [0, 30], sizes = [8, 6], strides = [1, 1]} : vector<8x36xf32> to vector<8x6xf32>
    %533 = arith.mulf %522, %532 : vector<8x6xf32>
    %534 = arith.addf %531, %533 : vector<8x6xf32>
    %535 = math.tanh %534 : vector<8x6xf32>
    %cst_83 = arith.constant 1.000000e+00 : f32
    %536 = vector.broadcast %cst_83 : f32 to vector<8x6xf32>
    %537 = arith.subf %536, %530 : vector<8x6xf32>
    %538 = arith.mulf %537, %535 : vector<8x6xf32>
    %539 = arith.mulf %530, %474 : vector<8x6xf32>
    %540 = arith.addf %538, %539 : vector<8x6xf32>
    %c7_i32 = arith.constant 7 : i32
    %541 = vector.broadcast %c7_i32 : i32 to vector<8x1xi32>
    %542 = arith.cmpi eq, %2, %541 : vector<8x1xi32>
    %543 = vector.shape_cast %542 : vector<8x1xi1> to vector<8x1xi1>
    %544 = vector.broadcast %543 : vector<8x1xi1> to vector<8x6xi1>
    %545 = arith.select %544, %540, %479 : vector<8x6xi1>, vector<8x6xf32>
    %546 = math.tanh %545 : vector<8x6xf32>
    %c0_84 = arith.constant 0 : index
    %c0_85 = arith.constant 0 : index
    %547 = vector.load %arg9[%c0_84, %c0_85] : memref<6x128xf32, #tpu.memory_space<vmem>>, vector<6x128xf32>
    %cst_86 = arith.constant dense<0.000000e+00> : vector<8x128xf32>
    %548 = tpu.matmul %546, %547, %cst_86 {dimension_numbers = #tpu.dot_dimension_numbers<[1], [0], [0], [1], [0, 0, 1, 1], [], []>} : vector<8x6xf32>, vector<6x128xf32>, vector<8x128xf32> -> vector<8x128xf32>
    %c0_87 = arith.constant 0 : index
    %c0_88 = arith.constant 0 : index
    %549 = vector.load %arg10[%c0_87, %c0_88] : memref<1x128xf32, #tpu.memory_space<vmem>>, vector<1x128xf32>
    %550 = vector.broadcast %549 : vector<1x128xf32> to vector<8x128xf32>
    %551 = arith.addf %548, %550 : vector<8x128xf32>
    %c0_89 = arith.constant 0 : index
    %c0_90 = arith.constant 0 : index
    %552 = vector.load %arg11[%c0_89, %c0_90] : memref<8x128xf32, #tpu.memory_space<vmem>>, vector<8x128xf32>
    tpu.vector_store %arg11[%c0_89, %c0_90], %551 {strides = array<i32>} : memref<8x128xf32, #tpu.memory_space<vmem>>, vector<8x128xf32>,
    return
  }
  func.func @transform_0(%arg0: i32) -> (i32, i32, i32) {
    %c0_i32 = arith.constant 0 : i32
    %c0_i32_0 = arith.constant 0 : i32
    %c0_i32_1 = arith.constant 0 : i32
    return %arg0, %c0_i32, %c0_i32_0 : i32, i32, i32
  }
  func.func @transform_1(%arg0: i32) -> (i32, i32) {
    %c0_i32 = arith.constant 0 : i32
    %c0_i32_0 = arith.constant 0 : i32
    return %arg0, %c0_i32 : i32, i32
  }
  func.func @transform_2(%arg0: i32) -> (i32, i32) {
    %c0_i32 = arith.constant 0 : i32
    %c0_i32_0 = arith.constant 0 : i32
    %c0_i32_1 = arith.constant 0 : i32
    return %c0_i32, %c0_i32_0 : i32, i32
  }
  func.func @transform_3(%arg0: i32) -> (i32, i32) {
    %c0_i32 = arith.constant 0 : i32
    %c0_i32_0 = arith.constant 0 : i32
    %c0_i32_1 = arith.constant 0 : i32
    return %c0_i32, %c0_i32_0 : i32, i32
  }
  func.func @transform_4(%arg0: i32) -> (i32, i32) {
    %c0_i32 = arith.constant 0 : i32
    %c0_i32_0 = arith.constant 0 : i32
    %c0_i32_1 = arith.constant 0 : i32
    return %c0_i32, %c0_i32_0 : i32, i32
  }
  func.func @transform_5(%arg0: i32) -> (i32, i32) {
    %c0_i32 = arith.constant 0 : i32
    %c0_i32_0 = arith.constant 0 : i32
    %c0_i32_1 = arith.constant 0 : i32
    return %c0_i32, %c0_i32_0 : i32, i32
  }
  func.func @transform_6(%arg0: i32) -> (i32, i32) {
    %c0_i32 = arith.constant 0 : i32
    %c0_i32_0 = arith.constant 0 : i32
    %c0_i32_1 = arith.constant 0 : i32
    return %c0_i32, %c0_i32_0 : i32, i32
  }
  func.func @transform_7(%arg0: i32) -> (i32, i32) {
    %c0_i32 = arith.constant 0 : i32
    %c0_i32_0 = arith.constant 0 : i32
    %c0_i32_1 = arith.constant 0 : i32
    return %c0_i32, %c0_i32_0 : i32, i32
  }
  func.func @transform_8(%arg0: i32) -> (i32, i32) {
    %c0_i32 = arith.constant 0 : i32
    %c0_i32_0 = arith.constant 0 : i32
    %c0_i32_1 = arith.constant 0 : i32
    return %c0_i32, %c0_i32_0 : i32, i32
  }
  func.func @transform_9(%arg0: i32) -> (i32, i32) {
    %c0_i32 = arith.constant 0 : i32
    %c0_i32_0 = arith.constant 0 : i32
    %c0_i32_1 = arith.constant 0 : i32
    return %c0_i32, %c0_i32_0 : i32, i32
  }
  func.func @transform_10(%arg0: i32) -> (i32, i32) {
    %c0_i32 = arith.constant 0 : i32
    %c0_i32_0 = arith.constant 0 : i32
    return %arg0, %c0_i32 : i32, i32
  }
}

</mosaic_0001>

<llo_original>
// kernel: tpu_custom_call.1
$region0: #{tpu_custom_call.1}
  #allocation0 [shape = 'u32[]', space=smem, size = 0x4, offset = 0x4, fixed_abs, tag = 'smem constant byte address 0x4 - core index']
  #allocation1 [shape = 'u32[144,128]{1,0:T(1,128)}', space=vmem, size = 0x12000, scoped, tag = 'internal scratch']
  %s0 = inlined_call_operand.hbm [shape: f32[8,8,8], index: 0, kind: input, shape index: {}]
  %s1 = inlined_call_operand.vmem [shape: s32[8,1], index: 1, kind: input, shape index: {}]
  %s2 = inlined_call_operand.vmem [shape: f32[8,18], index: 2, kind: input, shape index: {}]
  %s3 = inlined_call_operand.vmem [shape: f32[1,18], index: 3, kind: input, shape index: {}]
  %s4 = inlined_call_operand.hbm [shape: f32[6,18], index: 4, kind: input, shape index: {}]
  %s5 = inlined_call_operand.vmem [shape: f32[1,6], index: 5, kind: input, shape index: {}]
  %s6 = inlined_call_operand.vmem [shape: f32[12,36], index: 6, kind: input, shape index: {}]
  %s7 = inlined_call_operand.vmem [shape: f32[1,36], index: 7, kind: input, shape index: {}]
  %s8 = inlined_call_operand.vmem [shape: f32[6,128], index: 8, kind: input, shape index: {}]
  %s9 = inlined_call_operand.vmem [shape: f32[1,128], index: 9, kind: input, shape index: {}]
  %s10 = inlined_call_operand.hbm [shape: f32[8,128], index: 10, kind: output, shape index: {}]
  %s11 = sld [smem:[#allocation0]]
  $region58: #{tpu_custom_call.1} parent=0
    _
  %s13 = ssub.s32 1, %s11
  %s14 = scalar_select 0, %s13, %s11
  $region1: #{tpu_custom_call.1} parent=0
    #allocation2 [shape = 'u8[32768]{0}', space=vmem, size = 0x8000, scoped, tag = 'input window, operand 0, single buffered']
    #allocation3 [shape = 's32[1]{0}', space=sflag, size = 0x4, scoped, tag = 'scoped memory for tpu_custom_call.1']
    #allocation4 [shape = 's32[1]{0}', space=sflag, size = 0x4, scoped, tag = 'scoped memory for tpu_custom_call.1']
    #allocation5 [shape = 'u8[4096]{0}', space=vmem, size = 0x1000, scoped, tag = 'input window, operand 4, single buffered']
    #allocation6 [shape = 's32[1]{0}', space=sflag, size = 0x4, scoped, tag = 'scoped memory for tpu_custom_call.1']
    #allocation7 [shape = 'u8[4096]{0}', space=vmem, size = 0x1000, scoped, tag = 'output window, operand 0, single buffered']
    %15 = vsyncpa [#allocation3], 0
    %16 = vsyncpa [#allocation6], 0
    %17 = vsyncpa [#allocation4], 0
    // Predicated region
    $region2: #{tpu_custom_call.1} parent=1 // pred_check
      _
    $region3: #{tpu_custom_call.1} parent=1 // pred_check_branch
      %19 = sbr.rel (0) target = $region5
    $region4: #{tpu_custom_call.1} parent=1 // pred_region
      %s21 = ssub.s32 1024, 1024
      %22 = vsyncadd [#allocation3], %s21
      %s23 = sshll.u32 [#allocation2], 4
      %s24 = int_to_ptr.vmem [resolvable:$true] %s23
      %29 = dma.hbm_to_vmem [thread:$0]  %s0, 1024, %s24, [#allocation3], 128, 128, 8
    $region5: #{tpu_custom_call.1} parent=1 // pred_fallthru
      _
    // Predicated region
    $region6: #{tpu_custom_call.1} parent=1 // pred_check
      _
    $region7: #{tpu_custom_call.1} parent=1 // pred_check_branch
      %31 = sbr.rel (0) target = $region9
    $region8: #{tpu_custom_call.1} parent=1 // pred_region
      _
    $region9: #{tpu_custom_call.1} parent=1 // pred_fallthru
      _
    // Predicated region
    $region10: #{tpu_custom_call.1} parent=1 // pred_check
      _
    $region11: #{tpu_custom_call.1} parent=1 // pred_check_branch
      %33 = sbr.rel (0) target = $region13
    $region12: #{tpu_custom_call.1} parent=1 // pred_region
      _
    $region13: #{tpu_custom_call.1} parent=1 // pred_fallthru
      _
    // Predicated region
    $region14: #{tpu_custom_call.1} parent=1 // pred_check
      _
    $region15: #{tpu_custom_call.1} parent=1 // pred_check_branch
      %35 = sbr.rel (0) target = $region17
    $region16: #{tpu_custom_call.1} parent=1 // pred_region
      _
    $region17: #{tpu_custom_call.1} parent=1 // pred_fallthru
      _
    // Predicated region
    $region18: #{tpu_custom_call.1} parent=1 // pred_check
      _
    $region19: #{tpu_custom_call.1} parent=1 // pred_check_branch
      %37 = sbr.rel (0) target = $region21
    $region20: #{tpu_custom_call.1} parent=1 // pred_region
      %s39 = ssub.s32 128, 128
      %40 = vsyncadd [#allocation6], %s39
      %s42 = sshll.u32 [#allocation5], 4
      %s43 = int_to_ptr.vmem [resolvable:$true] %s42
      %45 = dma.hbm_to_vmem [thread:$0]  %s4, 128, %s43, [#allocation6]
    $region21: #{tpu_custom_call.1} parent=1 // pred_fallthru
      _
    // Predicated region
    $region22: #{tpu_custom_call.1} parent=1 // pred_check
      _
    $region23: #{tpu_custom_call.1} parent=1 // pred_check_branch
      %47 = sbr.rel (0) target = $region25
    $region24: #{tpu_custom_call.1} parent=1 // pred_region
      _
    $region25: #{tpu_custom_call.1} parent=1 // pred_fallthru
      _
    // Predicated region
    $region26: #{tpu_custom_call.1} parent=1 // pred_check
      _
    $region27: #{tpu_custom_call.1} parent=1 // pred_check_branch
      %49 = sbr.rel (0) target = $region29
    $region28: #{tpu_custom_call.1} parent=1 // pred_region
      _
    $region29: #{tpu_custom_call.1} parent=1 // pred_fallthru
      _
    // Predicated region
    $region30: #{tpu_custom_call.1} parent=1 // pred_check
      _
    $region31: #{tpu_custom_call.1} parent=1 // pred_check_branch
      %51 = sbr.rel (0) target = $region33
    $region32: #{tpu_custom_call.1} parent=1 // pred_region
      _
    $region33: #{tpu_custom_call.1} parent=1 // pred_fallthru
      _
    // Predicated region
    $region34: #{tpu_custom_call.1} parent=1 // pred_check
      _
    $region35: #{tpu_custom_call.1} parent=1 // pred_check_branch
      %53 = sbr.rel (0) target = $region37
    $region36: #{tpu_custom_call.1} parent=1 // pred_region
      _
    $region37: #{tpu_custom_call.1} parent=1 // pred_fallthru
      _
    // Predicated region
    $region38: #{tpu_custom_call.1} parent=1 // pred_check
      _
    $region39: #{tpu_custom_call.1} parent=1 // pred_check_branch
      %55 = sbr.rel (0) target = $region41
    $region40: #{tpu_custom_call.1} parent=1 // pred_region
      _
    $region41: #{tpu_custom_call.1} parent=1 // pred_fallthru
      _
    // Predicated region
    $region42: #{tpu_custom_call.1} parent=1 // pred_check
      _
    $region43: #{tpu_custom_call.1} parent=1 // pred_check_branch
      %57 = sbr.rel (0) target = $region45
    $region44: #{tpu_custom_call.1} parent=1 // pred_region
      %58 = dma.done [#allocation3], 1024
    $region45: #{tpu_custom_call.1} parent=1 // pred_fallthru
      _
    // Predicated region
    $region46: #{tpu_custom_call.1} parent=1 // pred_check
      _
    $region47: #{tpu_custom_call.1} parent=1 // pred_check_branch
      %60 = sbr.rel (0) target = $region49
    $region48: #{tpu_custom_call.1} parent=1 // pred_region
      %61 = dma.done [#allocation6], 128
    $region49: #{tpu_custom_call.1} parent=1 // pred_fallthru
      _
    %v62 = vld [vmem:[%s1] sm:$0xff]
    %v63 = vsub.s32 %v62, 1
    %v64 = vld [vmem:[%s2] sm:$0xff]
    %v65 = vld [vmem:[%s3] sm:$0x1]
    %v66 = vld [vmem:[#allocation5] sm:$0x3f]
    %v67 = vld [vmem:[%s5] sm:$0x1]
    %v68 = vld [vmem:[%s6] sm:$0xff]
    %v69 = vld [vmem:[%s6 + $0x8] sm:$0xf]
    %v70 = vld [vmem:[%s7] sm:$0x1]
    %v71 = vld [vmem:[#allocation2] sm:$0xff]
    %v72 = vld [vmem:[#allocation2 + $0x8] sm:$0xff]
    %v73 = vld [vmem:[#allocation2 + $0x10] sm:$0xff]
    %v74 = vld [vmem:[#allocation2 + $0x18] sm:$0xff]
    %v75 = vld [vmem:[#allocation2 + $0x20] sm:$0xff]
    %v76 = vld [vmem:[#allocation2 + $0x28] sm:$0xff]
    %v77 = vld [vmem:[#allocation2 + $0x30] sm:$0xff]
    %v78 = vld [vmem:[#allocation2 + $0x38] sm:$0xff]
    %v80 = vlaneseq
    %v81 = vshrl.u32 %v80, 7
    %v82 = vsub.s32 0, %v81
    %v83 = vrot.slane %v65, %v82
    %vm85 = vcmask 64512
    %v87 = vsel %vm85, %v71, 0
    %v90 = vsel %vm85, %v72, 0
    %v93 = vsel %vm85, %v73, 0
    %v96 = vsel %vm85, %v74, 0
    %v99 = vsel %vm85, %v75, 0
    %v102 = vsel %vm85, %v76, 0
    %v105 = vsel %vm85, %v77, 0
    %v108 = vsel %vm85, %v78, 0
    %110 = vmatprep.subr.mxu0 0.0
    %111 = vmatpush1.msra.mxu0 %v64
    %112 = vmatprep.subr.mxu0 0.0
    %113 = vmatpush1.msra.mxu0 0.0
    %114 = vmatprep.subr.mxu0 0.0
    %115 = vmatpush1.msra.mxu0 0.0
    %116 = vmatprep.subr.mxu0 0.0
    %117 = vmatpush1.msra.mxu0 0.0
    %118 = vmatprep.subr.mxu0 0.0
    %119 = vmatpush1.msra.mxu0 0.0
    %120 = vmatprep.subr.mxu0 0.0
    %121 = vmatpush1.msra.mxu0 0.0
    %122 = vmatprep.subr.mxu0 0.0
    %123 = vmatpush1.msra.mxu0 0.0
    %124 = vmatprep.subr.mxu0 0.0
    %125 = vmatpush1.msra.mxu0 0.0
    %126 = vmatprep.subr.mxu0 0.0
    %127 = vmatpush1.msra.mxu0 0.0
    %128 = vmatprep.subr.mxu0 0.0
    %129 = vmatpush1.msra.mxu0 0.0
    %130 = vmatprep.subr.mxu0 0.0
    %131 = vmatpush1.msra.mxu0 0.0
    %132 = vmatprep.subr.mxu0 0.0
    %133 = vmatpush1.msra.mxu0 0.0
    %134 = vmatprep.subr.mxu0 0.0
    %135 = vmatpush1.msra.mxu0 0.0
    %136 = vmatprep.subr.mxu0 0.0
    %137 = vmatpush1.msra.mxu0 0.0
    %138 = vmatprep.subr.mxu0 0.0
    %139 = vmatpush1.msra.mxu0 0.0
    %140 = vmatprep.subr.mxu0 0.0
    %141 = vmatpush1.msra.mxu0 0.0
    %142 = vmatprep.subr.mxu0 0.0
    %143 = vmatpush1.msra.mxu0 0.0
    %144 = vmatprep.subr.mxu0 0.0
    %145 = vmatpush1.msra.mxu0 0.0
    %146 = vmatprep.subr.mxu0 0.0
    %147 = vmatpush1.msra.mxu0 0.0
    %148 = vmatprep.subr.mxu0 0.0
    %149 = vmatpush1.msra.mxu0 0.0
    %150 = vmatprep.subr.mxu0 0.0
    %151 = vmatpush1.msra.mxu0 0.0
    %152 = vmatprep.subr.mxu0 0.0
    %153 = vmatpush1.msra.mxu0 0.0
    %154 = vmatprep.subr.mxu0 0.0
    %155 = vmatpush1.msra.mxu0 0.0
    %156 = vmatprep.subr.mxu0 0.0
    %157 = vmatpush1.msra.mxu0 0.0
    %158 = vmatprep.subr.mxu0 0.0
    %159 = vmatpush1.msra.mxu0 0.0
    %160 = vmatprep.subr.mxu0 0.0
    %161 = vmatpush1.msra.mxu0 0.0
    %162 = vmatprep.subr.mxu0 0.0
    %163 = vmatpush1.msra.mxu0 0.0
    %164 = vmatprep.subr.mxu0 0.0
    %165 = vmatpush1.msra.mxu0 0.0
    %166 = vmatprep.subr.mxu0 0.0
    %167 = vmatpush1.msra.mxu0 0.0
    %168 = vmatprep.subr.mxu0 0.0
    %169 = vmatpush1.msra.mxu0 0.0
    %170 = vmatprep.subr.mxu0 0.0
    %171 = vmatpush1.msra.mxu0 0.0
    %172 = vmatprep.subr.mxu0 0.0
    %173 = vmatpush1.msra.mxu0 0.0
    %174 = vmatprep.mubr.f32.mxu0 0.0
    %175 = vmatmul.mubr.f32.gmra.mrb[0].mxu0 %v87
    %v176 = vpop.f32.mrb[0].mxu0
    %v177 = vadd.f32 %v83, %v176
    %v178 = vpop.f32.mrb[0].mxu0
    %179 = vmatprep.mubr.f32.mxu0 0.0
    %180 = vmatmul.mubr.f32.gmra.mrb[0].mxu0 %v90
    %v181 = vpop.f32.mrb[0].mxu0
    %v182 = vadd.f32 %v83, %v181
    %v183 = vpop.f32.mrb[0].mxu0
    %184 = vmatprep.mubr.f32.mxu0 0.0
    %185 = vmatmul.mubr.f32.gmra.mrb[0].mxu0 %v93
    %v186 = vpop.f32.mrb[0].mxu0
    %v187 = vadd.f32 %v83, %v186
    %v188 = vpop.f32.mrb[0].mxu0
    %189 = vmatprep.mubr.f32.mxu0 0.0
    %190 = vmatmul.mubr.f32.gmra.mrb[0].mxu0 %v96
    %v191 = vpop.f32.mrb[0].mxu0
    %v192 = vadd.f32 %v83, %v191
    %v193 = vpop.f32.mrb[0].mxu0
    %194 = vmatprep.mubr.f32.mxu0 0.0
    %195 = vmatmul.mubr.f32.gmra.mrb[0].mxu0 %v99
    %v196 = vpop.f32.mrb[0].mxu0
    %v197 = vadd.f32 %v83, %v196
    %v198 = vpop.f32.mrb[0].mxu0
    %199 = vmatprep.mubr.f32.mxu0 0.0
    %200 = vmatmul.mubr.f32.gmra.mrb[0].mxu0 %v102
    %v201 = vpop.f32.mrb[0].mxu0
    %v202 = vadd.f32 %v83, %v201
    %v203 = vpop.f32.mrb[0].mxu0
    %204 = vmatprep.mubr.f32.mxu0 0.0
    %205 = vmatmul.mubr.f32.gmra.mrb[0].mxu0 %v105
    %v206 = vpop.f32.mrb[0].mxu0
    %v207 = vadd.f32 %v83, %v206
    %v208 = vpop.f32.mrb[0].mxu0
    %209 = vmatprep.mubr.f32.mxu0 0.0
    %210 = vmatmul.mubr.f32.gmra.mrb[0].mxu0 %v108
    %v211 = vpop.f32.mrb[0].mxu0
    %v212 = vadd.f32 %v83, %v211
    %v213 = vpop.f32.mrb[0].mxu0
    %214 = vdwg.mxu0
    %vm215 = vcmask 48128
    %v217 = vsel %vm215, 0.0, 0
    %vm219 = vcmask 1045504
    %v221 = vsel %vm219, %v66, 0
    %223 = vmatprep.subr.mxu0 0.0
    %224 = vmatpush1.msra.mxu0 %v221
    %225 = vmatprep.subr.mxu0 0.0
    %226 = vmatpush1.msra.mxu0 0.0
    %227 = vmatprep.subr.mxu0 0.0
    %228 = vmatpush1.msra.mxu0 0.0
    %229 = vmatprep.subr.mxu0 0.0
    %230 = vmatpush1.msra.mxu0 0.0
    %231 = vmatprep.subr.mxu0 0.0
    %232 = vmatpush1.msra.mxu0 0.0
    %233 = vmatprep.subr.mxu0 0.0
    %234 = vmatpush1.msra.mxu0 0.0
    %235 = vmatprep.subr.mxu0 0.0
    %236 = vmatpush1.msra.mxu0 0.0
    %237 = vmatprep.subr.mxu0 0.0
    %238 = vmatpush1.msra.mxu0 0.0
    %239 = vmatprep.subr.mxu0 0.0
    %240 = vmatpush1.msra.mxu0 0.0
    %241 = vmatprep.subr.mxu0 0.0
    %242 = vmatpush1.msra.mxu0 0.0
    %243 = vmatprep.subr.mxu0 0.0
    %244 = vmatpush1.msra.mxu0 0.0
    %245 = vmatprep.subr.mxu0 0.0
    %246 = vmatpush1.msra.mxu0 0.0
    %247 = vmatprep.subr.mxu0 0.0
    %248 = vmatpush1.msra.mxu0 0.0
    %249 = vmatprep.subr.mxu0 0.0
    %250 = vmatpush1.msra.mxu0 0.0
    %251 = vmatprep.subr.mxu0 0.0
    %252 = vmatpush1.msra.mxu0 0.0
    %253 = vmatprep.subr.mxu0 0.0
    %254 = vmatpush1.msra.mxu0 0.0
    %255 = vmatprep.subr.mxu0 0.0
    %256 = vmatpush1.msra.mxu0 0.0
    %257 = vmatprep.subr.mxu0 0.0
    %258 = vmatpush1.msra.mxu0 0.0
    %259 = vmatprep.subr.mxu0 0.0
    %260 = vmatpush1.msra.mxu0 0.0
    %261 = vmatprep.subr.mxu0 0.0
    %262 = vmatpush1.msra.mxu0 0.0
    %263 = vmatprep.subr.mxu0 0.0
    %264 = vmatpush1.msra.mxu0 0.0
    %265 = vmatprep.subr.mxu0 0.0
    %266 = vmatpush1.msra.mxu0 0.0
    %267 = vmatprep.subr.mxu0 0.0
    %268 = vmatpush1.msra.mxu0 0.0
    %269 = vmatprep.subr.mxu0 0.0
    %270 = vmatpush1.msra.mxu0 0.0
    %271 = vmatprep.subr.mxu0 0.0
    %272 = vmatpush1.msra.mxu0 0.0
    %273 = vmatprep.subr.mxu0 0.0
    %274 = vmatpush1.msra.mxu0 0.0
    %275 = vmatprep.subr.mxu0 0.0
    %276 = vmatpush1.msra.mxu0 0.0
    %277 = vmatprep.subr.mxu0 0.0
    %278 = vmatpush1.msra.mxu0 0.0
    %279 = vmatprep.subr.mxu0 0.0
    %280 = vmatpush1.msra.mxu0 0.0
    %281 = vmatprep.subr.mxu0 0.0
    %282 = vmatpush1.msra.mxu0 0.0
    %283 = vmatprep.subr.mxu0 0.0
    %284 = vmatpush1.msra.mxu0 0.0
    %285 = vmatprep.subr.mxu0 0.0
    %286 = vmatpush1.msra.mxu0 0.0
    %287 = vmatprep.mubr.f32.mxu0 0.0
    %288 = vmatmul.mubr.f32.gmra.mrb[0].mxu0 %v217
    %v289 = vpop.f32.mrb[0].mxu0
    %v290 = vadd.f32 0.0, %v289
    %v291 = vpop.f32.mrb[0].mxu0
    %292 = vdwg.mxu0
    %v294 = vrot.slane %v290, 1
    %v295 = vrot.slane %v290, 2
    %v296 = vrot.slane %v290, 3
    %v297 = vrot.slane %v290, 4
    %v298 = vrot.slane %v290, 5
    %v299 = vrot.slane %v290, 6
    %v300 = vrot.slane %v290, 7
    %v309 = vadd.f32 %v177, %v290
    %v310 = vadd.f32 %v182, %v294
    %v311 = vadd.f32 %v187, %v295
    %v312 = vadd.f32 %v192, %v296
    %v313 = vadd.f32 %v197, %v297
    %v314 = vadd.f32 %v202, %v298
    %v315 = vadd.f32 %v207, %v299
    %v316 = vadd.f32 %v212, %v300
    %v317 = vxor.u32 %v309, 2147483648
    %v318 = vxor.u32 %v310, 2147483648
    %v319 = vxor.u32 %v311, 2147483648
    %v320 = vxor.u32 %v312, 2147483648
    %v321 = vxor.u32 %v313, 2147483648
    %v322 = vxor.u32 %v314, 2147483648
    %v323 = vxor.u32 %v315, 2147483648
    %v324 = vxor.u32 %v316, 2147483648
    %v325 = vmul.f32 %v317, 1.442695
    %v326 = vpow.pop %v325
    %v327 = vmul.f32 %v318, 1.442695
    %v328 = vpow.pop %v327
    %v329 = vmul.f32 %v319, 1.442695
    %v330 = vpow.pop %v329
    %v331 = vmul.f32 %v320, 1.442695
    %v332 = vpow.pop %v331
    %v333 = vmul.f32 %v321, 1.442695
    %v334 = vpow.pop %v333
    %v335 = vmul.f32 %v322, 1.442695
    %v336 = vpow.pop %v335
    %v337 = vmul.f32 %v323, 1.442695
    %v338 = vpow.pop %v337
    %v339 = vmul.f32 %v324, 1.442695
    %v340 = vpow.pop %v339
    %v341 = vadd.f32 %v326, 1.0
    %v342 = vadd.f32 %v328, 1.0
    %v343 = vadd.f32 %v330, 1.0
    %v344 = vadd.f32 %v332, 1.0
    %v345 = vadd.f32 %v334, 1.0
    %v346 = vadd.f32 %v336, 1.0
    %v347 = vadd.f32 %v338, 1.0
    %v348 = vadd.f32 %v340, 1.0
    %v349 = vrcp.pop %v341
    %v350 = vmul.f32 1.0, %v349
    %v351 = vrcp.pop %v342
    %v352 = vmul.f32 1.0, %v351
    %v353 = vrcp.pop %v343
    %v354 = vmul.f32 1.0, %v353
    %v355 = vrcp.pop %v344
    %v356 = vmul.f32 1.0, %v355
    %v357 = vrcp.pop %v345
    %v358 = vmul.f32 1.0, %v357
    %v359 = vrcp.pop %v346
    %v360 = vmul.f32 1.0, %v359
    %v361 = vrcp.pop %v347
    %v362 = vmul.f32 1.0, %v361
    %v363 = vrcp.pop %v348
    %v364 = vmul.f32 1.0, %v363
    %v366 = vlaneseq
    %v367 = vshrl.u32 %v366, 7
    %v368 = vsub.s32 0, %v367
    %v369 = vrot.slane %v67, %v368
    %370 = vrot.lane.b32.xlu0 %v369, 12
    %v371 = vpop.permute.xlu0 %370
    %v373 = vadd.f32 %v290, %v371
    %v375 = vrot.slane %v373, 1
    %v376 = vrot.slane %v373, 2
    %v377 = vrot.slane %v373, 3
    %v378 = vrot.slane %v373, 4
    %v379 = vrot.slane %v373, 5
    %v380 = vrot.slane %v373, 6
    %v381 = vrot.slane %v373, 7
    %382 = vrot.lane.b32.xlu0 %v373, 116
    %v383 = vpop.permute.xlu0 %382
    %384 = vrot.lane.b32.xlu0 %v375, 116
    %v385 = vpop.permute.xlu0 %384
    %386 = vrot.lane.b32.xlu0 %v376, 116
    %v387 = vpop.permute.xlu0 %386
    %388 = vrot.lane.b32.xlu0 %v377, 116
    %v389 = vpop.permute.xlu0 %388
    %390 = vrot.lane.b32.xlu0 %v378, 116
    %v391 = vpop.permute.xlu0 %390
    %392 = vrot.lane.b32.xlu0 %v379, 116
    %v393 = vpop.permute.xlu0 %392
    %394 = vrot.lane.b32.xlu0 %v380, 116
    %v395 = vpop.permute.xlu0 %394
    %396 = vrot.lane.b32.xlu0 %v381, 116
    %v397 = vpop.permute.xlu0 %396
    %v406 = vmul.f32 %v350, %v383
    %v407 = vmul.f32 %v352, %v385
    %v408 = vmul.f32 %v354, %v387
    %v409 = vmul.f32 %v356, %v389
    %v410 = vmul.f32 %v358, %v391
    %v411 = vmul.f32 %v360, %v393
    %v412 = vmul.f32 %v362, %v395
    %v413 = vmul.f32 %v364, %v397
    %422 = vrot.lane.b32.xlu0 %v406, 12
    %v423 = vpop.permute.xlu0 %422
    %424 = vrot.lane.b32.xlu0 %v407, 12
    %v425 = vpop.permute.xlu0 %424
    %426 = vrot.lane.b32.xlu0 %v408, 12
    %v427 = vpop.permute.xlu0 %426
    %428 = vrot.lane.b32.xlu0 %v409, 12
    %v429 = vpop.permute.xlu0 %428
    %430 = vrot.lane.b32.xlu0 %v410, 12
    %v431 = vpop.permute.xlu0 %430
    %432 = vrot.lane.b32.xlu0 %v411, 12
    %v433 = vpop.permute.xlu0 %432
    %434 = vrot.lane.b32.xlu0 %v412, 12
    %v435 = vpop.permute.xlu0 %434
    %436 = vrot.lane.b32.xlu0 %v413, 12
    %v437 = vpop.permute.xlu0 %436
    %v446 = vadd.f32 %v177, %v423
    %v447 = vadd.f32 %v182, %v425
    %v448 = vadd.f32 %v187, %v427
    %v449 = vadd.f32 %v192, %v429
    %v450 = vadd.f32 %v197, %v431
    %v451 = vadd.f32 %v202, %v433
    %v452 = vadd.f32 %v207, %v435
    %v453 = vadd.f32 %v212, %v437
    %v454 = vtanh.pop %v446
    %v455 = vtanh.pop %v447
    %v456 = vtanh.pop %v448
    %v457 = vtanh.pop %v449
    %v458 = vtanh.pop %v450
    %v459 = vtanh.pop %v451
    %v460 = vtanh.pop %v452
    %v461 = vtanh.pop %v453
    %v462 = vsub.f32 1.0, %v350
    %v463 = vsub.f32 1.0, %v352
    %v464 = vsub.f32 1.0, %v354
    %v465 = vsub.f32 1.0, %v356
    %v466 = vsub.f32 1.0, %v358
    %v467 = vsub.f32 1.0, %v360
    %v468 = vsub.f32 1.0, %v362
    %v469 = vsub.f32 1.0, %v364
    %478 = vrot.lane.b32.xlu0 %v454, 122
    %v479 = vpop.permute.xlu0 %478
    %480 = vrot.lane.b32.xlu0 %v455, 122
    %v481 = vpop.permute.xlu0 %480
    %482 = vrot.lane.b32.xlu0 %v456, 122
    %v483 = vpop.permute.xlu0 %482
    %484 = vrot.lane.b32.xlu0 %v457, 122
    %v485 = vpop.permute.xlu0 %484
    %486 = vrot.lane.b32.xlu0 %v458, 122
    %v487 = vpop.permute.xlu0 %486
    %488 = vrot.lane.b32.xlu0 %v459, 122
    %v489 = vpop.permute.xlu0 %488
    %490 = vrot.lane.b32.xlu0 %v460, 122
    %v491 = vpop.permute.xlu0 %490
    %492 = vrot.lane.b32.xlu0 %v461, 122
    %v493 = vpop.permute.xlu0 %492
    %v502 = vmul.f32 %v462, %v479
    %v503 = vmul.f32 %v463, %v481
    %v504 = vmul.f32 %v464, %v483
    %v505 = vmul.f32 %v465, %v485
    %v506 = vmul.f32 %v466, %v487
    %v507 = vmul.f32 %v467, %v489
    %v508 = vmul.f32 %v468, %v491
    %v509 = vmul.f32 %v469, %v493
    %v510 = vmul.f32 %v350, 0.0
    %v511 = vmul.f32 %v352, 0.0
    %v512 = vmul.f32 %v354, 0.0
    %v513 = vmul.f32 %v356, 0.0
    %v514 = vmul.f32 %v358, 0.0
    %v515 = vmul.f32 %v360, 0.0
    %v516 = vmul.f32 %v362, 0.0
    %v517 = vmul.f32 %v364, 0.0
    %v518 = vadd.f32 %v502, %v510
    %v519 = vadd.f32 %v503, %v511
    %v520 = vadd.f32 %v504, %v512
    %v521 = vadd.f32 %v505, %v513
    %v522 = vadd.f32 %v506, %v514
    %v523 = vadd.f32 %v507, %v515
    %v524 = vadd.f32 %v508, %v516
    %v525 = vadd.f32 %v509, %v517
    %v534 = vrot.slane %v519, 7
    %vm535 = vcmask 1041409
    %v536 = vsel %vm535, %v534, %v518
    %v537 = vrot.slane %v520, 6
    %vm538 = vcmask 1042434
    %v539 = vsel %vm538, %v537, %v536
    %v540 = vrot.slane %v521, 5
    %vm541 = vcmask 1043459
    %v542 = vsel %vm541, %v540, %v539
    %v543 = vrot.slane %v522, 4
    %vm544 = vcmask 1044484
    %v545 = vsel %vm544, %v543, %v542
    %v546 = vrot.slane %v523, 3
    %vm547 = vcmask 1045509
    %v548 = vsel %vm547, %v546, %v545
    %v549 = vrot.slane %v524, 2
    %vm550 = vcmask 1046534
    %v551 = vsel %vm550, %v549, %v548
    %v552 = vrot.slane %v525, 1
    %vm553 = vcmask 1047559
    %v554 = vsel %vm553, %v552, %v551
    %555 = vrot.lane.b32.xlu0 %v554, 122
    %v556 = vpop.permute.xlu0 %555
    %v558 = vsel %vm215, %v556, 0.0
    %v560 = vlaneseq
    %v561 = vshrl.u32 %v560, 7
    %v562 = vsub.s32 0, %v561
    %v563 = vrot.slane %v70, %v562
    %vm565 = vcmask 97280
    %v567 = vsel %vm565, %v558, 0
    %vm569 = vcmask 1043456
    %v571 = vsel %vm569, %v69, 0
    %573 = vmatprep.subr.mxu0 0.0
    %574 = vmatpush1.msra.mxu0 %v68
    %575 = vmatprep.subr.mxu0 0.0
    %576 = vmatpush1.msra.mxu0 %v571
    %577 = vmatprep.subr.mxu0 0.0
    %578 = vmatpush1.msra.mxu0 0.0
    %579 = vmatprep.subr.mxu0 0.0
    %580 = vmatpush1.msra.mxu0 0.0
    %581 = vmatprep.subr.mxu0 0.0
    %582 = vmatpush1.msra.mxu0 0.0
    %583 = vmatprep.subr.mxu0 0.0
    %584 = vmatpush1.msra.mxu0 0.0
    %585 = vmatprep.subr.mxu0 0.0
    %586 = vmatpush1.msra.mxu0 0.0
    %587 = vmatprep.subr.mxu0 0.0
    %588 = vmatpush1.msra.mxu0 0.0
    %589 = vmatprep.subr.mxu0 0.0
    %590 = vmatpush1.msra.mxu0 0.0
    %591 = vmatprep.subr.mxu0 0.0
    %592 = vmatpush1.msra.mxu0 0.0
    %593 = vmatprep.subr.mxu0 0.0
    %594 = vmatpush1.msra.mxu0 0.0
    %595 = vmatprep.subr.mxu0 0.0
    %596 = vmatpush1.msra.mxu0 0.0
    %597 = vmatprep.subr.mxu0 0.0
    %598 = vmatpush1.msra.mxu0 0.0
    %599 = vmatprep.subr.mxu0 0.0
    %600 = vmatpush1.msra.mxu0 0.0
    %601 = vmatprep.subr.mxu0 0.0
    %602 = vmatpush1.msra.mxu0 0.0
    %603 = vmatprep.subr.mxu0 0.0
    %604 = vmatpush1.msra.mxu0 0.0
    %605 = vmatprep.subr.mxu0 0.0
    %606 = vmatpush1.msra.mxu0 0.0
    %607 = vmatprep.subr.mxu0 0.0
    %608 = vmatpush1.msra.mxu0 0.0
    %609 = vmatprep.subr.mxu0 0.0
    %610 = vmatpush1.msra.mxu0 0.0
    %611 = vmatprep.subr.mxu0 0.0
    %612 = vmatpush1.msra.mxu0 0.0
    %613 = vmatprep.subr.mxu0 0.0
    %614 = vmatpush1.msra.mxu0 0.0
    %615 = vmatprep.subr.mxu0 0.0
    %616 = vmatpush1.msra.mxu0 0.0
    %617 = vmatprep.subr.mxu0 0.0
    %618 = vmatpush1.msra.mxu0 0.0
    %619 = vmatprep.subr.mxu0 0.0
    %620 = vmatpush1.msra.mxu0 0.0
    %621 = vmatprep.subr.mxu0 0.0
    %622 = vmatpush1.msra.mxu0 0.0
    %623 = vmatprep.subr.mxu0 0.0
    %624 = vmatpush1.msra.mxu0 0.0
    %625 = vmatprep.subr.mxu0 0.0
    %626 = vmatpush1.msra.mxu0 0.0
    %627 = vmatprep.subr.mxu0 0.0
    %628 = vmatpush1.msra.mxu0 0.0
    %629 = vmatprep.subr.mxu0 0.0
    %630 = vmatpush1.msra.mxu0 0.0
    %631 = vmatprep.subr.mxu0 0.0
    %632 = vmatpush1.msra.mxu0 0.0
    %633 = vmatprep.subr.mxu0 0.0
    %634 = vmatpush1.msra.mxu0 0.0
    %635 = vmatprep.subr.mxu0 0.0
    %636 = vmatpush1.msra.mxu0 0.0
    %637 = vmatprep.mubr.f32.mxu0 0.0
    %638 = vmatmul.mubr.f32.gmra.mrb[0].mxu0 %v567
    %v639 = vpop.f32.mrb[0].mxu0
    %v640 = vadd.f32 %v563, %v639
    %v641 = vpop.f32.mrb[0].mxu0
    %642 = vdwg.mxu0
    %644 = vrot.lane.b32.xlu0 %v640, 110
    %v645 = vpop.permute.xlu0 %644
    %v647 = vadd.f32 %v640, %v645
    %v648 = vxor.u32 %v647, 2147483648
    %v649 = vmul.f32 %v648, 1.442695
    %v650 = vpow.pop %v649
    %v651 = vadd.f32 %v650, 1.0
    %v652 = vrcp.pop %v651
    %v653 = vmul.f32 1.0, %v652
    %654 = vrot.lane.b32.xlu0 %v640, 98
    %v655 = vpop.permute.xlu0 %654
    %v657 = vmul.f32 %v653, %v655
    %659 = vrot.lane.b32.xlu0 %v657, 12
    %v660 = vpop.permute.xlu0 %659
    %v662 = vadd.f32 %v640, %v660
    %v663 = vtanh.pop %v662
    %v664 = vsub.f32 1.0, %v653
    %666 = vrot.lane.b32.xlu0 %v663, 122
    %v667 = vpop.permute.xlu0 %666
    %v669 = vmul.f32 %v664, %v667
    %v670 = vmul.f32 %v653, 0.0
    %v671 = vadd.f32 %v669, %v670
    %vm672 = vcmp.eq.s32.totalorder %v63, 0
    %v673 = vsel %vm672, 1, 0
    %674 = vset.pattern.permute.xlu0 0
    %675 = vperm.xlu0 %674, %v673
    %v676 = vpop.permute.xlu0 %675
    %vm677 = vcmp.eq.s32.totalorder %v676, 1
    %v678 = vsel %vm677, %v671, 0.0
    %v679 = vsel %vm215, %v556, 0
    %681 = vmatprep.subr.mxu0 0.0
    %682 = vmatpush1.msra.mxu0 %v221
    %683 = vmatprep.subr.mxu0 0.0
    %684 = vmatpush1.msra.mxu0 0.0
    %685 = vmatprep.subr.mxu0 0.0
    %686 = vmatpush1.msra.mxu0 0.0
    %687 = vmatprep.subr.mxu0 0.0
    %688 = vmatpush1.msra.mxu0 0.0
    %689 = vmatprep.subr.mxu0 0.0
    %690 = vmatpush1.msra.mxu0 0.0
    %691 = vmatprep.subr.mxu0 0.0
    %692 = vmatpush1.msra.mxu0 0.0
    %693 = vmatprep.subr.mxu0 0.0
    %694 = vmatpush1.msra.mxu0 0.0
    %695 = vmatprep.subr.mxu0 0.0
    %696 = vmatpush1.msra.mxu0 0.0
    %697 = vmatprep.subr.mxu0 0.0
    %698 = vmatpush1.msra.mxu0 0.0
    %699 = vmatprep.subr.mxu0 0.0
    %700 = vmatpush1.msra.mxu0 0.0
    %701 = vmatprep.subr.mxu0 0.0
    %702 = vmatpush1.msra.mxu0 0.0
    %703 = vmatprep.subr.mxu0 0.0
    %704 = vmatpush1.msra.mxu0 0.0
    %705 = vmatprep.subr.mxu0 0.0
    %706 = vmatpush1.msra.mxu0 0.0
    %707 = vmatprep.subr.mxu0 0.0
    %708 = vmatpush1.msra.mxu0 0.0
    %709 = vmatprep.subr.mxu0 0.0
    %710 = vmatpush1.msra.mxu0 0.0
    %711 = vmatprep.subr.mxu0 0.0
    %712 = vmatpush1.msra.mxu0 0.0
    %713 = vmatprep.subr.mxu0 0.0
    %714 = vmatpush1.msra.mxu0 0.0
    %715 = vmatprep.subr.mxu0 0.0
    %716 = vmatpush1.msra.mxu0 0.0
    %717 = vmatprep.subr.mxu0 0.0
    %718 = vmatpush1.msra.mxu0 0.0
    %719 = vmatprep.subr.mxu0 0.0
    %720 = vmatpush1.msra.mxu0 0.0
    %721 = vmatprep.subr.mxu0 0.0
    %722 = vmatpush1.msra.mxu0 0.0
    %723 = vmatprep.subr.mxu0 0.0
    %724 = vmatpush1.msra.mxu0 0.0
    %725 = vmatprep.subr.mxu0 0.0
    %726 = vmatpush1.msra.mxu0 0.0
    %727 = vmatprep.subr.mxu0 0.0
    %728 = vmatpush1.msra.mxu0 0.0
    %729 = vmatprep.subr.mxu0 0.0
    %730 = vmatpush1.msra.mxu0 0.0
    %731 = vmatprep.subr.mxu0 0.0
    %732 = vmatpush1.msra.mxu0 0.0
    %733 = vmatprep.subr.mxu0 0.0
    %734 = vmatpush1.msra.mxu0 0.0
    %735 = vmatprep.subr.mxu0 0.0
    %736 = vmatpush1.msra.mxu0 0.0
    %737 = vmatprep.subr.mxu0 0.0
    %738 = vmatpush1.msra.mxu0 0.0
    %739 = vmatprep.subr.mxu0 0.0
    %740 = vmatpush1.msra.mxu0 0.0
    %741 = vmatprep.subr.mxu0 0.0
    %742 = vmatpush1.msra.mxu0 0.0
    %743 = vmatprep.subr.mxu0 0.0
    %744 = vmatpush1.msra.mxu0 0.0
    %745 = vmatprep.mubr.f32.mxu0 0.0
    %746 = vmatmul.mubr.f32.gmra.mrb[0].mxu0 %v679
    %v747 = vpop.f32.mrb[0].mxu0
    %v748 = vadd.f32 0.0, %v747
    %v749 = vpop.f32.mrb[0].mxu0
    %750 = vdwg.mxu0
    %v752 = vrot.slane %v748, 7
    %v753 = vrot.slane %v748, 1
    %v754 = vrot.slane %v748, 2
    %v755 = vrot.slane %v748, 3
    %v756 = vrot.slane %v748, 4
    %v757 = vrot.slane %v748, 5
    %v758 = vrot.slane %v748, 6
    %v767 = vadd.f32 %v177, %v752
    %v768 = vadd.f32 %v182, %v748
    %v769 = vadd.f32 %v187, %v753
    %v770 = vadd.f32 %v192, %v754
    %v771 = vadd.f32 %v197, %v755
    %v772 = vadd.f32 %v202, %v756
    %v773 = vadd.f32 %v207, %v757
    %v774 = vadd.f32 %v212, %v758
    %v775 = vxor.u32 %v767, 2147483648
    %v776 = vxor.u32 %v768, 2147483648
    %v777 = vxor.u32 %v769, 2147483648
    %v778 = vxor.u32 %v770, 2147483648
    %v779 = vxor.u32 %v771, 2147483648
    %v780 = vxor.u32 %v772, 2147483648
    %v781 = vxor.u32 %v773, 2147483648
    %v782 = vxor.u32 %v774, 2147483648
    %v783 = vmul.f32 %v775, 1.442695
    %v784 = vpow.pop %v783
    %v785 = vmul.f32 %v776, 1.442695
    %v786 = vpow.pop %v785
    %v787 = vmul.f32 %v777, 1.442695
    %v788 = vpow.pop %v787
    %v789 = vmul.f32 %v778, 1.442695
    %v790 = vpow.pop %v789
    %v791 = vmul.f32 %v779, 1.442695
    %v792 = vpow.pop %v791
    %v793 = vmul.f32 %v780, 1.442695
    %v794 = vpow.pop %v793
    %v795 = vmul.f32 %v781, 1.442695
    %v796 = vpow.pop %v795
    %v797 = vmul.f32 %v782, 1.442695
    %v798 = vpow.pop %v797
    %v799 = vadd.f32 %v784, 1.0
    %v800 = vadd.f32 %v786, 1.0
    %v801 = vadd.f32 %v788, 1.0
    %v802 = vadd.f32 %v790, 1.0
    %v803 = vadd.f32 %v792, 1.0
    %v804 = vadd.f32 %v794, 1.0
    %v805 = vadd.f32 %v796, 1.0
    %v806 = vadd.f32 %v798, 1.0
    %v807 = vrcp.pop %v799
    %v808 = vmul.f32 1.0, %v807
    %v809 = vrcp.pop %v800
    %v810 = vmul.f32 1.0, %v809
    %v811 = vrcp.pop %v801
    %v812 = vmul.f32 1.0, %v811
    %v813 = vrcp.pop %v802
    %v814 = vmul.f32 1.0, %v813
    %v815 = vrcp.pop %v803
    %v816 = vmul.f32 1.0, %v815
    %v817 = vrcp.pop %v804
    %v818 = vmul.f32 1.0, %v817
    %v819 = vrcp.pop %v805
    %v820 = vmul.f32 1.0, %v819
    %v821 = vrcp.pop %v806
    %v822 = vmul.f32 1.0, %v821
    %v823 = vadd.f32 %v748, %v371
    %v825 = vrot.slane %v823, 7
    %v826 = vrot.slane %v823, 1
    %v827 = vrot.slane %v823, 2
    %v828 = vrot.slane %v823, 3
    %v829 = vrot.slane %v823, 4
    %v830 = vrot.slane %v823, 5
    %v831 = vrot.slane %v823, 6
    %832 = vrot.lane.b32.xlu0 %v825, 116
    %v833 = vpop.permute.xlu0 %832
    %834 = vrot.lane.b32.xlu0 %v823, 116
    %v835 = vpop.permute.xlu0 %834
    %836 = vrot.lane.b32.xlu0 %v826, 116
    %v837 = vpop.permute.xlu0 %836
    %838 = vrot.lane.b32.xlu0 %v827, 116
    %v839 = vpop.permute.xlu0 %838
    %840 = vrot.lane.b32.xlu0 %v828, 116
    %v841 = vpop.permute.xlu0 %840
    %842 = vrot.lane.b32.xlu0 %v829, 116
    %v843 = vpop.permute.xlu0 %842
    %844 = vrot.lane.b32.xlu0 %v830, 116
    %v845 = vpop.permute.xlu0 %844
    %846 = vrot.lane.b32.xlu0 %v831, 116
    %v847 = vpop.permute.xlu0 %846
    %v856 = vmul.f32 %v808, %v833
    %v857 = vmul.f32 %v810, %v835
    %v858 = vmul.f32 %v812, %v837
    %v859 = vmul.f32 %v814, %v839
    %v860 = vmul.f32 %v816, %v841
    %v861 = vmul.f32 %v818, %v843
    %v862 = vmul.f32 %v820, %v845
    %v863 = vmul.f32 %v822, %v847
    %872 = vrot.lane.b32.xlu0 %v856, 12
    %v873 = vpop.permute.xlu0 %872
    %874 = vrot.lane.b32.xlu0 %v857, 12
    %v875 = vpop.permute.xlu0 %874
    %876 = vrot.lane.b32.xlu0 %v858, 12
    %v877 = vpop.permute.xlu0 %876
    %878 = vrot.lane.b32.xlu0 %v859, 12
    %v879 = vpop.permute.xlu0 %878
    %880 = vrot.lane.b32.xlu0 %v860, 12
    %v881 = vpop.permute.xlu0 %880
    %882 = vrot.lane.b32.xlu0 %v861, 12
    %v883 = vpop.permute.xlu0 %882
    %884 = vrot.lane.b32.xlu0 %v862, 12
    %v885 = vpop.permute.xlu0 %884
    %886 = vrot.lane.b32.xlu0 %v863, 12
    %v887 = vpop.permute.xlu0 %886
    %v896 = vadd.f32 %v177, %v873
    %v897 = vadd.f32 %v182, %v875
    %v898 = vadd.f32 %v187, %v877
    %v899 = vadd.f32 %v192, %v879
    %v900 = vadd.f32 %v197, %v881
    %v901 = vadd.f32 %v202, %v883
    %v902 = vadd.f32 %v207, %v885
    %v903 = vadd.f32 %v212, %v887
    %v904 = vtanh.pop %v896
    %v905 = vtanh.pop %v897
    %v906 = vtanh.pop %v898
    %v907 = vtanh.pop %v899
    %v908 = vtanh.pop %v900
    %v909 = vtanh.pop %v901
    %v910 = vtanh.pop %v902
    %v911 = vtanh.pop %v903
    %v912 = vsub.f32 1.0, %v808
    %v913 = vsub.f32 1.0, %v810
    %v914 = vsub.f32 1.0, %v812
    %v915 = vsub.f32 1.0, %v814
    %v916 = vsub.f32 1.0, %v816
    %v917 = vsub.f32 1.0, %v818
    %v918 = vsub.f32 1.0, %v820
    %v919 = vsub.f32 1.0, %v822
    %928 = vrot.lane.b32.xlu0 %v904, 122
    %v929 = vpop.permute.xlu0 %928
    %930 = vrot.lane.b32.xlu0 %v905, 122
    %v931 = vpop.permute.xlu0 %930
    %932 = vrot.lane.b32.xlu0 %v906, 122
    %v933 = vpop.permute.xlu0 %932
    %934 = vrot.lane.b32.xlu0 %v907, 122
    %v935 = vpop.permute.xlu0 %934
    %936 = vrot.lane.b32.xlu0 %v908, 122
    %v937 = vpop.permute.xlu0 %936
    %938 = vrot.lane.b32.xlu0 %v909, 122
    %v939 = vpop.permute.xlu0 %938
    %940 = vrot.lane.b32.xlu0 %v910, 122
    %v941 = vpop.permute.xlu0 %940
    %942 = vrot.lane.b32.xlu0 %v911, 122
    %v943 = vpop.permute.xlu0 %942
    %v952 = vmul.f32 %v912, %v929
    %v953 = vmul.f32 %v913, %v931
    %v954 = vmul.f32 %v914, %v933
    %v955 = vmul.f32 %v915, %v935
    %v956 = vmul.f32 %v916, %v937
    %v957 = vmul.f32 %v917, %v939
    %v958 = vmul.f32 %v918, %v941
    %v959 = vmul.f32 %v919, %v943
    %v960 = vrot.slane %v518, 7
    %v961 = vrot.slane %v520, 7
    %v962 = vrot.slane %v521, 7
    %v963 = vrot.slane %v522, 7
    %v964 = vrot.slane %v523, 7
    %v965 = vrot.slane %v524, 7
    %v966 = vrot.slane %v525, 7
    %v975 = vmul.f32 %v808, %v960
    %v976 = vmul.f32 %v810, %v534
    %v977 = vmul.f32 %v812, %v961
    %v978 = vmul.f32 %v814, %v962
    %v979 = vmul.f32 %v816, %v963
    %v980 = vmul.f32 %v818, %v964
    %v981 = vmul.f32 %v820, %v965
    %v982 = vmul.f32 %v822, %v966
    %v983 = vadd.f32 %v952, %v975
    %v984 = vadd.f32 %v953, %v976
    %v985 = vadd.f32 %v954, %v977
    %v986 = vadd.f32 %v955, %v978
    %v987 = vadd.f32 %v956, %v979
    %v988 = vadd.f32 %v957, %v980
    %v989 = vadd.f32 %v958, %v981
    %v990 = vadd.f32 %v959, %v982
    %v999 = vrot.slane %v984, 7
    %v1000 = vsel %vm538, %v999, %v983
    %v1001 = vrot.slane %v985, 6
    %v1002 = vsel %vm541, %v1001, %v1000
    %v1003 = vrot.slane %v986, 5
    %v1004 = vsel %vm544, %v1003, %v1002
    %v1005 = vrot.slane %v987, 4
    %v1006 = vsel %vm547, %v1005, %v1004
    %v1007 = vrot.slane %v988, 3
    %v1008 = vsel %vm550, %v1007, %v1006
    %v1009 = vrot.slane %v989, 2
    %v1010 = vsel %vm553, %v1009, %v1008
    %v1011 = vrot.slane %v990, 1
    %1012 = vrot.lane.b32.xlu0 %v1010, 122
    %v1013 = vpop.permute.xlu0 %1012
    %1014 = vrot.lane.b32.xlu0 %v1011, 122
    %v1015 = vpop.permute.xlu0 %1014
    %v1019 = vrot.slane %v671, 7
    %v1021 = vsel %vm215, %v1013, %v1019
    %v1022 = vsel %vm215, %v1015, %v1019
    %vm1025 = vcmask 1046528
    %v1026 = vrot.slane %v1021, 1
    %v1027 = vrot.slane %v1022, 1
    %v1028 = vsel %vm1025, %v1026, %v1027
    %v1029 = vsel %vm565, %v1028, 0
    %1031 = vmatprep.subr.mxu0 0.0
    %1032 = vmatpush1.msra.mxu0 %v68
    %1033 = vmatprep.subr.mxu0 0.0
    %1034 = vmatpush1.msra.mxu0 %v571
    %1035 = vmatprep.subr.mxu0 0.0
    %1036 = vmatpush1.msra.mxu0 0.0
    %1037 = vmatprep.subr.mxu0 0.0
    %1038 = vmatpush1.msra.mxu0 0.0
    %1039 = vmatprep.subr.mxu0 0.0
    %1040 = vmatpush1.msra.mxu0 0.0
    %1041 = vmatprep.subr.mxu0 0.0
    %1042 = vmatpush1.msra.mxu0 0.0
    %1043 = vmatprep.subr.mxu0 0.0
    %1044 = vmatpush1.msra.mxu0 0.0
    %1045 = vmatprep.subr.mxu0 0.0
    %1046 = vmatpush1.msra.mxu0 0.0
    %1047 = vmatprep.subr.mxu0 0.0
    %1048 = vmatpush1.msra.mxu0 0.0
    %1049 = vmatprep.subr.mxu0 0.0
    %1050 = vmatpush1.msra.mxu0 0.0
    %1051 = vmatprep.subr.mxu0 0.0
    %1052 = vmatpush1.msra.mxu0 0.0
    %1053 = vmatprep.subr.mxu0 0.0
    %1054 = vmatpush1.msra.mxu0 0.0
    %1055 = vmatprep.subr.mxu0 0.0
    %1056 = vmatpush1.msra.mxu0 0.0
    %1057 = vmatprep.subr.mxu0 0.0
    %1058 = vmatpush1.msra.mxu0 0.0
    %1059 = vmatprep.subr.mxu0 0.0
    %1060 = vmatpush1.msra.mxu0 0.0
    %1061 = vmatprep.subr.mxu0 0.0
    %1062 = vmatpush1.msra.mxu0 0.0
    %1063 = vmatprep.subr.mxu0 0.0
    %1064 = vmatpush1.msra.mxu0 0.0
    %1065 = vmatprep.subr.mxu0 0.0
    %1066 = vmatpush1.msra.mxu0 0.0
    %1067 = vmatprep.subr.mxu0 0.0
    %1068 = vmatpush1.msra.mxu0 0.0
    %1069 = vmatprep.subr.mxu0 0.0
    %1070 = vmatpush1.msra.mxu0 0.0
    %1071 = vmatprep.subr.mxu0 0.0
    %1072 = vmatpush1.msra.mxu0 0.0
    %1073 = vmatprep.subr.mxu0 0.0
    %1074 = vmatpush1.msra.mxu0 0.0
    %1075 = vmatprep.subr.mxu0 0.0
    %1076 = vmatpush1.msra.mxu0 0.0
    %1077 = vmatprep.subr.mxu0 0.0
    %1078 = vmatpush1.msra.mxu0 0.0
    %1079 = vmatprep.subr.mxu0 0.0
    %1080 = vmatpush1.msra.mxu0 0.0
    %1081 = vmatprep.subr.mxu0 0.0
    %1082 = vmatpush1.msra.mxu0 0.0
    %1083 = vmatprep.subr.mxu0 0.0
    %1084 = vmatpush1.msra.mxu0 0.0
    %1085 = vmatprep.subr.mxu0 0.0
    %1086 = vmatpush1.msra.mxu0 0.0
    %1087 = vmatprep.subr.mxu0 0.0
    %1088 = vmatpush1.msra.mxu0 0.0
    %1089 = vmatprep.subr.mxu0 0.0
    %1090 = vmatpush1.msra.mxu0 0.0
    %1091 = vmatprep.subr.mxu0 0.0
    %1092 = vmatpush1.msra.mxu0 0.0
    %1093 = vmatprep.subr.mxu0 0.0
    %1094 = vmatpush1.msra.mxu0 0.0
    %1095 = vmatprep.mubr.f32.mxu0 0.0
    %1096 = vmatmul.mubr.f32.gmra.mrb[0].mxu0 %v1029
    %v1097 = vpop.f32.mrb[0].mxu0
    %v1098 = vadd.f32 %v563, %v1097
    %v1099 = vpop.f32.mrb[0].mxu0
    %1100 = vdwg.mxu0
    %1102 = vrot.lane.b32.xlu0 %v1098, 110
    %v1103 = vpop.permute.xlu0 %1102
    %v1105 = vadd.f32 %v1098, %v1103
    %v1106 = vxor.u32 %v1105, 2147483648
    %v1107 = vmul.f32 %v1106, 1.442695
    %v1108 = vpow.pop %v1107
    %v1109 = vadd.f32 %v1108, 1.0
    %v1110 = vrcp.pop %v1109
    %v1111 = vmul.f32 1.0, %v1110
    %1112 = vrot.lane.b32.xlu0 %v1098, 98
    %v1113 = vpop.permute.xlu0 %1112
    %v1115 = vmul.f32 %v1111, %v1113
    %1117 = vrot.lane.b32.xlu0 %v1115, 12
    %v1118 = vpop.permute.xlu0 %1117
    %v1120 = vadd.f32 %v1098, %v1118
    %v1121 = vtanh.pop %v1120
    %v1122 = vsub.f32 1.0, %v1111
    %1124 = vrot.lane.b32.xlu0 %v1121, 122
    %v1125 = vpop.permute.xlu0 %1124
    %v1127 = vmul.f32 %v1122, %v1125
    %v1128 = vmul.f32 %v1111, %v671
    %v1129 = vadd.f32 %v1127, %v1128
    %vm1130 = vcmp.eq.s32.totalorder %v63, 1
    %v1131 = vsel %vm1130, 1, 0
    %1132 = vset.pattern.permute.xlu0 0
    %1133 = vperm.xlu0 %1132, %v1131
    %v1134 = vpop.permute.xlu0 %1133
    %vm1135 = vcmp.eq.s32.totalorder %v1134, 1
    %v1136 = vsel %vm1135, %v1129, %v678
    %v1137 = vrot.slane %v983, 1
    %v1138 = vsel %vm535, %v984, %v1137
    %v1139 = vrot.slane %v985, 7
    %v1140 = vsel %vm538, %v1139, %v1138
    %v1141 = vrot.slane %v986, 6
    %v1142 = vsel %vm541, %v1141, %v1140
    %v1143 = vrot.slane %v987, 5
    %v1144 = vsel %vm544, %v1143, %v1142
    %v1145 = vrot.slane %v988, 4
    %v1146 = vsel %vm547, %v1145, %v1144
    %v1147 = vrot.slane %v989, 3
    %v1148 = vsel %vm550, %v1147, %v1146
    %v1149 = vrot.slane %v990, 2
    %v1150 = vsel %vm553, %v1149, %v1148
    %1151 = vrot.lane.b32.xlu0 %v1150, 122
    %v1152 = vpop.permute.xlu0 %1151
    %v1153 = vsel %vm215, %v1152, 0
    %1155 = vmatprep.subr.mxu0 0.0
    %1156 = vmatpush1.msra.mxu0 %v221
    %1157 = vmatprep.subr.mxu0 0.0
    %1158 = vmatpush1.msra.mxu0 0.0
    %1159 = vmatprep.subr.mxu0 0.0
    %1160 = vmatpush1.msra.mxu0 0.0
    %1161 = vmatprep.subr.mxu0 0.0
    %1162 = vmatpush1.msra.mxu0 0.0
    %1163 = vmatprep.subr.mxu0 0.0
    %1164 = vmatpush1.msra.mxu0 0.0
    %1165 = vmatprep.subr.mxu0 0.0
    %1166 = vmatpush1.msra.mxu0 0.0
    %1167 = vmatprep.subr.mxu0 0.0
    %1168 = vmatpush1.msra.mxu0 0.0
    %1169 = vmatprep.subr.mxu0 0.0
    %1170 = vmatpush1.msra.mxu0 0.0
    %1171 = vmatprep.subr.mxu0 0.0
    %1172 = vmatpush1.msra.mxu0 0.0
    %1173 = vmatprep.subr.mxu0 0.0
    %1174 = vmatpush1.msra.mxu0 0.0
    %1175 = vmatprep.subr.mxu0 0.0
    %1176 = vmatpush1.msra.mxu0 0.0
    %1177 = vmatprep.subr.mxu0 0.0
    %1178 = vmatpush1.msra.mxu0 0.0
    %1179 = vmatprep.subr.mxu0 0.0
    %1180 = vmatpush1.msra.mxu0 0.0
    %1181 = vmatprep.subr.mxu0 0.0
    %1182 = vmatpush1.msra.mxu0 0.0
    %1183 = vmatprep.subr.mxu0 0.0
    %1184 = vmatpush1.msra.mxu0 0.0
    %1185 = vmatprep.subr.mxu0 0.0
    %1186 = vmatpush1.msra.mxu0 0.0
    %1187 = vmatprep.subr.mxu0 0.0
    %1188 = vmatpush1.msra.mxu0 0.0
    %1189 = vmatprep.subr.mxu0 0.0
    %1190 = vmatpush1.msra.mxu0 0.0
    %1191 = vmatprep.subr.mxu0 0.0
    %1192 = vmatpush1.msra.mxu0 0.0
    %1193 = vmatprep.subr.mxu0 0.0
    %1194 = vmatpush1.msra.mxu0 0.0
    %1195 = vmatprep.subr.mxu0 0.0
    %1196 = vmatpush1.msra.mxu0 0.0
    %1197 = vmatprep.subr.mxu0 0.0
    %1198 = vmatpush1.msra.mxu0 0.0
    %1199 = vmatprep.subr.mxu0 0.0
    %1200 = vmatpush1.msra.mxu0 0.0
    %1201 = vmatprep.subr.mxu0 0.0
    %1202 = vmatpush1.msra.mxu0 0.0
    %1203 = vmatprep.subr.mxu0 0.0
    %1204 = vmatpush1.msra.mxu0 0.0
    %1205 = vmatprep.subr.mxu0 0.0
    %1206 = vmatpush1.msra.mxu0 0.0
    %1207 = vmatprep.subr.mxu0 0.0
    %1208 = vmatpush1.msra.mxu0 0.0
    %1209 = vmatprep.subr.mxu0 0.0
    %1210 = vmatpush1.msra.mxu0 0.0
    %1211 = vmatprep.subr.mxu0 0.0
    %1212 = vmatpush1.msra.mxu0 0.0
    %1213 = vmatprep.subr.mxu0 0.0
    %1214 = vmatpush1.msra.mxu0 0.0
    %1215 = vmatprep.subr.mxu0 0.0
    %1216 = vmatpush1.msra.mxu0 0.0
    %1217 = vmatprep.subr.mxu0 0.0
    %1218 = vmatpush1.msra.mxu0 0.0
    %1219 = vmatprep.mubr.f32.mxu0 0.0
    %1220 = vmatmul.mubr.f32.gmra.mrb[0].mxu0 %v1153
    %v1221 = vpop.f32.mrb[0].mxu0
    %v1222 = vadd.f32 0.0, %v1221
    %v1223 = vpop.f32.mrb[0].mxu0
    %1224 = vdwg.mxu0
    %v1226 = vrot.slane %v1222, 6
    %v1227 = vrot.slane %v1222, 7
    %v1228 = vrot.slane %v1222, 1
    %v1229 = vrot.slane %v1222, 2
    %v1230 = vrot.slane %v1222, 3
    %v1231 = vrot.slane %v1222, 4
    %v1232 = vrot.slane %v1222, 5
    %v1241 = vadd.f32 %v177, %v1226
    %v1242 = vadd.f32 %v182, %v1227
    %v1243 = vadd.f32 %v187, %v1222
    %v1244 = vadd.f32 %v192, %v1228
    %v1245 = vadd.f32 %v197, %v1229
    %v1246 = vadd.f32 %v202, %v1230
    %v1247 = vadd.f32 %v207, %v1231
    %v1248 = vadd.f32 %v212, %v1232
    %v1249 = vxor.u32 %v1241, 2147483648
    %v1250 = vxor.u32 %v1242, 2147483648
    %v1251 = vxor.u32 %v1243, 2147483648
    %v1252 = vxor.u32 %v1244, 2147483648
    %v1253 = vxor.u32 %v1245, 2147483648
    %v1254 = vxor.u32 %v1246, 2147483648
    %v1255 = vxor.u32 %v1247, 2147483648
    %v1256 = vxor.u32 %v1248, 2147483648
    %v1257 = vmul.f32 %v1249, 1.442695
    %v1258 = vpow.pop %v1257
    %v1259 = vmul.f32 %v1250, 1.442695
    %v1260 = vpow.pop %v1259
    %v1261 = vmul.f32 %v1251, 1.442695
    %v1262 = vpow.pop %v1261
    %v1263 = vmul.f32 %v1252, 1.442695
    %v1264 = vpow.pop %v1263
    %v1265 = vmul.f32 %v1253, 1.442695
    %v1266 = vpow.pop %v1265
    %v1267 = vmul.f32 %v1254, 1.442695
    %v1268 = vpow.pop %v1267
    %v1269 = vmul.f32 %v1255, 1.442695
    %v1270 = vpow.pop %v1269
    %v1271 = vmul.f32 %v1256, 1.442695
    %v1272 = vpow.pop %v1271
    %v1273 = vadd.f32 %v1258, 1.0
    %v1274 = vadd.f32 %v1260, 1.0
    %v1275 = vadd.f32 %v1262, 1.0
    %v1276 = vadd.f32 %v1264, 1.0
    %v1277 = vadd.f32 %v1266, 1.0
    %v1278 = vadd.f32 %v1268, 1.0
    %v1279 = vadd.f32 %v1270, 1.0
    %v1280 = vadd.f32 %v1272, 1.0
    %v1281 = vrcp.pop %v1273
    %v1282 = vmul.f32 1.0, %v1281
    %v1283 = vrcp.pop %v1274
    %v1284 = vmul.f32 1.0, %v1283
    %v1285 = vrcp.pop %v1275
    %v1286 = vmul.f32 1.0, %v1285
    %v1287 = vrcp.pop %v1276
    %v1288 = vmul.f32 1.0, %v1287
    %v1289 = vrcp.pop %v1277
    %v1290 = vmul.f32 1.0, %v1289
    %v1291 = vrcp.pop %v1278
    %v1292 = vmul.f32 1.0, %v1291
    %v1293 = vrcp.pop %v1279
    %v1294 = vmul.f32 1.0, %v1293
    %v1295 = vrcp.pop %v1280
    %v1296 = vmul.f32 1.0, %v1295
    %v1297 = vadd.f32 %v1222, %v371
    %v1299 = vrot.slane %v1297, 6
    %v1300 = vrot.slane %v1297, 7
    %v1301 = vrot.slane %v1297, 1
    %v1302 = vrot.slane %v1297, 2
    %v1303 = vrot.slane %v1297, 3
    %v1304 = vrot.slane %v1297, 4
    %v1305 = vrot.slane %v1297, 5
    %1306 = vrot.lane.b32.xlu0 %v1299, 116
    %v1307 = vpop.permute.xlu0 %1306
    %1308 = vrot.lane.b32.xlu0 %v1300, 116
    %v1309 = vpop.permute.xlu0 %1308
    %1310 = vrot.lane.b32.xlu0 %v1297, 116
    %v1311 = vpop.permute.xlu0 %1310
    %1312 = vrot.lane.b32.xlu0 %v1301, 116
    %v1313 = vpop.permute.xlu0 %1312
    %1314 = vrot.lane.b32.xlu0 %v1302, 116
    %v1315 = vpop.permute.xlu0 %1314
    %1316 = vrot.lane.b32.xlu0 %v1303, 116
    %v1317 = vpop.permute.xlu0 %1316
    %1318 = vrot.lane.b32.xlu0 %v1304, 116
    %v1319 = vpop.permute.xlu0 %1318
    %1320 = vrot.lane.b32.xlu0 %v1305, 116
    %v1321 = vpop.permute.xlu0 %1320
    %v1330 = vmul.f32 %v1282, %v1307
    %v1331 = vmul.f32 %v1284, %v1309
    %v1332 = vmul.f32 %v1286, %v1311
    %v1333 = vmul.f32 %v1288, %v1313
    %v1334 = vmul.f32 %v1290, %v1315
    %v1335 = vmul.f32 %v1292, %v1317
    %v1336 = vmul.f32 %v1294, %v1319
    %v1337 = vmul.f32 %v1296, %v1321
    %1346 = vrot.lane.b32.xlu0 %v1330, 12
    %v1347 = vpop.permute.xlu0 %1346
    %1348 = vrot.lane.b32.xlu0 %v1331, 12
    %v1349 = vpop.permute.xlu0 %1348
    %1350 = vrot.lane.b32.xlu0 %v1332, 12
    %v1351 = vpop.permute.xlu0 %1350
    %1352 = vrot.lane.b32.xlu0 %v1333, 12
    %v1353 = vpop.permute.xlu0 %1352
    %1354 = vrot.lane.b32.xlu0 %v1334, 12
    %v1355 = vpop.permute.xlu0 %1354
    %1356 = vrot.lane.b32.xlu0 %v1335, 12
    %v1357 = vpop.permute.xlu0 %1356
    %1358 = vrot.lane.b32.xlu0 %v1336, 12
    %v1359 = vpop.permute.xlu0 %1358
    %1360 = vrot.lane.b32.xlu0 %v1337, 12
    %v1361 = vpop.permute.xlu0 %1360
    %v1370 = vadd.f32 %v177, %v1347
    %v1371 = vadd.f32 %v182, %v1349
    %v1372 = vadd.f32 %v187, %v1351
    %v1373 = vadd.f32 %v192, %v1353
    %v1374 = vadd.f32 %v197, %v1355
    %v1375 = vadd.f32 %v202, %v1357
    %v1376 = vadd.f32 %v207, %v1359
    %v1377 = vadd.f32 %v212, %v1361
    %v1378 = vtanh.pop %v1370
    %v1379 = vtanh.pop %v1371
    %v1380 = vtanh.pop %v1372
    %v1381 = vtanh.pop %v1373
    %v1382 = vtanh.pop %v1374
    %v1383 = vtanh.pop %v1375
    %v1384 = vtanh.pop %v1376
    %v1385 = vtanh.pop %v1377
    %v1386 = vsub.f32 1.0, %v1282
    %v1387 = vsub.f32 1.0, %v1284
    %v1388 = vsub.f32 1.0, %v1286
    %v1389 = vsub.f32 1.0, %v1288
    %v1390 = vsub.f32 1.0, %v1290
    %v1391 = vsub.f32 1.0, %v1292
    %v1392 = vsub.f32 1.0, %v1294
    %v1393 = vsub.f32 1.0, %v1296
    %1402 = vrot.lane.b32.xlu0 %v1378, 122
    %v1403 = vpop.permute.xlu0 %1402
    %1404 = vrot.lane.b32.xlu0 %v1379, 122
    %v1405 = vpop.permute.xlu0 %1404
    %1406 = vrot.lane.b32.xlu0 %v1380, 122
    %v1407 = vpop.permute.xlu0 %1406
    %1408 = vrot.lane.b32.xlu0 %v1381, 122
    %v1409 = vpop.permute.xlu0 %1408
    %1410 = vrot.lane.b32.xlu0 %v1382, 122
    %v1411 = vpop.permute.xlu0 %1410
    %1412 = vrot.lane.b32.xlu0 %v1383, 122
    %v1413 = vpop.permute.xlu0 %1412
    %1414 = vrot.lane.b32.xlu0 %v1384, 122
    %v1415 = vpop.permute.xlu0 %1414
    %1416 = vrot.lane.b32.xlu0 %v1385, 122
    %v1417 = vpop.permute.xlu0 %1416
    %v1426 = vmul.f32 %v1386, %v1403
    %v1427 = vmul.f32 %v1387, %v1405
    %v1428 = vmul.f32 %v1388, %v1407
    %v1429 = vmul.f32 %v1389, %v1409
    %v1430 = vmul.f32 %v1390, %v1411
    %v1431 = vmul.f32 %v1391, %v1413
    %v1432 = vmul.f32 %v1392, %v1415
    %v1433 = vmul.f32 %v1393, %v1417
    %v1434 = vrot.slane %v983, 7
    %v1435 = vrot.slane %v986, 7
    %v1436 = vrot.slane %v987, 7
    %v1437 = vrot.slane %v988, 7
    %v1438 = vrot.slane %v989, 7
    %v1439 = vrot.slane %v990, 7
    %v1448 = vmul.f32 %v1282, %v1434
    %v1449 = vmul.f32 %v1284, %v999
    %v1450 = vmul.f32 %v1286, %v1139
    %v1451 = vmul.f32 %v1288, %v1435
    %v1452 = vmul.f32 %v1290, %v1436
    %v1453 = vmul.f32 %v1292, %v1437
    %v1454 = vmul.f32 %v1294, %v1438
    %v1455 = vmul.f32 %v1296, %v1439
    %v1456 = vadd.f32 %v1426, %v1448
    %v1457 = vadd.f32 %v1427, %v1449
    %v1458 = vadd.f32 %v1428, %v1450
    %v1459 = vadd.f32 %v1429, %v1451
    %v1460 = vadd.f32 %v1430, %v1452
    %v1461 = vadd.f32 %v1431, %v1453
    %v1462 = vadd.f32 %v1432, %v1454
    %v1463 = vadd.f32 %v1433, %v1455
    %v1472 = vrot.slane %v1457, 7
    %v1473 = vsel %vm541, %v1472, %v1456
    %v1474 = vrot.slane %v1458, 6
    %v1475 = vsel %vm544, %v1474, %v1473
    %v1476 = vrot.slane %v1459, 5
    %v1477 = vsel %vm547, %v1476, %v1475
    %v1478 = vrot.slane %v1460, 4
    %v1479 = vsel %vm550, %v1478, %v1477
    %v1480 = vrot.slane %v1461, 3
    %v1481 = vsel %vm553, %v1480, %v1479
    %v1482 = vrot.slane %v1462, 2
    %v1483 = vrot.slane %v1463, 1
    %v1484 = vsel %vm535, %v1483, %v1482
    %1485 = vrot.lane.b32.xlu0 %v1481, 122
    %v1486 = vpop.permute.xlu0 %1485
    %1487 = vrot.lane.b32.xlu0 %v1484, 122
    %v1488 = vpop.permute.xlu0 %1487
    %v1492 = vrot.slane %v1129, 6
    %v1494 = vsel %vm215, %v1486, %v1492
    %v1495 = vsel %vm215, %v1488, %v1492
    %v1498 = vrot.slane %v1494, 2
    %v1499 = vrot.slane %v1495, 2
    %v1500 = vsel %vm219, %v1498, %v1499
    %v1501 = vsel %vm565, %v1500, 0
    %1503 = vmatprep.subr.mxu0 0.0
    %1504 = vmatpush1.msra.mxu0 %v68
    %1505 = vmatprep.subr.mxu0 0.0
    %1506 = vmatpush1.msra.mxu0 %v571
    %1507 = vmatprep.subr.mxu0 0.0
    %1508 = vmatpush1.msra.mxu0 0.0
    %1509 = vmatprep.subr.mxu0 0.0
    %1510 = vmatpush1.msra.mxu0 0.0
    %1511 = vmatprep.subr.mxu0 0.0
    %1512 = vmatpush1.msra.mxu0 0.0
    %1513 = vmatprep.subr.mxu0 0.0
    %1514 = vmatpush1.msra.mxu0 0.0
    %1515 = vmatprep.subr.mxu0 0.0
    %1516 = vmatpush1.msra.mxu0 0.0
    %1517 = vmatprep.subr.mxu0 0.0
    %1518 = vmatpush1.msra.mxu0 0.0
    %1519 = vmatprep.subr.mxu0 0.0
    %1520 = vmatpush1.msra.mxu0 0.0
    %1521 = vmatprep.subr.mxu0 0.0
    %1522 = vmatpush1.msra.mxu0 0.0
    %1523 = vmatprep.subr.mxu0 0.0
    %1524 = vmatpush1.msra.mxu0 0.0
    %1525 = vmatprep.subr.mxu0 0.0
    %1526 = vmatpush1.msra.mxu0 0.0
    %1527 = vmatprep.subr.mxu0 0.0
    %1528 = vmatpush1.msra.mxu0 0.0
    %1529 = vmatprep.subr.mxu0 0.0
    %1530 = vmatpush1.msra.mxu0 0.0
    %1531 = vmatprep.subr.mxu0 0.0
    %1532 = vmatpush1.msra.mxu0 0.0
    %1533 = vmatprep.subr.mxu0 0.0
    %1534 = vmatpush1.msra.mxu0 0.0
    %1535 = vmatprep.subr.mxu0 0.0
    %1536 = vmatpush1.msra.mxu0 0.0
    %1537 = vmatprep.subr.mxu0 0.0
    %1538 = vmatpush1.msra.mxu0 0.0
    %1539 = vmatprep.subr.mxu0 0.0
    %1540 = vmatpush1.msra.mxu0 0.0
    %1541 = vmatprep.subr.mxu0 0.0
    %1542 = vmatpush1.msra.mxu0 0.0
    %1543 = vmatprep.subr.mxu0 0.0
    %1544 = vmatpush1.msra.mxu0 0.0
    %1545 = vmatprep.subr.mxu0 0.0
    %1546 = vmatpush1.msra.mxu0 0.0
    %1547 = vmatprep.subr.mxu0 0.0
    %1548 = vmatpush1.msra.mxu0 0.0
    %1549 = vmatprep.subr.mxu0 0.0
    %1550 = vmatpush1.msra.mxu0 0.0
    %1551 = vmatprep.subr.mxu0 0.0
    %1552 = vmatpush1.msra.mxu0 0.0
    %1553 = vmatprep.subr.mxu0 0.0
    %1554 = vmatpush1.msra.mxu0 0.0
    %1555 = vmatprep.subr.mxu0 0.0
    %1556 = vmatpush1.msra.mxu0 0.0
    %1557 = vmatprep.subr.mxu0 0.0
    %1558 = vmatpush1.msra.mxu0 0.0
    %1559 = vmatprep.subr.mxu0 0.0
    %1560 = vmatpush1.msra.mxu0 0.0
    %1561 = vmatprep.subr.mxu0 0.0
    %1562 = vmatpush1.msra.mxu0 0.0
    %1563 = vmatprep.subr.mxu0 0.0
    %1564 = vmatpush1.msra.mxu0 0.0
    %1565 = vmatprep.subr.mxu0 0.0
    %1566 = vmatpush1.msra.mxu0 0.0
    %1567 = vmatprep.mubr.f32.mxu0 0.0
    %1568 = vmatmul.mubr.f32.gmra.mrb[0].mxu0 %v1501
    %v1569 = vpop.f32.mrb[0].mxu0
    %v1570 = vadd.f32 %v563, %v1569
    %v1571 = vpop.f32.mrb[0].mxu0
    %1572 = vdwg.mxu0
    %1574 = vrot.lane.b32.xlu0 %v1570, 110
    %v1575 = vpop.permute.xlu0 %1574
    %v1577 = vadd.f32 %v1570, %v1575
    %v1578 = vxor.u32 %v1577, 2147483648
    %v1579 = vmul.f32 %v1578, 1.442695
    %v1580 = vpow.pop %v1579
    %v1581 = vadd.f32 %v1580, 1.0
    %v1582 = vrcp.pop %v1581
    %v1583 = vmul.f32 1.0, %v1582
    %1584 = vrot.lane.b32.xlu0 %v1570, 98
    %v1585 = vpop.permute.xlu0 %1584
    %v1587 = vmul.f32 %v1583, %v1585
    %1589 = vrot.lane.b32.xlu0 %v1587, 12
    %v1590 = vpop.permute.xlu0 %1589
    %v1592 = vadd.f32 %v1570, %v1590
    %v1593 = vtanh.pop %v1592
    %v1594 = vsub.f32 1.0, %v1583
    %1596 = vrot.lane.b32.xlu0 %v1593, 122
    %v1597 = vpop.permute.xlu0 %1596
    %v1599 = vmul.f32 %v1594, %v1597
    %v1600 = vmul.f32 %v1583, %v1129
    %v1601 = vadd.f32 %v1599, %v1600
    %vm1602 = vcmp.eq.s32.totalorder %v63, 2
    %v1603 = vsel %vm1602, 1, 0
    %1604 = vset.pattern.permute.xlu0 0
    %1605 = vperm.xlu0 %1604, %v1603
    %v1606 = vpop.permute.xlu0 %1605
    %vm1607 = vcmp.eq.s32.totalorder %v1606, 1
    %v1608 = vsel %vm1607, %v1601, %v1136
    %v1609 = vrot.slane %v1456, 2
    %v1610 = vrot.slane %v1457, 1
    %v1611 = vsel %vm535, %v1610, %v1609
    %v1612 = vsel %vm538, %v1458, %v1611
    %v1613 = vrot.slane %v1459, 7
    %v1614 = vsel %vm541, %v1613, %v1612
    %v1615 = vrot.slane %v1460, 6
    %v1616 = vsel %vm544, %v1615, %v1614
    %v1617 = vrot.slane %v1461, 5
    %v1618 = vsel %vm547, %v1617, %v1616
    %v1619 = vrot.slane %v1462, 4
    %v1620 = vsel %vm550, %v1619, %v1618
    %v1621 = vrot.slane %v1463, 3
    %v1622 = vsel %vm553, %v1621, %v1620
    %1623 = vrot.lane.b32.xlu0 %v1622, 122
    %v1624 = vpop.permute.xlu0 %1623
    %v1625 = vsel %vm215, %v1624, 0
    %1627 = vmatprep.subr.mxu0 0.0
    %1628 = vmatpush1.msra.mxu0 %v221
    %1629 = vmatprep.subr.mxu0 0.0
    %1630 = vmatpush1.msra.mxu0 0.0
    %1631 = vmatprep.subr.mxu0 0.0
    %1632 = vmatpush1.msra.mxu0 0.0
    %1633 = vmatprep.subr.mxu0 0.0
    %1634 = vmatpush1.msra.mxu0 0.0
    %1635 = vmatprep.subr.mxu0 0.0
    %1636 = vmatpush1.msra.mxu0 0.0
    %1637 = vmatprep.subr.mxu0 0.0
    %1638 = vmatpush1.msra.mxu0 0.0
    %1639 = vmatprep.subr.mxu0 0.0
    %1640 = vmatpush1.msra.mxu0 0.0
    %1641 = vmatprep.subr.mxu0 0.0
    %1642 = vmatpush1.msra.mxu0 0.0
    %1643 = vmatprep.subr.mxu0 0.0
    %1644 = vmatpush1.msra.mxu0 0.0
    %1645 = vmatprep.subr.mxu0 0.0
    %1646 = vmatpush1.msra.mxu0 0.0
    %1647 = vmatprep.subr.mxu0 0.0
    %1648 = vmatpush1.msra.mxu0 0.0
    %1649 = vmatprep.subr.mxu0 0.0
    %1650 = vmatpush1.msra.mxu0 0.0
    %1651 = vmatprep.subr.mxu0 0.0
    %1652 = vmatpush1.msra.mxu0 0.0
    %1653 = vmatprep.subr.mxu0 0.0
    %1654 = vmatpush1.msra.mxu0 0.0
    %1655 = vmatprep.subr.mxu0 0.0
    %1656 = vmatpush1.msra.mxu0 0.0
    %1657 = vmatprep.subr.mxu0 0.0
    %1658 = vmatpush1.msra.mxu0 0.0
    %1659 = vmatprep.subr.mxu0 0.0
    %1660 = vmatpush1.msra.mxu0 0.0
    %1661 = vmatprep.subr.mxu0 0.0
    %1662 = vmatpush1.msra.mxu0 0.0
    %1663 = vmatprep.subr.mxu0 0.0
    %1664 = vmatpush1.msra.mxu0 0.0
    %1665 = vmatprep.subr.mxu0 0.0
    %1666 = vmatpush1.msra.mxu0 0.0
    %1667 = vmatprep.subr.mxu0 0.0
    %1668 = vmatpush1.msra.mxu0 0.0
    %1669 = vmatprep.subr.mxu0 0.0
    %1670 = vmatpush1.msra.mxu0 0.0
    %1671 = vmatprep.subr.mxu0 0.0
    %1672 = vmatpush1.msra.mxu0 0.0
    %1673 = vmatprep.subr.mxu0 0.0
    %1674 = vmatpush1.msra.mxu0 0.0
    %1675 = vmatprep.subr.mxu0 0.0
    %1676 = vmatpush1.msra.mxu0 0.0
    %1677 = vmatprep.subr.mxu0 0.0
    %1678 = vmatpush1.msra.mxu0 0.0
    %1679 = vmatprep.subr.mxu0 0.0
    %1680 = vmatpush1.msra.mxu0 0.0
    %1681 = vmatprep.subr.mxu0 0.0
    %1682 = vmatpush1.msra.mxu0 0.0
    %1683 = vmatprep.subr.mxu0 0.0
    %1684 = vmatpush1.msra.mxu0 0.0
    %1685 = vmatprep.subr.mxu0 0.0
    %1686 = vmatpush1.msra.mxu0 0.0
    %1687 = vmatprep.subr.mxu0 0.0
    %1688 = vmatpush1.msra.mxu0 0.0
    %1689 = vmatprep.subr.mxu0 0.0
    %1690 = vmatpush1.msra.mxu0 0.0
    %1691 = vmatprep.mubr.f32.mxu0 0.0
    %1692 = vmatmul.mubr.f32.gmra.mrb[0].mxu0 %v1625
    %v1693 = vpop.f32.mrb[0].mxu0
    %v1694 = vadd.f32 0.0, %v1693
    %v1695 = vpop.f32.mrb[0].mxu0
    %1696 = vdwg.mxu0
    %v1698 = vrot.slane %v1694, 5
    %v1699 = vrot.slane %v1694, 6
    %v1700 = vrot.slane %v1694, 7
    %v1701 = vrot.slane %v1694, 1
    %v1702 = vrot.slane %v1694, 2
    %v1703 = vrot.slane %v1694, 3
    %v1704 = vrot.slane %v1694, 4
    %v1713 = vadd.f32 %v177, %v1698
    %v1714 = vadd.f32 %v182, %v1699
    %v1715 = vadd.f32 %v187, %v1700
    %v1716 = vadd.f32 %v192, %v1694
    %v1717 = vadd.f32 %v197, %v1701
    %v1718 = vadd.f32 %v202, %v1702
    %v1719 = vadd.f32 %v207, %v1703
    %v1720 = vadd.f32 %v212, %v1704
    %v1721 = vxor.u32 %v1713, 2147483648
    %v1722 = vxor.u32 %v1714, 2147483648
    %v1723 = vxor.u32 %v1715, 2147483648
    %v1724 = vxor.u32 %v1716, 2147483648
    %v1725 = vxor.u32 %v1717, 2147483648
    %v1726 = vxor.u32 %v1718, 2147483648
    %v1727 = vxor.u32 %v1719, 2147483648
    %v1728 = vxor.u32 %v1720, 2147483648
    %v1729 = vmul.f32 %v1721, 1.442695
    %v1730 = vpow.pop %v1729
    %v1731 = vmul.f32 %v1722, 1.442695
    %v1732 = vpow.pop %v1731
    %v1733 = vmul.f32 %v1723, 1.442695
    %v1734 = vpow.pop %v1733
    %v1735 = vmul.f32 %v1724, 1.442695
    %v1736 = vpow.pop %v1735
    %v1737 = vmul.f32 %v1725, 1.442695
    %v1738 = vpow.pop %v1737
    %v1739 = vmul.f32 %v1726, 1.442695
    %v1740 = vpow.pop %v1739
    %v1741 = vmul.f32 %v1727, 1.442695
    %v1742 = vpow.pop %v1741
    %v1743 = vmul.f32 %v1728, 1.442695
    %v1744 = vpow.pop %v1743
    %v1745 = vadd.f32 %v1730, 1.0
    %v1746 = vadd.f32 %v1732, 1.0
    %v1747 = vadd.f32 %v1734, 1.0
    %v1748 = vadd.f32 %v1736, 1.0
    %v1749 = vadd.f32 %v1738, 1.0
    %v1750 = vadd.f32 %v1740, 1.0
    %v1751 = vadd.f32 %v1742, 1.0
    %v1752 = vadd.f32 %v1744, 1.0
    %v1753 = vrcp.pop %v1745
    %v1754 = vmul.f32 1.0, %v1753
    %v1755 = vrcp.pop %v1746
    %v1756 = vmul.f32 1.0, %v1755
    %v1757 = vrcp.pop %v1747
    %v1758 = vmul.f32 1.0, %v1757
    %v1759 = vrcp.pop %v1748
    %v1760 = vmul.f32 1.0, %v1759
    %v1761 = vrcp.pop %v1749
    %v1762 = vmul.f32 1.0, %v1761
    %v1763 = vrcp.pop %v1750
    %v1764 = vmul.f32 1.0, %v1763
    %v1765 = vrcp.pop %v1751
    %v1766 = vmul.f32 1.0, %v1765
    %v1767 = vrcp.pop %v1752
    %v1768 = vmul.f32 1.0, %v1767
    %v1769 = vadd.f32 %v1694, %v371
    %v1771 = vrot.slane %v1769, 5
    %v1772 = vrot.slane %v1769, 6
    %v1773 = vrot.slane %v1769, 7
    %v1774 = vrot.slane %v1769, 1
    %v1775 = vrot.slane %v1769, 2
    %v1776 = vrot.slane %v1769, 3
    %v1777 = vrot.slane %v1769, 4
    %1778 = vrot.lane.b32.xlu0 %v1771, 116
    %v1779 = vpop.permute.xlu0 %1778
    %1780 = vrot.lane.b32.xlu0 %v1772, 116
    %v1781 = vpop.permute.xlu0 %1780
    %1782 = vrot.lane.b32.xlu0 %v1773, 116
    %v1783 = vpop.permute.xlu0 %1782
    %1784 = vrot.lane.b32.xlu0 %v1769, 116
    %v1785 = vpop.permute.xlu0 %1784
    %1786 = vrot.lane.b32.xlu0 %v1774, 116
    %v1787 = vpop.permute.xlu0 %1786
    %1788 = vrot.lane.b32.xlu0 %v1775, 116
    %v1789 = vpop.permute.xlu0 %1788
    %1790 = vrot.lane.b32.xlu0 %v1776, 116
    %v1791 = vpop.permute.xlu0 %1790
    %1792 = vrot.lane.b32.xlu0 %v1777, 116
    %v1793 = vpop.permute.xlu0 %1792
    %v1802 = vmul.f32 %v1754, %v1779
    %v1803 = vmul.f32 %v1756, %v1781
    %v1804 = vmul.f32 %v1758, %v1783
    %v1805 = vmul.f32 %v1760, %v1785
    %v1806 = vmul.f32 %v1762, %v1787
    %v1807 = vmul.f32 %v1764, %v1789
    %v1808 = vmul.f32 %v1766, %v1791
    %v1809 = vmul.f32 %v1768, %v1793
    %1818 = vrot.lane.b32.xlu0 %v1802, 12
    %v1819 = vpop.permute.xlu0 %1818
    %1820 = vrot.lane.b32.xlu0 %v1803, 12
    %v1821 = vpop.permute.xlu0 %1820
    %1822 = vrot.lane.b32.xlu0 %v1804, 12
    %v1823 = vpop.permute.xlu0 %1822
    %1824 = vrot.lane.b32.xlu0 %v1805, 12
    %v1825 = vpop.permute.xlu0 %1824
    %1826 = vrot.lane.b32.xlu0 %v1806, 12
    %v1827 = vpop.permute.xlu0 %1826
    %1828 = vrot.lane.b32.xlu0 %v1807, 12
    %v1829 = vpop.permute.xlu0 %1828
    %1830 = vrot.lane.b32.xlu0 %v1808, 12
    %v1831 = vpop.permute.xlu0 %1830
    %1832 = vrot.lane.b32.xlu0 %v1809, 12
    %v1833 = vpop.permute.xlu0 %1832
    %v1842 = vadd.f32 %v177, %v1819
    %v1843 = vadd.f32 %v182, %v1821
    %v1844 = vadd.f32 %v187, %v1823
    %v1845 = vadd.f32 %v192, %v1825
    %v1846 = vadd.f32 %v197, %v1827
    %v1847 = vadd.f32 %v202, %v1829
    %v1848 = vadd.f32 %v207, %v1831
    %v1849 = vadd.f32 %v212, %v1833
    %v1850 = vtanh.pop %v1842
    %v1851 = vtanh.pop %v1843
    %v1852 = vtanh.pop %v1844
    %v1853 = vtanh.pop %v1845
    %v1854 = vtanh.pop %v1846
    %v1855 = vtanh.pop %v1847
    %v1856 = vtanh.pop %v1848
    %v1857 = vtanh.pop %v1849
    %v1858 = vsub.f32 1.0, %v1754
    %v1859 = vsub.f32 1.0, %v1756
    %v1860 = vsub.f32 1.0, %v1758
    %v1861 = vsub.f32 1.0, %v1760
    %v1862 = vsub.f32 1.0, %v1762
    %v1863 = vsub.f32 1.0, %v1764
    %v1864 = vsub.f32 1.0, %v1766
    %v1865 = vsub.f32 1.0, %v1768
    %1874 = vrot.lane.b32.xlu0 %v1850, 122
    %v1875 = vpop.permute.xlu0 %1874
    %1876 = vrot.lane.b32.xlu0 %v1851, 122
    %v1877 = vpop.permute.xlu0 %1876
    %1878 = vrot.lane.b32.xlu0 %v1852, 122
    %v1879 = vpop.permute.xlu0 %1878
    %1880 = vrot.lane.b32.xlu0 %v1853, 122
    %v1881 = vpop.permute.xlu0 %1880
    %1882 = vrot.lane.b32.xlu0 %v1854, 122
    %v1883 = vpop.permute.xlu0 %1882
    %1884 = vrot.lane.b32.xlu0 %v1855, 122
    %v1885 = vpop.permute.xlu0 %1884
    %1886 = vrot.lane.b32.xlu0 %v1856, 122
    %v1887 = vpop.permute.xlu0 %1886
    %1888 = vrot.lane.b32.xlu0 %v1857, 122
    %v1889 = vpop.permute.xlu0 %1888
    %v1898 = vmul.f32 %v1858, %v1875
    %v1899 = vmul.f32 %v1859, %v1877
    %v1900 = vmul.f32 %v1860, %v1879
    %v1901 = vmul.f32 %v1861, %v1881
    %v1902 = vmul.f32 %v1862, %v1883
    %v1903 = vmul.f32 %v1863, %v1885
    %v1904 = vmul.f32 %v1864, %v1887
    %v1905 = vmul.f32 %v1865, %v1889
    %v1906 = vrot.slane %v1456, 7
    %v1907 = vrot.slane %v1458, 7
    %v1908 = vrot.slane %v1460, 7
    %v1909 = vrot.slane %v1461, 7
    %v1910 = vrot.slane %v1462, 7
    %v1911 = vrot.slane %v1463, 7
    %v1920 = vmul.f32 %v1754, %v1906
    %v1921 = vmul.f32 %v1756, %v1472
    %v1922 = vmul.f32 %v1758, %v1907
    %v1923 = vmul.f32 %v1760, %v1613
    %v1924 = vmul.f32 %v1762, %v1908
    %v1925 = vmul.f32 %v1764, %v1909
    %v1926 = vmul.f32 %v1766, %v1910
    %v1927 = vmul.f32 %v1768, %v1911
    %v1928 = vadd.f32 %v1898, %v1920
    %v1929 = vadd.f32 %v1899, %v1921
    %v1930 = vadd.f32 %v1900, %v1922
    %v1931 = vadd.f32 %v1901, %v1923
    %v1932 = vadd.f32 %v1902, %v1924
    %v1933 = vadd.f32 %v1903, %v1925
    %v1934 = vadd.f32 %v1904, %v1926
    %v1935 = vadd.f32 %v1905, %v1927
    %v1944 = vrot.slane %v1929, 7
    %v1945 = vsel %vm544, %v1944, %v1928
    %v1946 = vrot.slane %v1930, 6
    %v1947 = vsel %vm547, %v1946, %v1945
    %v1948 = vrot.slane %v1931, 5
    %v1949 = vsel %vm550, %v1948, %v1947
    %v1950 = vrot.slane %v1932, 4
    %v1951 = vsel %vm553, %v1950, %v1949
    %v1952 = vrot.slane %v1933, 3
    %v1953 = vrot.slane %v1934, 2
    %v1954 = vsel %vm535, %v1953, %v1952
    %v1955 = vrot.slane %v1935, 1
    %v1956 = vsel %vm538, %v1955, %v1954
    %1957 = vrot.lane.b32.xlu0 %v1951, 122
    %v1958 = vpop.permute.xlu0 %1957
    %1959 = vrot.lane.b32.xlu0 %v1956, 122
    %v1960 = vpop.permute.xlu0 %1959
    %v1964 = vrot.slane %v1601, 5
    %v1966 = vsel %vm215, %v1958, %v1964
    %v1967 = vsel %vm215, %v1960, %v1964
    %vm1970 = vcmask 1044480
    %v1971 = vrot.slane %v1966, 3
    %v1972 = vrot.slane %v1967, 3
    %v1973 = vsel %vm1970, %v1971, %v1972
    %v1974 = vsel %vm565, %v1973, 0
    %1976 = vmatprep.subr.mxu0 0.0
    %1977 = vmatpush1.msra.mxu0 %v68
    %1978 = vmatprep.subr.mxu0 0.0
    %1979 = vmatpush1.msra.mxu0 %v571
    %1980 = vmatprep.subr.mxu0 0.0
    %1981 = vmatpush1.msra.mxu0 0.0
    %1982 = vmatprep.subr.mxu0 0.0
    %1983 = vmatpush1.msra.mxu0 0.0
    %1984 = vmatprep.subr.mxu0 0.0
    %1985 = vmatpush1.msra.mxu0 0.0
    %1986 = vmatprep.subr.mxu0 0.0
    %1987 = vmatpush1.msra.mxu0 0.0
    %1988 = vmatprep.subr.mxu0 0.0
    %1989 = vmatpush1.msra.mxu0 0.0
    %1990 = vmatprep.subr.mxu0 0.0
    %1991 = vmatpush1.msra.mxu0 0.0
    %1992 = vmatprep.subr.mxu0 0.0
    %1993 = vmatpush1.msra.mxu0 0.0
    %1994 = vmatprep.subr.mxu0 0.0
    %1995 = vmatpush1.msra.mxu0 0.0
    %1996 = vmatprep.subr.mxu0 0.0
    %1997 = vmatpush1.msra.mxu0 0.0
    %1998 = vmatprep.subr.mxu0 0.0
    %1999 = vmatpush1.msra.mxu0 0.0
    %2000 = vmatprep.subr.mxu0 0.0
    %2001 = vmatpush1.msra.mxu0 0.0
    %2002 = vmatprep.subr.mxu0 0.0
    %2003 = vmatpush1.msra.mxu0 0.0
    %2004 = vmatprep.subr.mxu0 0.0
    %2005 = vmatpush1.msra.mxu0 0.0
    %2006 = vmatprep.subr.mxu0 0.0
    %2007 = vmatpush1.msra.mxu0 0.0
    %2008 = vmatprep.subr.mxu0 0.0
    %2009 = vmatpush1.msra.mxu0 0.0
    %2010 = vmatprep.subr.mxu0 0.0
    %2011 = vmatpush1.msra.mxu0 0.0
    %2012 = vmatprep.subr.mxu0 0.0
    %2013 = vmatpush1.msra.mxu0 0.0
    %2014 = vmatprep.subr.mxu0 0.0
    %2015 = vmatpush1.msra.mxu0 0.0
    %2016 = vmatprep.subr.mxu0 0.0
    %2017 = vmatpush1.msra.mxu0 0.0
    %2018 = vmatprep.subr.mxu0 0.0
    %2019 = vmatpush1.msra.mxu0 0.0
    %2020 = vmatprep.subr.mxu0 0.0
    %2021 = vmatpush1.msra.mxu0 0.0
    %2022 = vmatprep.subr.mxu0 0.0
    %2023 = vmatpush1.msra.mxu0 0.0
    %2024 = vmatprep.subr.mxu0 0.0
    %2025 = vmatpush1.msra.mxu0 0.0
    %2026 = vmatprep.subr.mxu0 0.0
    %2027 = vmatpush1.msra.mxu0 0.0
    %2028 = vmatprep.subr.mxu0 0.0
    %2029 = vmatpush1.msra.mxu0 0.0
    %2030 = vmatprep.subr.mxu0 0.0
    %2031 = vmatpush1.msra.mxu0 0.0
    %2032 = vmatprep.subr.mxu0 0.0
    %2033 = vmatpush1.msra.mxu0 0.0
    %2034 = vmatprep.subr.mxu0 0.0
    %2035 = vmatpush1.msra.mxu0 0.0
    %2036 = vmatprep.subr.mxu0 0.0
    %2037 = vmatpush1.msra.mxu0 0.0
    %2038 = vmatprep.subr.mxu0 0.0
    %2039 = vmatpush1.msra.mxu0 0.0
    %2040 = vmatprep.mubr.f32.mxu0 0.0
    %2041 = vmatmul.mubr.f32.gmra.mrb[0].mxu0 %v1974
    %v2042 = vpop.f32.mrb[0].mxu0
    %v2043 = vadd.f32 %v563, %v2042
    %v2044 = vpop.f32.mrb[0].mxu0
    %2045 = vdwg.mxu0
    %2047 = vrot.lane.b32.xlu0 %v2043, 110
    %v2048 = vpop.permute.xlu0 %2047
    %v2050 = vadd.f32 %v2043, %v2048
    %v2051 = vxor.u32 %v2050, 2147483648
    %v2052 = vmul.f32 %v2051, 1.442695
    %v2053 = vpow.pop %v2052
    %v2054 = vadd.f32 %v2053, 1.0
    %v2055 = vrcp.pop %v2054
    %v2056 = vmul.f32 1.0, %v2055
    %2057 = vrot.lane.b32.xlu0 %v2043, 98
    %v2058 = vpop.permute.xlu0 %2057
    %v2060 = vmul.f32 %v2056, %v2058
    %2062 = vrot.lane.b32.xlu0 %v2060, 12
    %v2063 = vpop.permute.xlu0 %2062
    %v2065 = vadd.f32 %v2043, %v2063
    %v2066 = vtanh.pop %v2065
    %v2067 = vsub.f32 1.0, %v2056
    %2069 = vrot.lane.b32.xlu0 %v2066, 122
    %v2070 = vpop.permute.xlu0 %2069
    %v2072 = vmul.f32 %v2067, %v2070
    %v2073 = vmul.f32 %v2056, %v1601
    %v2074 = vadd.f32 %v2072, %v2073
    %vm2075 = vcmp.eq.s32.totalorder %v63, 3
    %v2076 = vsel %vm2075, 1, 0
    %2077 = vset.pattern.permute.xlu0 0
    %2078 = vperm.xlu0 %2077, %v2076
    %v2079 = vpop.permute.xlu0 %2078
    %vm2080 = vcmp.eq.s32.totalorder %v2079, 1
    %v2081 = vsel %vm2080, %v2074, %v1608
    %v2082 = vrot.slane %v1928, 3
    %v2083 = vrot.slane %v1929, 2
    %v2084 = vsel %vm535, %v2083, %v2082
    %v2085 = vrot.slane %v1930, 1
    %v2086 = vsel %vm538, %v2085, %v2084
    %v2087 = vsel %vm541, %v1931, %v2086
    %v2088 = vrot.slane %v1932, 7
    %v2089 = vsel %vm544, %v2088, %v2087
    %v2090 = vrot.slane %v1933, 6
    %v2091 = vsel %vm547, %v2090, %v2089
    %v2092 = vrot.slane %v1934, 5
    %v2093 = vsel %vm550, %v2092, %v2091
    %v2094 = vrot.slane %v1935, 4
    %v2095 = vsel %vm553, %v2094, %v2093
    %2096 = vrot.lane.b32.xlu0 %v2095, 122
    %v2097 = vpop.permute.xlu0 %2096
    %v2098 = vsel %vm215, %v2097, 0
    %2100 = vmatprep.subr.mxu0 0.0
    %2101 = vmatpush1.msra.mxu0 %v221
    %2102 = vmatprep.subr.mxu0 0.0
    %2103 = vmatpush1.msra.mxu0 0.0
    %2104 = vmatprep.subr.mxu0 0.0
    %2105 = vmatpush1.msra.mxu0 0.0
    %2106 = vmatprep.subr.mxu0 0.0
    %2107 = vmatpush1.msra.mxu0 0.0
    %2108 = vmatprep.subr.mxu0 0.0
    %2109 = vmatpush1.msra.mxu0 0.0
    %2110 = vmatprep.subr.mxu0 0.0
    %2111 = vmatpush1.msra.mxu0 0.0
    %2112 = vmatprep.subr.mxu0 0.0
    %2113 = vmatpush1.msra.mxu0 0.0
    %2114 = vmatprep.subr.mxu0 0.0
    %2115 = vmatpush1.msra.mxu0 0.0
    %2116 = vmatprep.subr.mxu0 0.0
    %2117 = vmatpush1.msra.mxu0 0.0
    %2118 = vmatprep.subr.mxu0 0.0
    %2119 = vmatpush1.msra.mxu0 0.0
    %2120 = vmatprep.subr.mxu0 0.0
    %2121 = vmatpush1.msra.mxu0 0.0
    %2122 = vmatprep.subr.mxu0 0.0
    %2123 = vmatpush1.msra.mxu0 0.0
    %2124 = vmatprep.subr.mxu0 0.0
    %2125 = vmatpush1.msra.mxu0 0.0
    %2126 = vmatprep.subr.mxu0 0.0
    %2127 = vmatpush1.msra.mxu0 0.0
    %2128 = vmatprep.subr.mxu0 0.0
    %2129 = vmatpush1.msra.mxu0 0.0
    %2130 = vmatprep.subr.mxu0 0.0
    %2131 = vmatpush1.msra.mxu0 0.0
    %2132 = vmatprep.subr.mxu0 0.0
    %2133 = vmatpush1.msra.mxu0 0.0
    %2134 = vmatprep.subr.mxu0 0.0
    %2135 = vmatpush1.msra.mxu0 0.0
    %2136 = vmatprep.subr.mxu0 0.0
    %2137 = vmatpush1.msra.mxu0 0.0
    %2138 = vmatprep.subr.mxu0 0.0
    %2139 = vmatpush1.msra.mxu0 0.0
    %2140 = vmatprep.subr.mxu0 0.0
    %2141 = vmatpush1.msra.mxu0 0.0
    %2142 = vmatprep.subr.mxu0 0.0
    %2143 = vmatpush1.msra.mxu0 0.0
    %2144 = vmatprep.subr.mxu0 0.0
    %2145 = vmatpush1.msra.mxu0 0.0
    %2146 = vmatprep.subr.mxu0 0.0
    %2147 = vmatpush1.msra.mxu0 0.0
    %2148 = vmatprep.subr.mxu0 0.0
    %2149 = vmatpush1.msra.mxu0 0.0
    %2150 = vmatprep.subr.mxu0 0.0
    %2151 = vmatpush1.msra.mxu0 0.0
    %2152 = vmatprep.subr.mxu0 0.0
    %2153 = vmatpush1.msra.mxu0 0.0
    %2154 = vmatprep.subr.mxu0 0.0
    %2155 = vmatpush1.msra.mxu0 0.0
    %2156 = vmatprep.subr.mxu0 0.0
    %2157 = vmatpush1.msra.mxu0 0.0
    %2158 = vmatprep.subr.mxu0 0.0
    %2159 = vmatpush1.msra.mxu0 0.0
    %2160 = vmatprep.subr.mxu0 0.0
    %2161 = vmatpush1.msra.mxu0 0.0
    %2162 = vmatprep.subr.mxu0 0.0
    %2163 = vmatpush1.msra.mxu0 0.0
    %2164 = vmatprep.mubr.f32.mxu0 0.0
    %2165 = vmatmul.mubr.f32.gmra.mrb[0].mxu0 %v2098
    %v2166 = vpop.f32.mrb[0].mxu0
    %v2167 = vadd.f32 0.0, %v2166
    %v2168 = vpop.f32.mrb[0].mxu0
    %2169 = vdwg.mxu0
    %v2171 = vrot.slane %v2167, 4
    %v2172 = vrot.slane %v2167, 5
    %v2173 = vrot.slane %v2167, 6
    %v2174 = vrot.slane %v2167, 7
    %v2175 = vrot.slane %v2167, 1
    %v2176 = vrot.slane %v2167, 2
    %v2177 = vrot.slane %v2167, 3
    %v2186 = vadd.f32 %v177, %v2171
    %v2187 = vadd.f32 %v182, %v2172
    %v2188 = vadd.f32 %v187, %v2173
    %v2189 = vadd.f32 %v192, %v2174
    %v2190 = vadd.f32 %v197, %v2167
    %v2191 = vadd.f32 %v202, %v2175
    %v2192 = vadd.f32 %v207, %v2176
    %v2193 = vadd.f32 %v212, %v2177
    %v2194 = vxor.u32 %v2186, 2147483648
    %v2195 = vxor.u32 %v2187, 2147483648
    %v2196 = vxor.u32 %v2188, 2147483648
    %v2197 = vxor.u32 %v2189, 2147483648
    %v2198 = vxor.u32 %v2190, 2147483648
    %v2199 = vxor.u32 %v2191, 2147483648
    %v2200 = vxor.u32 %v2192, 2147483648
    %v2201 = vxor.u32 %v2193, 2147483648
    %v2202 = vmul.f32 %v2194, 1.442695
    %v2203 = vpow.pop %v2202
    %v2204 = vmul.f32 %v2195, 1.442695
    %v2205 = vpow.pop %v2204
    %v2206 = vmul.f32 %v2196, 1.442695
    %v2207 = vpow.pop %v2206
    %v2208 = vmul.f32 %v2197, 1.442695
    %v2209 = vpow.pop %v2208
    %v2210 = vmul.f32 %v2198, 1.442695
    %v2211 = vpow.pop %v2210
    %v2212 = vmul.f32 %v2199, 1.442695
    %v2213 = vpow.pop %v2212
    %v2214 = vmul.f32 %v2200, 1.442695
    %v2215 = vpow.pop %v2214
    %v2216 = vmul.f32 %v2201, 1.442695
    %v2217 = vpow.pop %v2216
    %v2218 = vadd.f32 %v2203, 1.0
    %v2219 = vadd.f32 %v2205, 1.0
    %v2220 = vadd.f32 %v2207, 1.0
    %v2221 = vadd.f32 %v2209, 1.0
    %v2222 = vadd.f32 %v2211, 1.0
    %v2223 = vadd.f32 %v2213, 1.0
    %v2224 = vadd.f32 %v2215, 1.0
    %v2225 = vadd.f32 %v2217, 1.0
    %v2226 = vrcp.pop %v2218
    %v2227 = vmul.f32 1.0, %v2226
    %v2228 = vrcp.pop %v2219
    %v2229 = vmul.f32 1.0, %v2228
    %v2230 = vrcp.pop %v2220
    %v2231 = vmul.f32 1.0, %v2230
    %v2232 = vrcp.pop %v2221
    %v2233 = vmul.f32 1.0, %v2232
    %v2234 = vrcp.pop %v2222
    %v2235 = vmul.f32 1.0, %v2234
    %v2236 = vrcp.pop %v2223
    %v2237 = vmul.f32 1.0, %v2236
    %v2238 = vrcp.pop %v2224
    %v2239 = vmul.f32 1.0, %v2238
    %v2240 = vrcp.pop %v2225
    %v2241 = vmul.f32 1.0, %v2240
    %v2242 = vadd.f32 %v2167, %v371
    %v2244 = vrot.slane %v2242, 4
    %v2245 = vrot.slane %v2242, 5
    %v2246 = vrot.slane %v2242, 6
    %v2247 = vrot.slane %v2242, 7
    %v2248 = vrot.slane %v2242, 1
    %v2249 = vrot.slane %v2242, 2
    %v2250 = vrot.slane %v2242, 3
    %2251 = vrot.lane.b32.xlu0 %v2244, 116
    %v2252 = vpop.permute.xlu0 %2251
    %2253 = vrot.lane.b32.xlu0 %v2245, 116
    %v2254 = vpop.permute.xlu0 %2253
    %2255 = vrot.lane.b32.xlu0 %v2246, 116
    %v2256 = vpop.permute.xlu0 %2255
    %2257 = vrot.lane.b32.xlu0 %v2247, 116
    %v2258 = vpop.permute.xlu0 %2257
    %2259 = vrot.lane.b32.xlu0 %v2242, 116
    %v2260 = vpop.permute.xlu0 %2259
    %2261 = vrot.lane.b32.xlu0 %v2248, 116
    %v2262 = vpop.permute.xlu0 %2261
    %2263 = vrot.lane.b32.xlu0 %v2249, 116
    %v2264 = vpop.permute.xlu0 %2263
    %2265 = vrot.lane.b32.xlu0 %v2250, 116
    %v2266 = vpop.permute.xlu0 %2265
    %v2275 = vmul.f32 %v2227, %v2252
    %v2276 = vmul.f32 %v2229, %v2254
    %v2277 = vmul.f32 %v2231, %v2256
    %v2278 = vmul.f32 %v2233, %v2258
    %v2279 = vmul.f32 %v2235, %v2260
    %v2280 = vmul.f32 %v2237, %v2262
    %v2281 = vmul.f32 %v2239, %v2264
    %v2282 = vmul.f32 %v2241, %v2266
    %2291 = vrot.lane.b32.xlu0 %v2275, 12
    %v2292 = vpop.permute.xlu0 %2291
    %2293 = vrot.lane.b32.xlu0 %v2276, 12
    %v2294 = vpop.permute.xlu0 %2293
    %2295 = vrot.lane.b32.xlu0 %v2277, 12
    %v2296 = vpop.permute.xlu0 %2295
    %2297 = vrot.lane.b32.xlu0 %v2278, 12
    %v2298 = vpop.permute.xlu0 %2297
    %2299 = vrot.lane.b32.xlu0 %v2279, 12
    %v2300 = vpop.permute.xlu0 %2299
    %2301 = vrot.lane.b32.xlu0 %v2280, 12
    %v2302 = vpop.permute.xlu0 %2301
    %2303 = vrot.lane.b32.xlu0 %v2281, 12
    %v2304 = vpop.permute.xlu0 %2303
    %2305 = vrot.lane.b32.xlu0 %v2282, 12
    %v2306 = vpop.permute.xlu0 %2305
    %v2315 = vadd.f32 %v177, %v2292
    %v2316 = vadd.f32 %v182, %v2294
    %v2317 = vadd.f32 %v187, %v2296
    %v2318 = vadd.f32 %v192, %v2298
    %v2319 = vadd.f32 %v197, %v2300
    %v2320 = vadd.f32 %v202, %v2302
    %v2321 = vadd.f32 %v207, %v2304
    %v2322 = vadd.f32 %v212, %v2306
    %v2323 = vtanh.pop %v2315
    %v2324 = vtanh.pop %v2316
    %v2325 = vtanh.pop %v2317
    %v2326 = vtanh.pop %v2318
    %v2327 = vtanh.pop %v2319
    %v2328 = vtanh.pop %v2320
    %v2329 = vtanh.pop %v2321
    %v2330 = vtanh.pop %v2322
    %v2331 = vsub.f32 1.0, %v2227
    %v2332 = vsub.f32 1.0, %v2229
    %v2333 = vsub.f32 1.0, %v2231
    %v2334 = vsub.f32 1.0, %v2233
    %v2335 = vsub.f32 1.0, %v2235
    %v2336 = vsub.f32 1.0, %v2237
    %v2337 = vsub.f32 1.0, %v2239
    %v2338 = vsub.f32 1.0, %v2241
    %2347 = vrot.lane.b32.xlu0 %v2323, 122
    %v2348 = vpop.permute.xlu0 %2347
    %2349 = vrot.lane.b32.xlu0 %v2324, 122
    %v2350 = vpop.permute.xlu0 %2349
    %2351 = vrot.lane.b32.xlu0 %v2325, 122
    %v2352 = vpop.permute.xlu0 %2351
    %2353 = vrot.lane.b32.xlu0 %v2326, 122
    %v2354 = vpop.permute.xlu0 %2353
    %2355 = vrot.lane.b32.xlu0 %v2327, 122
    %v2356 = vpop.permute.xlu0 %2355
    %2357 = vrot.lane.b32.xlu0 %v2328, 122
    %v2358 = vpop.permute.xlu0 %2357
    %2359 = vrot.lane.b32.xlu0 %v2329, 122
    %v2360 = vpop.permute.xlu0 %2359
    %2361 = vrot.lane.b32.xlu0 %v2330, 122
    %v2362 = vpop.permute.xlu0 %2361
    %v2371 = vmul.f32 %v2331, %v2348
    %v2372 = vmul.f32 %v2332, %v2350
    %v2373 = vmul.f32 %v2333, %v2352
    %v2374 = vmul.f32 %v2334, %v2354
    %v2375 = vmul.f32 %v2335, %v2356
    %v2376 = vmul.f32 %v2336, %v2358
    %v2377 = vmul.f32 %v2337, %v2360
    %v2378 = vmul.f32 %v2338, %v2362
    %v2379 = vrot.slane %v1928, 7
    %v2380 = vrot.slane %v1930, 7
    %v2381 = vrot.slane %v1931, 7
    %v2382 = vrot.slane %v1933, 7
    %v2383 = vrot.slane %v1934, 7
    %v2384 = vrot.slane %v1935, 7
    %v2393 = vmul.f32 %v2227, %v2379
    %v2394 = vmul.f32 %v2229, %v1944
    %v2395 = vmul.f32 %v2231, %v2380
    %v2396 = vmul.f32 %v2233, %v2381
    %v2397 = vmul.f32 %v2235, %v2088
    %v2398 = vmul.f32 %v2237, %v2382
    %v2399 = vmul.f32 %v2239, %v2383
    %v2400 = vmul.f32 %v2241, %v2384
    %v2401 = vadd.f32 %v2371, %v2393
    %v2402 = vadd.f32 %v2372, %v2394
    %v2403 = vadd.f32 %v2373, %v2395
    %v2404 = vadd.f32 %v2374, %v2396
    %v2405 = vadd.f32 %v2375, %v2397
    %v2406 = vadd.f32 %v2376, %v2398
    %v2407 = vadd.f32 %v2377, %v2399
    %v2408 = vadd.f32 %v2378, %v2400
    %v2417 = vrot.slane %v2402, 7
    %v2418 = vsel %vm547, %v2417, %v2401
    %v2419 = vrot.slane %v2403, 6
    %v2420 = vsel %vm550, %v2419, %v2418
    %v2421 = vrot.slane %v2404, 5
    %v2422 = vsel %vm553, %v2421, %v2420
    %v2423 = vrot.slane %v2405, 4
    %v2424 = vrot.slane %v2406, 3
    %v2425 = vsel %vm535, %v2424, %v2423
    %v2426 = vrot.slane %v2407, 2
    %v2427 = vsel %vm538, %v2426, %v2425
    %v2428 = vrot.slane %v2408, 1
    %v2429 = vsel %vm541, %v2428, %v2427
    %2430 = vrot.lane.b32.xlu0 %v2422, 122
    %v2431 = vpop.permute.xlu0 %2430
    %2432 = vrot.lane.b32.xlu0 %v2429, 122
    %v2433 = vpop.permute.xlu0 %2432
    %v2437 = vrot.slane %v2074, 4
    %v2439 = vsel %vm215, %v2431, %v2437
    %v2440 = vsel %vm215, %v2433, %v2437
    %v2443 = vrot.slane %v2439, 4
    %v2444 = vrot.slane %v2440, 4
    %v2445 = vsel %vm569, %v2443, %v2444
    %v2446 = vsel %vm565, %v2445, 0
    %2448 = vmatprep.subr.mxu0 0.0
    %2449 = vmatpush1.msra.mxu0 %v68
    %2450 = vmatprep.subr.mxu0 0.0
    %2451 = vmatpush1.msra.mxu0 %v571
    %2452 = vmatprep.subr.mxu0 0.0
    %2453 = vmatpush1.msra.mxu0 0.0
    %2454 = vmatprep.subr.mxu0 0.0
    %2455 = vmatpush1.msra.mxu0 0.0
    %2456 = vmatprep.subr.mxu0 0.0
    %2457 = vmatpush1.msra.mxu0 0.0
    %2458 = vmatprep.subr.mxu0 0.0
    %2459 = vmatpush1.msra.mxu0 0.0
    %2460 = vmatprep.subr.mxu0 0.0
    %2461 = vmatpush1.msra.mxu0 0.0
    %2462 = vmatprep.subr.mxu0 0.0
    %2463 = vmatpush1.msra.mxu0 0.0
    %2464 = vmatprep.subr.mxu0 0.0
    %2465 = vmatpush1.msra.mxu0 0.0
    %2466 = vmatprep.subr.mxu0 0.0
    %2467 = vmatpush1.msra.mxu0 0.0
    %2468 = vmatprep.subr.mxu0 0.0
    %2469 = vmatpush1.msra.mxu0 0.0
    %2470 = vmatprep.subr.mxu0 0.0
    %2471 = vmatpush1.msra.mxu0 0.0
    %2472 = vmatprep.subr.mxu0 0.0
    %2473 = vmatpush1.msra.mxu0 0.0
    %2474 = vmatprep.subr.mxu0 0.0
    %2475 = vmatpush1.msra.mxu0 0.0
    %2476 = vmatprep.subr.mxu0 0.0
    %2477 = vmatpush1.msra.mxu0 0.0
    %2478 = vmatprep.subr.mxu0 0.0
    %2479 = vmatpush1.msra.mxu0 0.0
    %2480 = vmatprep.subr.mxu0 0.0
    %2481 = vmatpush1.msra.mxu0 0.0
    %2482 = vmatprep.subr.mxu0 0.0
    %2483 = vmatpush1.msra.mxu0 0.0
    %2484 = vmatprep.subr.mxu0 0.0
    %2485 = vmatpush1.msra.mxu0 0.0
    %2486 = vmatprep.subr.mxu0 0.0
    %2487 = vmatpush1.msra.mxu0 0.0
    %2488 = vmatprep.subr.mxu0 0.0
    %2489 = vmatpush1.msra.mxu0 0.0
    %2490 = vmatprep.subr.mxu0 0.0
    %2491 = vmatpush1.msra.mxu0 0.0
    %2492 = vmatprep.subr.mxu0 0.0
    %2493 = vmatpush1.msra.mxu0 0.0
    %2494 = vmatprep.subr.mxu0 0.0
    %2495 = vmatpush1.msra.mxu0 0.0
    %2496 = vmatprep.subr.mxu0 0.0
    %2497 = vmatpush1.msra.mxu0 0.0
    %2498 = vmatprep.subr.mxu0 0.0
    %2499 = vmatpush1.msra.mxu0 0.0
    %2500 = vmatprep.subr.mxu0 0.0
    %2501 = vmatpush1.msra.mxu0 0.0
    %2502 = vmatprep.subr.mxu0 0.0
    %2503 = vmatpush1.msra.mxu0 0.0
    %2504 = vmatprep.subr.mxu0 0.0
    %2505 = vmatpush1.msra.mxu0 0.0
    %2506 = vmatprep.subr.mxu0 0.0
    %2507 = vmatpush1.msra.mxu0 0.0
    %2508 = vmatprep.subr.mxu0 0.0
    %2509 = vmatpush1.msra.mxu0 0.0
    %2510 = vmatprep.subr.mxu0 0.0
    %2511 = vmatpush1.msra.mxu0 0.0
    %2512 = vmatprep.mubr.f32.mxu0 0.0
    %2513 = vmatmul.mubr.f32.gmra.mrb[0].mxu0 %v2446
    %v2514 = vpop.f32.mrb[0].mxu0
    %v2515 = vadd.f32 %v563, %v2514
    %v2516 = vpop.f32.mrb[0].mxu0
    %2517 = vdwg.mxu0
    %2519 = vrot.lane.b32.xlu0 %v2515, 110
    %v2520 = vpop.permute.xlu0 %2519
    %v2522 = vadd.f32 %v2515, %v2520
    %v2523 = vxor.u32 %v2522, 2147483648
    %v2524 = vmul.f32 %v2523, 1.442695
    %v2525 = vpow.pop %v2524
    %v2526 = vadd.f32 %v2525, 1.0
    %v2527 = vrcp.pop %v2526
    %v2528 = vmul.f32 1.0, %v2527
    %2529 = vrot.lane.b32.xlu0 %v2515, 98
    %v2530 = vpop.permute.xlu0 %2529
    %v2532 = vmul.f32 %v2528, %v2530
    %2534 = vrot.lane.b32.xlu0 %v2532, 12
    %v2535 = vpop.permute.xlu0 %2534
    %v2537 = vadd.f32 %v2515, %v2535
    %v2538 = vtanh.pop %v2537
    %v2539 = vsub.f32 1.0, %v2528
    %2541 = vrot.lane.b32.xlu0 %v2538, 122
    %v2542 = vpop.permute.xlu0 %2541
    %v2544 = vmul.f32 %v2539, %v2542
    %v2545 = vmul.f32 %v2528, %v2074
    %v2546 = vadd.f32 %v2544, %v2545
    %vm2547 = vcmp.eq.s32.totalorder %v63, 4
    %v2548 = vsel %vm2547, 1, 0
    %2549 = vset.pattern.permute.xlu0 0
    %2550 = vperm.xlu0 %2549, %v2548
    %v2551 = vpop.permute.xlu0 %2550
    %vm2552 = vcmp.eq.s32.totalorder %v2551, 1
    %v2553 = vsel %vm2552, %v2546, %v2081
    %v2554 = vrot.slane %v2401, 4
    %v2555 = vrot.slane %v2402, 3
    %v2556 = vsel %vm535, %v2555, %v2554
    %v2557 = vrot.slane %v2403, 2
    %v2558 = vsel %vm538, %v2557, %v2556
    %v2559 = vrot.slane %v2404, 1
    %v2560 = vsel %vm541, %v2559, %v2558
    %v2561 = vsel %vm544, %v2405, %v2560
    %v2562 = vrot.slane %v2406, 7
    %v2563 = vsel %vm547, %v2562, %v2561
    %v2564 = vrot.slane %v2407, 6
    %v2565 = vsel %vm550, %v2564, %v2563
    %v2566 = vrot.slane %v2408, 5
    %v2567 = vsel %vm553, %v2566, %v2565
    %2568 = vrot.lane.b32.xlu0 %v2567, 122
    %v2569 = vpop.permute.xlu0 %2568
    %v2570 = vsel %vm215, %v2569, 0
    %2572 = vmatprep.subr.mxu0 0.0
    %2573 = vmatpush1.msra.mxu0 %v221
    %2574 = vmatprep.subr.mxu0 0.0
    %2575 = vmatpush1.msra.mxu0 0.0
    %2576 = vmatprep.subr.mxu0 0.0
    %2577 = vmatpush1.msra.mxu0 0.0
    %2578 = vmatprep.subr.mxu0 0.0
    %2579 = vmatpush1.msra.mxu0 0.0
    %2580 = vmatprep.subr.mxu0 0.0
    %2581 = vmatpush1.msra.mxu0 0.0
    %2582 = vmatprep.subr.mxu0 0.0
    %2583 = vmatpush1.msra.mxu0 0.0
    %2584 = vmatprep.subr.mxu0 0.0
    %2585 = vmatpush1.msra.mxu0 0.0
    %2586 = vmatprep.subr.mxu0 0.0
    %2587 = vmatpush1.msra.mxu0 0.0
    %2588 = vmatprep.subr.mxu0 0.0
    %2589 = vmatpush1.msra.mxu0 0.0
    %2590 = vmatprep.subr.mxu0 0.0
    %2591 = vmatpush1.msra.mxu0 0.0
    %2592 = vmatprep.subr.mxu0 0.0
    %2593 = vmatpush1.msra.mxu0 0.0
    %2594 = vmatprep.subr.mxu0 0.0
    %2595 = vmatpush1.msra.mxu0 0.0
    %2596 = vmatprep.subr.mxu0 0.0
    %2597 = vmatpush1.msra.mxu0 0.0
    %2598 = vmatprep.subr.mxu0 0.0
    %2599 = vmatpush1.msra.mxu0 0.0
    %2600 = vmatprep.subr.mxu0 0.0
    %2601 = vmatpush1.msra.mxu0 0.0
    %2602 = vmatprep.subr.mxu0 0.0
    %2603 = vmatpush1.msra.mxu0 0.0
    %2604 = vmatprep.subr.mxu0 0.0
    %2605 = vmatpush1.msra.mxu0 0.0
    %2606 = vmatprep.subr.mxu0 0.0
    %2607 = vmatpush1.msra.mxu0 0.0
    %2608 = vmatprep.subr.mxu0 0.0
    %2609 = vmatpush1.msra.mxu0 0.0
    %2610 = vmatprep.subr.mxu0 0.0
    %2611 = vmatpush1.msra.mxu0 0.0
    %2612 = vmatprep.subr.mxu0 0.0
    %2613 = vmatpush1.msra.mxu0 0.0
    %2614 = vmatprep.subr.mxu0 0.0
    %2615 = vmatpush1.msra.mxu0 0.0
    %2616 = vmatprep.subr.mxu0 0.0
    %2617 = vmatpush1.msra.mxu0 0.0
    %2618 = vmatprep.subr.mxu0 0.0
    %2619 = vmatpush1.msra.mxu0 0.0
    %2620 = vmatprep.subr.mxu0 0.0
    %2621 = vmatpush1.msra.mxu0 0.0
    %2622 = vmatprep.subr.mxu0 0.0
    %2623 = vmatpush1.msra.mxu0 0.0
    %2624 = vmatprep.subr.mxu0 0.0
    %2625 = vmatpush1.msra.mxu0 0.0
    %2626 = vmatprep.subr.mxu0 0.0
    %2627 = vmatpush1.msra.mxu0 0.0
    %2628 = vmatprep.subr.mxu0 0.0
    %2629 = vmatpush1.msra.mxu0 0.0
    %2630 = vmatprep.subr.mxu0 0.0
    %2631 = vmatpush1.msra.mxu0 0.0
    %2632 = vmatprep.subr.mxu0 0.0
    %2633 = vmatpush1.msra.mxu0 0.0
    %2634 = vmatprep.subr.mxu0 0.0
    %2635 = vmatpush1.msra.mxu0 0.0
    %2636 = vmatprep.mubr.f32.mxu0 0.0
    %2637 = vmatmul.mubr.f32.gmra.mrb[0].mxu0 %v2570
    %v2638 = vpop.f32.mrb[0].mxu0
    %v2639 = vadd.f32 0.0, %v2638
    %v2640 = vpop.f32.mrb[0].mxu0
    %2641 = vdwg.mxu0
    %v2643 = vrot.slane %v2639, 3
    %v2644 = vrot.slane %v2639, 4
    %v2645 = vrot.slane %v2639, 5
    %v2646 = vrot.slane %v2639, 6
    %v2647 = vrot.slane %v2639, 7
    %v2648 = vrot.slane %v2639, 1
    %v2649 = vrot.slane %v2639, 2
    %v2658 = vadd.f32 %v177, %v2643
    %v2659 = vadd.f32 %v182, %v2644
    %v2660 = vadd.f32 %v187, %v2645
    %v2661 = vadd.f32 %v192, %v2646
    %v2662 = vadd.f32 %v197, %v2647
    %v2663 = vadd.f32 %v202, %v2639
    %v2664 = vadd.f32 %v207, %v2648
    %v2665 = vadd.f32 %v212, %v2649
    %v2666 = vxor.u32 %v2658, 2147483648
    %v2667 = vxor.u32 %v2659, 2147483648
    %v2668 = vxor.u32 %v2660, 2147483648
    %v2669 = vxor.u32 %v2661, 2147483648
    %v2670 = vxor.u32 %v2662, 2147483648
    %v2671 = vxor.u32 %v2663, 2147483648
    %v2672 = vxor.u32 %v2664, 2147483648
    %v2673 = vxor.u32 %v2665, 2147483648
    %v2674 = vmul.f32 %v2666, 1.442695
    %v2675 = vpow.pop %v2674
    %v2676 = vmul.f32 %v2667, 1.442695
    %v2677 = vpow.pop %v2676
    %v2678 = vmul.f32 %v2668, 1.442695
    %v2679 = vpow.pop %v2678
    %v2680 = vmul.f32 %v2669, 1.442695
    %v2681 = vpow.pop %v2680
    %v2682 = vmul.f32 %v2670, 1.442695
    %v2683 = vpow.pop %v2682
    %v2684 = vmul.f32 %v2671, 1.442695
    %v2685 = vpow.pop %v2684
    %v2686 = vmul.f32 %v2672, 1.442695
    %v2687 = vpow.pop %v2686
    %v2688 = vmul.f32 %v2673, 1.442695
    %v2689 = vpow.pop %v2688
    %v2690 = vadd.f32 %v2675, 1.0
    %v2691 = vadd.f32 %v2677, 1.0
    %v2692 = vadd.f32 %v2679, 1.0
    %v2693 = vadd.f32 %v2681, 1.0
    %v2694 = vadd.f32 %v2683, 1.0
    %v2695 = vadd.f32 %v2685, 1.0
    %v2696 = vadd.f32 %v2687, 1.0
    %v2697 = vadd.f32 %v2689, 1.0
    %v2698 = vrcp.pop %v2690
    %v2699 = vmul.f32 1.0, %v2698
    %v2700 = vrcp.pop %v2691
    %v2701 = vmul.f32 1.0, %v2700
    %v2702 = vrcp.pop %v2692
    %v2703 = vmul.f32 1.0, %v2702
    %v2704 = vrcp.pop %v2693
    %v2705 = vmul.f32 1.0, %v2704
    %v2706 = vrcp.pop %v2694
    %v2707 = vmul.f32 1.0, %v2706
    %v2708 = vrcp.pop %v2695
    %v2709 = vmul.f32 1.0, %v2708
    %v2710 = vrcp.pop %v2696
    %v2711 = vmul.f32 1.0, %v2710
    %v2712 = vrcp.pop %v2697
    %v2713 = vmul.f32 1.0, %v2712
    %v2714 = vadd.f32 %v2639, %v371
    %v2716 = vrot.slane %v2714, 3
    %v2717 = vrot.slane %v2714, 4
    %v2718 = vrot.slane %v2714, 5
    %v2719 = vrot.slane %v2714, 6
    %v2720 = vrot.slane %v2714, 7
    %v2721 = vrot.slane %v2714, 1
    %v2722 = vrot.slane %v2714, 2
    %2723 = vrot.lane.b32.xlu0 %v2716, 116
    %v2724 = vpop.permute.xlu0 %2723
    %2725 = vrot.lane.b32.xlu0 %v2717, 116
    %v2726 = vpop.permute.xlu0 %2725
    %2727 = vrot.lane.b32.xlu0 %v2718, 116
    %v2728 = vpop.permute.xlu0 %2727
    %2729 = vrot.lane.b32.xlu0 %v2719, 116
    %v2730 = vpop.permute.xlu0 %2729
    %2731 = vrot.lane.b32.xlu0 %v2720, 116
    %v2732 = vpop.permute.xlu0 %2731
    %2733 = vrot.lane.b32.xlu0 %v2714, 116
    %v2734 = vpop.permute.xlu0 %2733
    %2735 = vrot.lane.b32.xlu0 %v2721, 116
    %v2736 = vpop.permute.xlu0 %2735
    %2737 = vrot.lane.b32.xlu0 %v2722, 116
    %v2738 = vpop.permute.xlu0 %2737
    %v2747 = vmul.f32 %v2699, %v2724
    %v2748 = vmul.f32 %v2701, %v2726
    %v2749 = vmul.f32 %v2703, %v2728
    %v2750 = vmul.f32 %v2705, %v2730
    %v2751 = vmul.f32 %v2707, %v2732
    %v2752 = vmul.f32 %v2709, %v2734
    %v2753 = vmul.f32 %v2711, %v2736
    %v2754 = vmul.f32 %v2713, %v2738
    %2763 = vrot.lane.b32.xlu0 %v2747, 12
    %v2764 = vpop.permute.xlu0 %2763
    %2765 = vrot.lane.b32.xlu0 %v2748, 12
    %v2766 = vpop.permute.xlu0 %2765
    %2767 = vrot.lane.b32.xlu0 %v2749, 12
    %v2768 = vpop.permute.xlu0 %2767
    %2769 = vrot.lane.b32.xlu0 %v2750, 12
    %v2770 = vpop.permute.xlu0 %2769
    %2771 = vrot.lane.b32.xlu0 %v2751, 12
    %v2772 = vpop.permute.xlu0 %2771
    %2773 = vrot.lane.b32.xlu0 %v2752, 12
    %v2774 = vpop.permute.xlu0 %2773
    %2775 = vrot.lane.b32.xlu0 %v2753, 12
    %v2776 = vpop.permute.xlu0 %2775
    %2777 = vrot.lane.b32.xlu0 %v2754, 12
    %v2778 = vpop.permute.xlu0 %2777
    %v2787 = vadd.f32 %v177, %v2764
    %v2788 = vadd.f32 %v182, %v2766
    %v2789 = vadd.f32 %v187, %v2768
    %v2790 = vadd.f32 %v192, %v2770
    %v2791 = vadd.f32 %v197, %v2772
    %v2792 = vadd.f32 %v202, %v2774
    %v2793 = vadd.f32 %v207, %v2776
    %v2794 = vadd.f32 %v212, %v2778
    %v2795 = vtanh.pop %v2787
    %v2796 = vtanh.pop %v2788
    %v2797 = vtanh.pop %v2789
    %v2798 = vtanh.pop %v2790
    %v2799 = vtanh.pop %v2791
    %v2800 = vtanh.pop %v2792
    %v2801 = vtanh.pop %v2793
    %v2802 = vtanh.pop %v2794
    %v2803 = vsub.f32 1.0, %v2699
    %v2804 = vsub.f32 1.0, %v2701
    %v2805 = vsub.f32 1.0, %v2703
    %v2806 = vsub.f32 1.0, %v2705
    %v2807 = vsub.f32 1.0, %v2707
    %v2808 = vsub.f32 1.0, %v2709
    %v2809 = vsub.f32 1.0, %v2711
    %v2810 = vsub.f32 1.0, %v2713
    %2819 = vrot.lane.b32.xlu0 %v2795, 122
    %v2820 = vpop.permute.xlu0 %2819
    %2821 = vrot.lane.b32.xlu0 %v2796, 122
    %v2822 = vpop.permute.xlu0 %2821
    %2823 = vrot.lane.b32.xlu0 %v2797, 122
    %v2824 = vpop.permute.xlu0 %2823
    %2825 = vrot.lane.b32.xlu0 %v2798, 122
    %v2826 = vpop.permute.xlu0 %2825
    %2827 = vrot.lane.b32.xlu0 %v2799, 122
    %v2828 = vpop.permute.xlu0 %2827
    %2829 = vrot.lane.b32.xlu0 %v2800, 122
    %v2830 = vpop.permute.xlu0 %2829
    %2831 = vrot.lane.b32.xlu0 %v2801, 122
    %v2832 = vpop.permute.xlu0 %2831
    %2833 = vrot.lane.b32.xlu0 %v2802, 122
    %v2834 = vpop.permute.xlu0 %2833
    %v2843 = vmul.f32 %v2803, %v2820
    %v2844 = vmul.f32 %v2804, %v2822
    %v2845 = vmul.f32 %v2805, %v2824
    %v2846 = vmul.f32 %v2806, %v2826
    %v2847 = vmul.f32 %v2807, %v2828
    %v2848 = vmul.f32 %v2808, %v2830
    %v2849 = vmul.f32 %v2809, %v2832
    %v2850 = vmul.f32 %v2810, %v2834
    %v2851 = vrot.slane %v2401, 7
    %v2852 = vrot.slane %v2403, 7
    %v2853 = vrot.slane %v2404, 7
    %v2854 = vrot.slane %v2405, 7
    %v2855 = vrot.slane %v2407, 7
    %v2856 = vrot.slane %v2408, 7
    %v2865 = vmul.f32 %v2699, %v2851
    %v2866 = vmul.f32 %v2701, %v2417
    %v2867 = vmul.f32 %v2703, %v2852
    %v2868 = vmul.f32 %v2705, %v2853
    %v2869 = vmul.f32 %v2707, %v2854
    %v2870 = vmul.f32 %v2709, %v2562
    %v2871 = vmul.f32 %v2711, %v2855
    %v2872 = vmul.f32 %v2713, %v2856
    %v2873 = vadd.f32 %v2843, %v2865
    %v2874 = vadd.f32 %v2844, %v2866
    %v2875 = vadd.f32 %v2845, %v2867
    %v2876 = vadd.f32 %v2846, %v2868
    %v2877 = vadd.f32 %v2847, %v2869
    %v2878 = vadd.f32 %v2848, %v2870
    %v2879 = vadd.f32 %v2849, %v2871
    %v2880 = vadd.f32 %v2850, %v2872
    %v2889 = vrot.slane %v2874, 7
    %v2890 = vsel %vm550, %v2889, %v2873
    %v2891 = vrot.slane %v2875, 6
    %v2892 = vsel %vm553, %v2891, %v2890
    %v2893 = vrot.slane %v2876, 5
    %v2894 = vrot.slane %v2877, 4
    %v2895 = vsel %vm535, %v2894, %v2893
    %v2896 = vrot.slane %v2878, 3
    %v2897 = vsel %vm538, %v2896, %v2895
    %v2898 = vrot.slane %v2879, 2
    %v2899 = vsel %vm541, %v2898, %v2897
    %v2900 = vrot.slane %v2880, 1
    %v2901 = vsel %vm544, %v2900, %v2899
    %2902 = vrot.lane.b32.xlu0 %v2892, 122
    %v2903 = vpop.permute.xlu0 %2902
    %2904 = vrot.lane.b32.xlu0 %v2901, 122
    %v2905 = vpop.permute.xlu0 %2904
    %v2909 = vrot.slane %v2546, 3
    %v2911 = vsel %vm215, %v2903, %v2909
    %v2912 = vsel %vm215, %v2905, %v2909
    %vm2915 = vcmask 1042432
    %v2916 = vrot.slane %v2911, 5
    %v2917 = vrot.slane %v2912, 5
    %v2918 = vsel %vm2915, %v2916, %v2917
    %v2919 = vsel %vm565, %v2918, 0
    %2921 = vmatprep.subr.mxu0 0.0
    %2922 = vmatpush1.msra.mxu0 %v68
    %2923 = vmatprep.subr.mxu0 0.0
    %2924 = vmatpush1.msra.mxu0 %v571
    %2925 = vmatprep.subr.mxu0 0.0
    %2926 = vmatpush1.msra.mxu0 0.0
    %2927 = vmatprep.subr.mxu0 0.0
    %2928 = vmatpush1.msra.mxu0 0.0
    %2929 = vmatprep.subr.mxu0 0.0
    %2930 = vmatpush1.msra.mxu0 0.0
    %2931 = vmatprep.subr.mxu0 0.0
    %2932 = vmatpush1.msra.mxu0 0.0
    %2933 = vmatprep.subr.mxu0 0.0
    %2934 = vmatpush1.msra.mxu0 0.0
    %2935 = vmatprep.subr.mxu0 0.0
    %2936 = vmatpush1.msra.mxu0 0.0
    %2937 = vmatprep.subr.mxu0 0.0
    %2938 = vmatpush1.msra.mxu0 0.0
    %2939 = vmatprep.subr.mxu0 0.0
    %2940 = vmatpush1.msra.mxu0 0.0
    %2941 = vmatprep.subr.mxu0 0.0
    %2942 = vmatpush1.msra.mxu0 0.0
    %2943 = vmatprep.subr.mxu0 0.0
    %2944 = vmatpush1.msra.mxu0 0.0
    %2945 = vmatprep.subr.mxu0 0.0
    %2946 = vmatpush1.msra.mxu0 0.0
    %2947 = vmatprep.subr.mxu0 0.0
    %2948 = vmatpush1.msra.mxu0 0.0
    %2949 = vmatprep.subr.mxu0 0.0
    %2950 = vmatpush1.msra.mxu0 0.0
    %2951 = vmatprep.subr.mxu0 0.0
    %2952 = vmatpush1.msra.mxu0 0.0
    %2953 = vmatprep.subr.mxu0 0.0
    %2954 = vmatpush1.msra.mxu0 0.0
    %2955 = vmatprep.subr.mxu0 0.0
    %2956 = vmatpush1.msra.mxu0 0.0
    %2957 = vmatprep.subr.mxu0 0.0
    %2958 = vmatpush1.msra.mxu0 0.0
    %2959 = vmatprep.subr.mxu0 0.0
    %2960 = vmatpush1.msra.mxu0 0.0
    %2961 = vmatprep.subr.mxu0 0.0
    %2962 = vmatpush1.msra.mxu0 0.0
    %2963 = vmatprep.subr.mxu0 0.0
    %2964 = vmatpush1.msra.mxu0 0.0
    %2965 = vmatprep.subr.mxu0 0.0
    %2966 = vmatpush1.msra.mxu0 0.0
    %2967 = vmatprep.subr.mxu0 0.0
    %2968 = vmatpush1.msra.mxu0 0.0
    %2969 = vmatprep.subr.mxu0 0.0
    %2970 = vmatpush1.msra.mxu0 0.0
    %2971 = vmatprep.subr.mxu0 0.0
    %2972 = vmatpush1.msra.mxu0 0.0
    %2973 = vmatprep.subr.mxu0 0.0
    %2974 = vmatpush1.msra.mxu0 0.0
    %2975 = vmatprep.subr.mxu0 0.0
    %2976 = vmatpush1.msra.mxu0 0.0
    %2977 = vmatprep.subr.mxu0 0.0
    %2978 = vmatpush1.msra.mxu0 0.0
    %2979 = vmatprep.subr.mxu0 0.0
    %2980 = vmatpush1.msra.mxu0 0.0
    %2981 = vmatprep.subr.mxu0 0.0
    %2982 = vmatpush1.msra.mxu0 0.0
    %2983 = vmatprep.subr.mxu0 0.0
    %2984 = vmatpush1.msra.mxu0 0.0
    %2985 = vmatprep.mubr.f32.mxu0 0.0
    %2986 = vmatmul.mubr.f32.gmra.mrb[0].mxu0 %v2919
    %v2987 = vpop.f32.mrb[0].mxu0
    %v2988 = vadd.f32 %v563, %v2987
    %v2989 = vpop.f32.mrb[0].mxu0
    %2990 = vdwg.mxu0
    %2992 = vrot.lane.b32.xlu0 %v2988, 110
    %v2993 = vpop.permute.xlu0 %2992
    %v2995 = vadd.f32 %v2988, %v2993
    %v2996 = vxor.u32 %v2995, 2147483648
    %v2997 = vmul.f32 %v2996, 1.442695
    %v2998 = vpow.pop %v2997
    %v2999 = vadd.f32 %v2998, 1.0
    %v3000 = vrcp.pop %v2999
    %v3001 = vmul.f32 1.0, %v3000
    %3002 = vrot.lane.b32.xlu0 %v2988, 98
    %v3003 = vpop.permute.xlu0 %3002
    %v3005 = vmul.f32 %v3001, %v3003
    %3007 = vrot.lane.b32.xlu0 %v3005, 12
    %v3008 = vpop.permute.xlu0 %3007
    %v3010 = vadd.f32 %v2988, %v3008
    %v3011 = vtanh.pop %v3010
    %v3012 = vsub.f32 1.0, %v3001
    %3014 = vrot.lane.b32.xlu0 %v3011, 122
    %v3015 = vpop.permute.xlu0 %3014
    %v3017 = vmul.f32 %v3012, %v3015
    %v3018 = vmul.f32 %v3001, %v2546
    %v3019 = vadd.f32 %v3017, %v3018
    %vm3020 = vcmp.eq.s32.totalorder %v63, 5
    %v3021 = vsel %vm3020, 1, 0
    %3022 = vset.pattern.permute.xlu0 0
    %3023 = vperm.xlu0 %3022, %v3021
    %v3024 = vpop.permute.xlu0 %3023
    %vm3025 = vcmp.eq.s32.totalorder %v3024, 1
    %v3026 = vsel %vm3025, %v3019, %v2553
    %v3027 = vrot.slane %v2873, 5
    %v3028 = vrot.slane %v2874, 4
    %v3029 = vsel %vm535, %v3028, %v3027
    %v3030 = vrot.slane %v2875, 3
    %v3031 = vsel %vm538, %v3030, %v3029
    %v3032 = vrot.slane %v2876, 2
    %v3033 = vsel %vm541, %v3032, %v3031
    %v3034 = vrot.slane %v2877, 1
    %v3035 = vsel %vm544, %v3034, %v3033
    %v3036 = vsel %vm547, %v2878, %v3035
    %v3037 = vrot.slane %v2879, 7
    %v3038 = vsel %vm550, %v3037, %v3036
    %v3039 = vrot.slane %v2880, 6
    %v3040 = vsel %vm553, %v3039, %v3038
    %3041 = vrot.lane.b32.xlu0 %v3040, 122
    %v3042 = vpop.permute.xlu0 %3041
    %v3043 = vsel %vm215, %v3042, 0
    %3045 = vmatprep.subr.mxu0 0.0
    %3046 = vmatpush1.msra.mxu0 %v221
    %3047 = vmatprep.subr.mxu0 0.0
    %3048 = vmatpush1.msra.mxu0 0.0
    %3049 = vmatprep.subr.mxu0 0.0
    %3050 = vmatpush1.msra.mxu0 0.0
    %3051 = vmatprep.subr.mxu0 0.0
    %3052 = vmatpush1.msra.mxu0 0.0
    %3053 = vmatprep.subr.mxu0 0.0
    %3054 = vmatpush1.msra.mxu0 0.0
    %3055 = vmatprep.subr.mxu0 0.0
    %3056 = vmatpush1.msra.mxu0 0.0
    %3057 = vmatprep.subr.mxu0 0.0
    %3058 = vmatpush1.msra.mxu0 0.0
    %3059 = vmatprep.subr.mxu0 0.0
    %3060 = vmatpush1.msra.mxu0 0.0
    %3061 = vmatprep.subr.mxu0 0.0
    %3062 = vmatpush1.msra.mxu0 0.0
    %3063 = vmatprep.subr.mxu0 0.0
    %3064 = vmatpush1.msra.mxu0 0.0
    %3065 = vmatprep.subr.mxu0 0.0
    %3066 = vmatpush1.msra.mxu0 0.0
    %3067 = vmatprep.subr.mxu0 0.0
    %3068 = vmatpush1.msra.mxu0 0.0
    %3069 = vmatprep.subr.mxu0 0.0
    %3070 = vmatpush1.msra.mxu0 0.0
    %3071 = vmatprep.subr.mxu0 0.0
    %3072 = vmatpush1.msra.mxu0 0.0
    %3073 = vmatprep.subr.mxu0 0.0
    %3074 = vmatpush1.msra.mxu0 0.0
    %3075 = vmatprep.subr.mxu0 0.0
    %3076 = vmatpush1.msra.mxu0 0.0
    %3077 = vmatprep.subr.mxu0 0.0
    %3078 = vmatpush1.msra.mxu0 0.0
    %3079 = vmatprep.subr.mxu0 0.0
    %3080 = vmatpush1.msra.mxu0 0.0
    %3081 = vmatprep.subr.mxu0 0.0
    %3082 = vmatpush1.msra.mxu0 0.0
    %3083 = vmatprep.subr.mxu0 0.0
    %3084 = vmatpush1.msra.mxu0 0.0
    %3085 = vmatprep.subr.mxu0 0.0
    %3086 = vmatpush1.msra.mxu0 0.0
    %3087 = vmatprep.subr.mxu0 0.0
    %3088 = vmatpush1.msra.mxu0 0.0
    %3089 = vmatprep.subr.mxu0 0.0
    %3090 = vmatpush1.msra.mxu0 0.0
    %3091 = vmatprep.subr.mxu0 0.0
    %3092 = vmatpush1.msra.mxu0 0.0
    %3093 = vmatprep.subr.mxu0 0.0
    %3094 = vmatpush1.msra.mxu0 0.0
    %3095 = vmatprep.subr.mxu0 0.0
    %3096 = vmatpush1.msra.mxu0 0.0
    %3097 = vmatprep.subr.mxu0 0.0
    %3098 = vmatpush1.msra.mxu0 0.0
    %3099 = vmatprep.subr.mxu0 0.0
    %3100 = vmatpush1.msra.mxu0 0.0
    %3101 = vmatprep.subr.mxu0 0.0
    %3102 = vmatpush1.msra.mxu0 0.0
    %3103 = vmatprep.subr.mxu0 0.0
    %3104 = vmatpush1.msra.mxu0 0.0
    %3105 = vmatprep.subr.mxu0 0.0
    %3106 = vmatpush1.msra.mxu0 0.0
    %3107 = vmatprep.subr.mxu0 0.0
    %3108 = vmatpush1.msra.mxu0 0.0
    %3109 = vmatprep.mubr.f32.mxu0 0.0
    %3110 = vmatmul.mubr.f32.gmra.mrb[0].mxu0 %v3043
    %v3111 = vpop.f32.mrb[0].mxu0
    %v3112 = vadd.f32 0.0, %v3111
    %v3113 = vpop.f32.mrb[0].mxu0
    %3114 = vdwg.mxu0
    %v3116 = vrot.slane %v3112, 2
    %v3117 = vrot.slane %v3112, 3
    %v3118 = vrot.slane %v3112, 4
    %v3119 = vrot.slane %v3112, 5
    %v3120 = vrot.slane %v3112, 6
    %v3121 = vrot.slane %v3112, 7
    %v3122 = vrot.slane %v3112, 1
    %v3131 = vadd.f32 %v177, %v3116
    %v3132 = vadd.f32 %v182, %v3117
    %v3133 = vadd.f32 %v187, %v3118
    %v3134 = vadd.f32 %v192, %v3119
    %v3135 = vadd.f32 %v197, %v3120
    %v3136 = vadd.f32 %v202, %v3121
    %v3137 = vadd.f32 %v207, %v3112
    %v3138 = vadd.f32 %v212, %v3122
    %v3139 = vxor.u32 %v3131, 2147483648
    %v3140 = vxor.u32 %v3132, 2147483648
    %v3141 = vxor.u32 %v3133, 2147483648
    %v3142 = vxor.u32 %v3134, 2147483648
    %v3143 = vxor.u32 %v3135, 2147483648
    %v3144 = vxor.u32 %v3136, 2147483648
    %v3145 = vxor.u32 %v3137, 2147483648
    %v3146 = vxor.u32 %v3138, 2147483648
    %v3147 = vmul.f32 %v3139, 1.442695
    %v3148 = vpow.pop %v3147
    %v3149 = vmul.f32 %v3140, 1.442695
    %v3150 = vpow.pop %v3149
    %v3151 = vmul.f32 %v3141, 1.442695
    %v3152 = vpow.pop %v3151
    %v3153 = vmul.f32 %v3142, 1.442695
    %v3154 = vpow.pop %v3153
    %v3155 = vmul.f32 %v3143, 1.442695
    %v3156 = vpow.pop %v3155
    %v3157 = vmul.f32 %v3144, 1.442695
    %v3158 = vpow.pop %v3157
    %v3159 = vmul.f32 %v3145, 1.442695
    %v3160 = vpow.pop %v3159
    %v3161 = vmul.f32 %v3146, 1.442695
    %v3162 = vpow.pop %v3161
    %v3163 = vadd.f32 %v3148, 1.0
    %v3164 = vadd.f32 %v3150, 1.0
    %v3165 = vadd.f32 %v3152, 1.0
    %v3166 = vadd.f32 %v3154, 1.0
    %v3167 = vadd.f32 %v3156, 1.0
    %v3168 = vadd.f32 %v3158, 1.0
    %v3169 = vadd.f32 %v3160, 1.0
    %v3170 = vadd.f32 %v3162, 1.0
    %v3171 = vrcp.pop %v3163
    %v3172 = vmul.f32 1.0, %v3171
    %v3173 = vrcp.pop %v3164
    %v3174 = vmul.f32 1.0, %v3173
    %v3175 = vrcp.pop %v3165
    %v3176 = vmul.f32 1.0, %v3175
    %v3177 = vrcp.pop %v3166
    %v3178 = vmul.f32 1.0, %v3177
    %v3179 = vrcp.pop %v3167
    %v3180 = vmul.f32 1.0, %v3179
    %v3181 = vrcp.pop %v3168
    %v3182 = vmul.f32 1.0, %v3181
    %v3183 = vrcp.pop %v3169
    %v3184 = vmul.f32 1.0, %v3183
    %v3185 = vrcp.pop %v3170
    %v3186 = vmul.f32 1.0, %v3185
    %v3187 = vadd.f32 %v3112, %v371
    %v3189 = vrot.slane %v3187, 2
    %v3190 = vrot.slane %v3187, 3
    %v3191 = vrot.slane %v3187, 4
    %v3192 = vrot.slane %v3187, 5
    %v3193 = vrot.slane %v3187, 6
    %v3194 = vrot.slane %v3187, 7
    %v3195 = vrot.slane %v3187, 1
    %3196 = vrot.lane.b32.xlu0 %v3189, 116
    %v3197 = vpop.permute.xlu0 %3196
    %3198 = vrot.lane.b32.xlu0 %v3190, 116
    %v3199 = vpop.permute.xlu0 %3198
    %3200 = vrot.lane.b32.xlu0 %v3191, 116
    %v3201 = vpop.permute.xlu0 %3200
    %3202 = vrot.lane.b32.xlu0 %v3192, 116
    %v3203 = vpop.permute.xlu0 %3202
    %3204 = vrot.lane.b32.xlu0 %v3193, 116
    %v3205 = vpop.permute.xlu0 %3204
    %3206 = vrot.lane.b32.xlu0 %v3194, 116
    %v3207 = vpop.permute.xlu0 %3206
    %3208 = vrot.lane.b32.xlu0 %v3187, 116
    %v3209 = vpop.permute.xlu0 %3208
    %3210 = vrot.lane.b32.xlu0 %v3195, 116
    %v3211 = vpop.permute.xlu0 %3210
    %v3220 = vmul.f32 %v3172, %v3197
    %v3221 = vmul.f32 %v3174, %v3199
    %v3222 = vmul.f32 %v3176, %v3201
    %v3223 = vmul.f32 %v3178, %v3203
    %v3224 = vmul.f32 %v3180, %v3205
    %v3225 = vmul.f32 %v3182, %v3207
    %v3226 = vmul.f32 %v3184, %v3209
    %v3227 = vmul.f32 %v3186, %v3211
    %3236 = vrot.lane.b32.xlu0 %v3220, 12
    %v3237 = vpop.permute.xlu0 %3236
    %3238 = vrot.lane.b32.xlu0 %v3221, 12
    %v3239 = vpop.permute.xlu0 %3238
    %3240 = vrot.lane.b32.xlu0 %v3222, 12
    %v3241 = vpop.permute.xlu0 %3240
    %3242 = vrot.lane.b32.xlu0 %v3223, 12
    %v3243 = vpop.permute.xlu0 %3242
    %3244 = vrot.lane.b32.xlu0 %v3224, 12
    %v3245 = vpop.permute.xlu0 %3244
    %3246 = vrot.lane.b32.xlu0 %v3225, 12
    %v3247 = vpop.permute.xlu0 %3246
    %3248 = vrot.lane.b32.xlu0 %v3226, 12
    %v3249 = vpop.permute.xlu0 %3248
    %3250 = vrot.lane.b32.xlu0 %v3227, 12
    %v3251 = vpop.permute.xlu0 %3250
    %v3260 = vadd.f32 %v177, %v3237
    %v3261 = vadd.f32 %v182, %v3239
    %v3262 = vadd.f32 %v187, %v3241
    %v3263 = vadd.f32 %v192, %v3243
    %v3264 = vadd.f32 %v197, %v3245
    %v3265 = vadd.f32 %v202, %v3247
    %v3266 = vadd.f32 %v207, %v3249
    %v3267 = vadd.f32 %v212, %v3251
    %v3268 = vtanh.pop %v3260
    %v3269 = vtanh.pop %v3261
    %v3270 = vtanh.pop %v3262
    %v3271 = vtanh.pop %v3263
    %v3272 = vtanh.pop %v3264
    %v3273 = vtanh.pop %v3265
    %v3274 = vtanh.pop %v3266
    %v3275 = vtanh.pop %v3267
    %v3276 = vsub.f32 1.0, %v3172
    %v3277 = vsub.f32 1.0, %v3174
    %v3278 = vsub.f32 1.0, %v3176
    %v3279 = vsub.f32 1.0, %v3178
    %v3280 = vsub.f32 1.0, %v3180
    %v3281 = vsub.f32 1.0, %v3182
    %v3282 = vsub.f32 1.0, %v3184
    %v3283 = vsub.f32 1.0, %v3186
    %3292 = vrot.lane.b32.xlu0 %v3268, 122
    %v3293 = vpop.permute.xlu0 %3292
    %3294 = vrot.lane.b32.xlu0 %v3269, 122
    %v3295 = vpop.permute.xlu0 %3294
    %3296 = vrot.lane.b32.xlu0 %v3270, 122
    %v3297 = vpop.permute.xlu0 %3296
    %3298 = vrot.lane.b32.xlu0 %v3271, 122
    %v3299 = vpop.permute.xlu0 %3298
    %3300 = vrot.lane.b32.xlu0 %v3272, 122
    %v3301 = vpop.permute.xlu0 %3300
    %3302 = vrot.lane.b32.xlu0 %v3273, 122
    %v3303 = vpop.permute.xlu0 %3302
    %3304 = vrot.lane.b32.xlu0 %v3274, 122
    %v3305 = vpop.permute.xlu0 %3304
    %3306 = vrot.lane.b32.xlu0 %v3275, 122
    %v3307 = vpop.permute.xlu0 %3306
    %v3316 = vmul.f32 %v3276, %v3293
    %v3317 = vmul.f32 %v3277, %v3295
    %v3318 = vmul.f32 %v3278, %v3297
    %v3319 = vmul.f32 %v3279, %v3299
    %v3320 = vmul.f32 %v3280, %v3301
    %v3321 = vmul.f32 %v3281, %v3303
    %v3322 = vmul.f32 %v3282, %v3305
    %v3323 = vmul.f32 %v3283, %v3307
    %v3324 = vrot.slane %v2873, 7
    %v3325 = vrot.slane %v2875, 7
    %v3326 = vrot.slane %v2876, 7
    %v3327 = vrot.slane %v2877, 7
    %v3328 = vrot.slane %v2878, 7
    %v3329 = vrot.slane %v2880, 7
    %v3338 = vmul.f32 %v3172, %v3324
    %v3339 = vmul.f32 %v3174, %v2889
    %v3340 = vmul.f32 %v3176, %v3325
    %v3341 = vmul.f32 %v3178, %v3326
    %v3342 = vmul.f32 %v3180, %v3327
    %v3343 = vmul.f32 %v3182, %v3328
    %v3344 = vmul.f32 %v3184, %v3037
    %v3345 = vmul.f32 %v3186, %v3329
    %v3346 = vadd.f32 %v3316, %v3338
    %v3347 = vadd.f32 %v3317, %v3339
    %v3348 = vadd.f32 %v3318, %v3340
    %v3349 = vadd.f32 %v3319, %v3341
    %v3350 = vadd.f32 %v3320, %v3342
    %v3351 = vadd.f32 %v3321, %v3343
    %v3352 = vadd.f32 %v3322, %v3344
    %v3353 = vadd.f32 %v3323, %v3345
    %v3362 = vrot.slane %v3347, 7
    %v3363 = vsel %vm553, %v3362, %v3346
    %v3364 = vrot.slane %v3348, 6
    %v3365 = vrot.slane %v3349, 5
    %v3366 = vsel %vm535, %v3365, %v3364
    %v3367 = vrot.slane %v3350, 4
    %v3368 = vsel %vm538, %v3367, %v3366
    %v3369 = vrot.slane %v3351, 3
    %v3370 = vsel %vm541, %v3369, %v3368
    %v3371 = vrot.slane %v3352, 2
    %v3372 = vsel %vm544, %v3371, %v3370
    %v3373 = vrot.slane %v3353, 1
    %v3374 = vsel %vm547, %v3373, %v3372
    %3375 = vrot.lane.b32.xlu0 %v3363, 122
    %v3376 = vpop.permute.xlu0 %3375
    %3377 = vrot.lane.b32.xlu0 %v3374, 122
    %v3378 = vpop.permute.xlu0 %3377
    %v3382 = vrot.slane %v3019, 2
    %v3384 = vsel %vm215, %v3376, %v3382
    %v3385 = vsel %vm215, %v3378, %v3382
    %vm3388 = vcmask 1041408
    %v3389 = vrot.slane %v3384, 6
    %v3390 = vrot.slane %v3385, 6
    %v3391 = vsel %vm3388, %v3389, %v3390
    %v3392 = vsel %vm565, %v3391, 0
    %3394 = vmatprep.subr.mxu0 0.0
    %3395 = vmatpush1.msra.mxu0 %v68
    %3396 = vmatprep.subr.mxu0 0.0
    %3397 = vmatpush1.msra.mxu0 %v571
    %3398 = vmatprep.subr.mxu0 0.0
    %3399 = vmatpush1.msra.mxu0 0.0
    %3400 = vmatprep.subr.mxu0 0.0
    %3401 = vmatpush1.msra.mxu0 0.0
    %3402 = vmatprep.subr.mxu0 0.0
    %3403 = vmatpush1.msra.mxu0 0.0
    %3404 = vmatprep.subr.mxu0 0.0
    %3405 = vmatpush1.msra.mxu0 0.0
    %3406 = vmatprep.subr.mxu0 0.0
    %3407 = vmatpush1.msra.mxu0 0.0
    %3408 = vmatprep.subr.mxu0 0.0
    %3409 = vmatpush1.msra.mxu0 0.0
    %3410 = vmatprep.subr.mxu0 0.0
    %3411 = vmatpush1.msra.mxu0 0.0
    %3412 = vmatprep.subr.mxu0 0.0
    %3413 = vmatpush1.msra.mxu0 0.0
    %3414 = vmatprep.subr.mxu0 0.0
    %3415 = vmatpush1.msra.mxu0 0.0
    %3416 = vmatprep.subr.mxu0 0.0
    %3417 = vmatpush1.msra.mxu0 0.0
    %3418 = vmatprep.subr.mxu0 0.0
    %3419 = vmatpush1.msra.mxu0 0.0
    %3420 = vmatprep.subr.mxu0 0.0
    %3421 = vmatpush1.msra.mxu0 0.0
    %3422 = vmatprep.subr.mxu0 0.0
    %3423 = vmatpush1.msra.mxu0 0.0
    %3424 = vmatprep.subr.mxu0 0.0
    %3425 = vmatpush1.msra.mxu0 0.0
    %3426 = vmatprep.subr.mxu0 0.0
    %3427 = vmatpush1.msra.mxu0 0.0
    %3428 = vmatprep.subr.mxu0 0.0
    %3429 = vmatpush1.msra.mxu0 0.0
    %3430 = vmatprep.subr.mxu0 0.0
    %3431 = vmatpush1.msra.mxu0 0.0
    %3432 = vmatprep.subr.mxu0 0.0
    %3433 = vmatpush1.msra.mxu0 0.0
    %3434 = vmatprep.subr.mxu0 0.0
    %3435 = vmatpush1.msra.mxu0 0.0
    %3436 = vmatprep.subr.mxu0 0.0
    %3437 = vmatpush1.msra.mxu0 0.0
    %3438 = vmatprep.subr.mxu0 0.0
    %3439 = vmatpush1.msra.mxu0 0.0
    %3440 = vmatprep.subr.mxu0 0.0
    %3441 = vmatpush1.msra.mxu0 0.0
    %3442 = vmatprep.subr.mxu0 0.0
    %3443 = vmatpush1.msra.mxu0 0.0
    %3444 = vmatprep.subr.mxu0 0.0
    %3445 = vmatpush1.msra.mxu0 0.0
    %3446 = vmatprep.subr.mxu0 0.0
    %3447 = vmatpush1.msra.mxu0 0.0
    %3448 = vmatprep.subr.mxu0 0.0
    %3449 = vmatpush1.msra.mxu0 0.0
    %3450 = vmatprep.subr.mxu0 0.0
    %3451 = vmatpush1.msra.mxu0 0.0
    %3452 = vmatprep.subr.mxu0 0.0
    %3453 = vmatpush1.msra.mxu0 0.0
    %3454 = vmatprep.subr.mxu0 0.0
    %3455 = vmatpush1.msra.mxu0 0.0
    %3456 = vmatprep.subr.mxu0 0.0
    %3457 = vmatpush1.msra.mxu0 0.0
    %3458 = vmatprep.mubr.f32.mxu0 0.0
    %3459 = vmatmul.mubr.f32.gmra.mrb[0].mxu0 %v3392
    %v3460 = vpop.f32.mrb[0].mxu0
    %v3461 = vadd.f32 %v563, %v3460
    %v3462 = vpop.f32.mrb[0].mxu0
    %3463 = vdwg.mxu0
    %3465 = vrot.lane.b32.xlu0 %v3461, 110
    %v3466 = vpop.permute.xlu0 %3465
    %v3468 = vadd.f32 %v3461, %v3466
    %v3469 = vxor.u32 %v3468, 2147483648
    %v3470 = vmul.f32 %v3469, 1.442695
    %v3471 = vpow.pop %v3470
    %v3472 = vadd.f32 %v3471, 1.0
    %v3473 = vrcp.pop %v3472
    %v3474 = vmul.f32 1.0, %v3473
    %3475 = vrot.lane.b32.xlu0 %v3461, 98
    %v3476 = vpop.permute.xlu0 %3475
    %v3478 = vmul.f32 %v3474, %v3476
    %3480 = vrot.lane.b32.xlu0 %v3478, 12
    %v3481 = vpop.permute.xlu0 %3480
    %v3483 = vadd.f32 %v3461, %v3481
    %v3484 = vtanh.pop %v3483
    %v3485 = vsub.f32 1.0, %v3474
    %3487 = vrot.lane.b32.xlu0 %v3484, 122
    %v3488 = vpop.permute.xlu0 %3487
    %v3490 = vmul.f32 %v3485, %v3488
    %v3491 = vmul.f32 %v3474, %v3019
    %v3492 = vadd.f32 %v3490, %v3491
    %vm3493 = vcmp.eq.s32.totalorder %v63, 6
    %v3494 = vsel %vm3493, 1, 0
    %3495 = vset.pattern.permute.xlu0 0
    %3496 = vperm.xlu0 %3495, %v3494
    %v3497 = vpop.permute.xlu0 %3496
    %vm3498 = vcmp.eq.s32.totalorder %v3497, 1
    %v3499 = vsel %vm3498, %v3492, %v3026
    %v3500 = vrot.slane %v3346, 6
    %v3501 = vrot.slane %v3347, 5
    %v3502 = vsel %vm535, %v3501, %v3500
    %v3503 = vrot.slane %v3348, 4
    %v3504 = vsel %vm538, %v3503, %v3502
    %v3505 = vrot.slane %v3349, 3
    %v3506 = vsel %vm541, %v3505, %v3504
    %v3507 = vrot.slane %v3350, 2
    %v3508 = vsel %vm544, %v3507, %v3506
    %v3509 = vrot.slane %v3351, 1
    %v3510 = vsel %vm547, %v3509, %v3508
    %v3511 = vsel %vm550, %v3352, %v3510
    %v3512 = vrot.slane %v3353, 7
    %v3513 = vsel %vm553, %v3512, %v3511
    %3514 = vrot.lane.b32.xlu0 %v3513, 122
    %v3515 = vpop.permute.xlu0 %3514
    %v3516 = vsel %vm215, %v3515, 0
    %3518 = vmatprep.subr.mxu0 0.0
    %3519 = vmatpush1.msra.mxu0 %v221
    %3520 = vmatprep.subr.mxu0 0.0
    %3521 = vmatpush1.msra.mxu0 0.0
    %3522 = vmatprep.subr.mxu0 0.0
    %3523 = vmatpush1.msra.mxu0 0.0
    %3524 = vmatprep.subr.mxu0 0.0
    %3525 = vmatpush1.msra.mxu0 0.0
    %3526 = vmatprep.subr.mxu0 0.0
    %3527 = vmatpush1.msra.mxu0 0.0
    %3528 = vmatprep.subr.mxu0 0.0
    %3529 = vmatpush1.msra.mxu0 0.0
    %3530 = vmatprep.subr.mxu0 0.0
    %3531 = vmatpush1.msra.mxu0 0.0
    %3532 = vmatprep.subr.mxu0 0.0
    %3533 = vmatpush1.msra.mxu0 0.0
    %3534 = vmatprep.subr.mxu0 0.0
    %3535 = vmatpush1.msra.mxu0 0.0
    %3536 = vmatprep.subr.mxu0 0.0
    %3537 = vmatpush1.msra.mxu0 0.0
    %3538 = vmatprep.subr.mxu0 0.0
    %3539 = vmatpush1.msra.mxu0 0.0
    %3540 = vmatprep.subr.mxu0 0.0
    %3541 = vmatpush1.msra.mxu0 0.0
    %3542 = vmatprep.subr.mxu0 0.0
    %3543 = vmatpush1.msra.mxu0 0.0
    %3544 = vmatprep.subr.mxu0 0.0
    %3545 = vmatpush1.msra.mxu0 0.0
    %3546 = vmatprep.subr.mxu0 0.0
    %3547 = vmatpush1.msra.mxu0 0.0
    %3548 = vmatprep.subr.mxu0 0.0
    %3549 = vmatpush1.msra.mxu0 0.0
    %3550 = vmatprep.subr.mxu0 0.0
    %3551 = vmatpush1.msra.mxu0 0.0
    %3552 = vmatprep.subr.mxu0 0.0
    %3553 = vmatpush1.msra.mxu0 0.0
    %3554 = vmatprep.subr.mxu0 0.0
    %3555 = vmatpush1.msra.mxu0 0.0
    %3556 = vmatprep.subr.mxu0 0.0
    %3557 = vmatpush1.msra.mxu0 0.0
    %3558 = vmatprep.subr.mxu0 0.0
    %3559 = vmatpush1.msra.mxu0 0.0
    %3560 = vmatprep.subr.mxu0 0.0
    %3561 = vmatpush1.msra.mxu0 0.0
    %3562 = vmatprep.subr.mxu0 0.0
    %3563 = vmatpush1.msra.mxu0 0.0
    %3564 = vmatprep.subr.mxu0 0.0
    %3565 = vmatpush1.msra.mxu0 0.0
    %3566 = vmatprep.subr.mxu0 0.0
    %3567 = vmatpush1.msra.mxu0 0.0
    %3568 = vmatprep.subr.mxu0 0.0
    %3569 = vmatpush1.msra.mxu0 0.0
    %3570 = vmatprep.subr.mxu0 0.0
    %3571 = vmatpush1.msra.mxu0 0.0
    %3572 = vmatprep.subr.mxu0 0.0
    %3573 = vmatpush1.msra.mxu0 0.0
    %3574 = vmatprep.subr.mxu0 0.0
    %3575 = vmatpush1.msra.mxu0 0.0
    %3576 = vmatprep.subr.mxu0 0.0
    %3577 = vmatpush1.msra.mxu0 0.0
    %3578 = vmatprep.subr.mxu0 0.0
    %3579 = vmatpush1.msra.mxu0 0.0
    %3580 = vmatprep.subr.mxu0 0.0
    %3581 = vmatpush1.msra.mxu0 0.0
    %3582 = vmatprep.mubr.f32.mxu0 0.0
    %3583 = vmatmul.mubr.f32.gmra.mrb[0].mxu0 %v3516
    %v3584 = vpop.f32.mrb[0].mxu0
    %v3585 = vadd.f32 0.0, %v3584
    %v3586 = vpop.f32.mrb[0].mxu0
    %3587 = vdwg.mxu0
    %v3589 = vrot.slane %v3585, 1
    %v3590 = vrot.slane %v3585, 2
    %v3591 = vrot.slane %v3585, 3
    %v3592 = vrot.slane %v3585, 4
    %v3593 = vrot.slane %v3585, 5
    %v3594 = vrot.slane %v3585, 6
    %v3595 = vrot.slane %v3585, 7
    %v3604 = vadd.f32 %v177, %v3589
    %v3605 = vadd.f32 %v182, %v3590
    %v3606 = vadd.f32 %v187, %v3591
    %v3607 = vadd.f32 %v192, %v3592
    %v3608 = vadd.f32 %v197, %v3593
    %v3609 = vadd.f32 %v202, %v3594
    %v3610 = vadd.f32 %v207, %v3595
    %v3611 = vadd.f32 %v212, %v3585
    %v3612 = vxor.u32 %v3604, 2147483648
    %v3613 = vxor.u32 %v3605, 2147483648
    %v3614 = vxor.u32 %v3606, 2147483648
    %v3615 = vxor.u32 %v3607, 2147483648
    %v3616 = vxor.u32 %v3608, 2147483648
    %v3617 = vxor.u32 %v3609, 2147483648
    %v3618 = vxor.u32 %v3610, 2147483648
    %v3619 = vxor.u32 %v3611, 2147483648
    %v3620 = vmul.f32 %v3612, 1.442695
    %v3621 = vpow.pop %v3620
    %v3622 = vmul.f32 %v3613, 1.442695
    %v3623 = vpow.pop %v3622
    %v3624 = vmul.f32 %v3614, 1.442695
    %v3625 = vpow.pop %v3624
    %v3626 = vmul.f32 %v3615, 1.442695
    %v3627 = vpow.pop %v3626
    %v3628 = vmul.f32 %v3616, 1.442695
    %v3629 = vpow.pop %v3628
    %v3630 = vmul.f32 %v3617, 1.442695
    %v3631 = vpow.pop %v3630
    %v3632 = vmul.f32 %v3618, 1.442695
    %v3633 = vpow.pop %v3632
    %v3634 = vmul.f32 %v3619, 1.442695
    %v3635 = vpow.pop %v3634
    %v3636 = vadd.f32 %v3621, 1.0
    %v3637 = vadd.f32 %v3623, 1.0
    %v3638 = vadd.f32 %v3625, 1.0
    %v3639 = vadd.f32 %v3627, 1.0
    %v3640 = vadd.f32 %v3629, 1.0
    %v3641 = vadd.f32 %v3631, 1.0
    %v3642 = vadd.f32 %v3633, 1.0
    %v3643 = vadd.f32 %v3635, 1.0
    %v3644 = vrcp.pop %v3636
    %v3645 = vmul.f32 1.0, %v3644
    %v3646 = vrcp.pop %v3637
    %v3647 = vmul.f32 1.0, %v3646
    %v3648 = vrcp.pop %v3638
    %v3649 = vmul.f32 1.0, %v3648
    %v3650 = vrcp.pop %v3639
    %v3651 = vmul.f32 1.0, %v3650
    %v3652 = vrcp.pop %v3640
    %v3653 = vmul.f32 1.0, %v3652
    %v3654 = vrcp.pop %v3641
    %v3655 = vmul.f32 1.0, %v3654
    %v3656 = vrcp.pop %v3642
    %v3657 = vmul.f32 1.0, %v3656
    %v3658 = vrcp.pop %v3643
    %v3659 = vmul.f32 1.0, %v3658
    %v3660 = vadd.f32 %v3585, %v371
    %v3662 = vrot.slane %v3660, 1
    %v3663 = vrot.slane %v3660, 2
    %v3664 = vrot.slane %v3660, 3
    %v3665 = vrot.slane %v3660, 4
    %v3666 = vrot.slane %v3660, 5
    %v3667 = vrot.slane %v3660, 6
    %v3668 = vrot.slane %v3660, 7
    %3669 = vrot.lane.b32.xlu0 %v3662, 116
    %v3670 = vpop.permute.xlu0 %3669
    %3671 = vrot.lane.b32.xlu0 %v3663, 116
    %v3672 = vpop.permute.xlu0 %3671
    %3673 = vrot.lane.b32.xlu0 %v3664, 116
    %v3674 = vpop.permute.xlu0 %3673
    %3675 = vrot.lane.b32.xlu0 %v3665, 116
    %v3676 = vpop.permute.xlu0 %3675
    %3677 = vrot.lane.b32.xlu0 %v3666, 116
    %v3678 = vpop.permute.xlu0 %3677
    %3679 = vrot.lane.b32.xlu0 %v3667, 116
    %v3680 = vpop.permute.xlu0 %3679
    %3681 = vrot.lane.b32.xlu0 %v3668, 116
    %v3682 = vpop.permute.xlu0 %3681
    %3683 = vrot.lane.b32.xlu0 %v3660, 116
    %v3684 = vpop.permute.xlu0 %3683
    %v3693 = vmul.f32 %v3645, %v3670
    %v3694 = vmul.f32 %v3647, %v3672
    %v3695 = vmul.f32 %v3649, %v3674
    %v3696 = vmul.f32 %v3651, %v3676
    %v3697 = vmul.f32 %v3653, %v3678
    %v3698 = vmul.f32 %v3655, %v3680
    %v3699 = vmul.f32 %v3657, %v3682
    %v3700 = vmul.f32 %v3659, %v3684
    %3709 = vrot.lane.b32.xlu0 %v3693, 12
    %v3710 = vpop.permute.xlu0 %3709
    %3711 = vrot.lane.b32.xlu0 %v3694, 12
    %v3712 = vpop.permute.xlu0 %3711
    %3713 = vrot.lane.b32.xlu0 %v3695, 12
    %v3714 = vpop.permute.xlu0 %3713
    %3715 = vrot.lane.b32.xlu0 %v3696, 12
    %v3716 = vpop.permute.xlu0 %3715
    %3717 = vrot.lane.b32.xlu0 %v3697, 12
    %v3718 = vpop.permute.xlu0 %3717
    %3719 = vrot.lane.b32.xlu0 %v3698, 12
    %v3720 = vpop.permute.xlu0 %3719
    %3721 = vrot.lane.b32.xlu0 %v3699, 12
    %v3722 = vpop.permute.xlu0 %3721
    %3723 = vrot.lane.b32.xlu0 %v3700, 12
    %v3724 = vpop.permute.xlu0 %3723
    %v3733 = vadd.f32 %v177, %v3710
    %v3734 = vadd.f32 %v182, %v3712
    %v3735 = vadd.f32 %v187, %v3714
    %v3736 = vadd.f32 %v192, %v3716
    %v3737 = vadd.f32 %v197, %v3718
    %v3738 = vadd.f32 %v202, %v3720
    %v3739 = vadd.f32 %v207, %v3722
    %v3740 = vadd.f32 %v212, %v3724
    %v3741 = vtanh.pop %v3733
    %v3742 = vtanh.pop %v3734
    %v3743 = vtanh.pop %v3735
    %v3744 = vtanh.pop %v3736
    %v3745 = vtanh.pop %v3737
    %v3746 = vtanh.pop %v3738
    %v3747 = vtanh.pop %v3739
    %v3748 = vtanh.pop %v3740
    %v3749 = vsub.f32 1.0, %v3645
    %v3750 = vsub.f32 1.0, %v3647
    %v3751 = vsub.f32 1.0, %v3649
    %v3752 = vsub.f32 1.0, %v3651
    %v3753 = vsub.f32 1.0, %v3653
    %v3754 = vsub.f32 1.0, %v3655
    %v3755 = vsub.f32 1.0, %v3657
    %v3756 = vsub.f32 1.0, %v3659
    %3765 = vrot.lane.b32.xlu0 %v3741, 122
    %v3766 = vpop.permute.xlu0 %3765
    %3767 = vrot.lane.b32.xlu0 %v3742, 122
    %v3768 = vpop.permute.xlu0 %3767
    %3769 = vrot.lane.b32.xlu0 %v3743, 122
    %v3770 = vpop.permute.xlu0 %3769
    %3771 = vrot.lane.b32.xlu0 %v3744, 122
    %v3772 = vpop.permute.xlu0 %3771
    %3773 = vrot.lane.b32.xlu0 %v3745, 122
    %v3774 = vpop.permute.xlu0 %3773
    %3775 = vrot.lane.b32.xlu0 %v3746, 122
    %v3776 = vpop.permute.xlu0 %3775
    %3777 = vrot.lane.b32.xlu0 %v3747, 122
    %v3778 = vpop.permute.xlu0 %3777
    %3779 = vrot.lane.b32.xlu0 %v3748, 122
    %v3780 = vpop.permute.xlu0 %3779
    %v3789 = vmul.f32 %v3749, %v3766
    %v3790 = vmul.f32 %v3750, %v3768
    %v3791 = vmul.f32 %v3751, %v3770
    %v3792 = vmul.f32 %v3752, %v3772
    %v3793 = vmul.f32 %v3753, %v3774
    %v3794 = vmul.f32 %v3754, %v3776
    %v3795 = vmul.f32 %v3755, %v3778
    %v3796 = vmul.f32 %v3756, %v3780
    %v3797 = vrot.slane %v3346, 7
    %v3798 = vrot.slane %v3348, 7
    %v3799 = vrot.slane %v3349, 7
    %v3800 = vrot.slane %v3350, 7
    %v3801 = vrot.slane %v3351, 7
    %v3802 = vrot.slane %v3352, 7
    %v3811 = vmul.f32 %v3645, %v3797
    %v3812 = vmul.f32 %v3647, %v3362
    %v3813 = vmul.f32 %v3649, %v3798
    %v3814 = vmul.f32 %v3651, %v3799
    %v3815 = vmul.f32 %v3653, %v3800
    %v3816 = vmul.f32 %v3655, %v3801
    %v3817 = vmul.f32 %v3657, %v3802
    %v3818 = vmul.f32 %v3659, %v3512
    %v3819 = vadd.f32 %v3789, %v3811
    %v3820 = vadd.f32 %v3790, %v3812
    %v3821 = vadd.f32 %v3791, %v3813
    %v3822 = vadd.f32 %v3792, %v3814
    %v3823 = vadd.f32 %v3793, %v3815
    %v3824 = vadd.f32 %v3794, %v3816
    %v3825 = vadd.f32 %v3795, %v3817
    %v3826 = vadd.f32 %v3796, %v3818
    %v3835 = vrot.slane %v3820, 7
    %v3836 = vrot.slane %v3821, 6
    %v3837 = vsel %vm535, %v3836, %v3835
    %v3838 = vrot.slane %v3822, 5
    %v3839 = vsel %vm538, %v3838, %v3837
    %v3840 = vrot.slane %v3823, 4
    %v3841 = vsel %vm541, %v3840, %v3839
    %v3842 = vrot.slane %v3824, 3
    %v3843 = vsel %vm544, %v3842, %v3841
    %v3844 = vrot.slane %v3825, 2
    %v3845 = vsel %vm547, %v3844, %v3843
    %v3846 = vrot.slane %v3826, 1
    %v3847 = vsel %vm550, %v3846, %v3845
    %3848 = vrot.lane.b32.xlu0 %v3819, 122
    %v3849 = vpop.permute.xlu0 %3848
    %3850 = vrot.lane.b32.xlu0 %v3847, 122
    %v3851 = vpop.permute.xlu0 %3850
    %v3855 = vrot.slane %v3492, 1
    %v3857 = vsel %vm215, %v3849, %v3855
    %v3858 = vsel %vm215, %v3851, %v3855
    %vm3861 = vcmask 1040384
    %v3862 = vrot.slane %v3857, 7
    %v3863 = vrot.slane %v3858, 7
    %v3864 = vsel %vm3861, %v3862, %v3863
    %v3865 = vsel %vm565, %v3864, 0
    %3867 = vmatprep.subr.mxu0 0.0
    %3868 = vmatpush1.msra.mxu0 %v68
    %3869 = vmatprep.subr.mxu0 0.0
    %3870 = vmatpush1.msra.mxu0 %v571
    %3871 = vmatprep.subr.mxu0 0.0
    %3872 = vmatpush1.msra.mxu0 0.0
    %3873 = vmatprep.subr.mxu0 0.0
    %3874 = vmatpush1.msra.mxu0 0.0
    %3875 = vmatprep.subr.mxu0 0.0
    %3876 = vmatpush1.msra.mxu0 0.0
    %3877 = vmatprep.subr.mxu0 0.0
    %3878 = vmatpush1.msra.mxu0 0.0
    %3879 = vmatprep.subr.mxu0 0.0
    %3880 = vmatpush1.msra.mxu0 0.0
    %3881 = vmatprep.subr.mxu0 0.0
    %3882 = vmatpush1.msra.mxu0 0.0
    %3883 = vmatprep.subr.mxu0 0.0
    %3884 = vmatpush1.msra.mxu0 0.0
    %3885 = vmatprep.subr.mxu0 0.0
    %3886 = vmatpush1.msra.mxu0 0.0
    %3887 = vmatprep.subr.mxu0 0.0
    %3888 = vmatpush1.msra.mxu0 0.0
    %3889 = vmatprep.subr.mxu0 0.0
    %3890 = vmatpush1.msra.mxu0 0.0
    %3891 = vmatprep.subr.mxu0 0.0
    %3892 = vmatpush1.msra.mxu0 0.0
    %3893 = vmatprep.subr.mxu0 0.0
    %3894 = vmatpush1.msra.mxu0 0.0
    %3895 = vmatprep.subr.mxu0 0.0
    %3896 = vmatpush1.msra.mxu0 0.0
    %3897 = vmatprep.subr.mxu0 0.0
    %3898 = vmatpush1.msra.mxu0 0.0
    %3899 = vmatprep.subr.mxu0 0.0
    %3900 = vmatpush1.msra.mxu0 0.0
    %3901 = vmatprep.subr.mxu0 0.0
    %3902 = vmatpush1.msra.mxu0 0.0
    %3903 = vmatprep.subr.mxu0 0.0
    %3904 = vmatpush1.msra.mxu0 0.0
    %3905 = vmatprep.subr.mxu0 0.0
    %3906 = vmatpush1.msra.mxu0 0.0
    %3907 = vmatprep.subr.mxu0 0.0
    %3908 = vmatpush1.msra.mxu0 0.0
    %3909 = vmatprep.subr.mxu0 0.0
    %3910 = vmatpush1.msra.mxu0 0.0
    %3911 = vmatprep.subr.mxu0 0.0
    %3912 = vmatpush1.msra.mxu0 0.0
    %3913 = vmatprep.subr.mxu0 0.0
    %3914 = vmatpush1.msra.mxu0 0.0
    %3915 = vmatprep.subr.mxu0 0.0
    %3916 = vmatpush1.msra.mxu0 0.0
    %3917 = vmatprep.subr.mxu0 0.0
    %3918 = vmatpush1.msra.mxu0 0.0
    %3919 = vmatprep.subr.mxu0 0.0
    %3920 = vmatpush1.msra.mxu0 0.0
    %3921 = vmatprep.subr.mxu0 0.0
    %3922 = vmatpush1.msra.mxu0 0.0
    %3923 = vmatprep.subr.mxu0 0.0
    %3924 = vmatpush1.msra.mxu0 0.0
    %3925 = vmatprep.subr.mxu0 0.0
    %3926 = vmatpush1.msra.mxu0 0.0
    %3927 = vmatprep.subr.mxu0 0.0
    %3928 = vmatpush1.msra.mxu0 0.0
    %3929 = vmatprep.subr.mxu0 0.0
    %3930 = vmatpush1.msra.mxu0 0.0
    %3931 = vmatprep.mubr.f32.mxu0 0.0
    %3932 = vmatmul.mubr.f32.gmra.mrb[0].mxu0 %v3865
    %v3933 = vpop.f32.mrb[0].mxu0
    %v3934 = vadd.f32 %v563, %v3933
    %v3935 = vpop.f32.mrb[0].mxu0
    %3936 = vdwg.mxu0
    %3938 = vrot.lane.b32.xlu0 %v3934, 110
    %v3939 = vpop.permute.xlu0 %3938
    %v3941 = vadd.f32 %v3934, %v3939
    %v3942 = vxor.u32 %v3941, 2147483648
    %v3943 = vmul.f32 %v3942, 1.442695
    %v3944 = vpow.pop %v3943
    %v3945 = vadd.f32 %v3944, 1.0
    %v3946 = vrcp.pop %v3945
    %v3947 = vmul.f32 1.0, %v3946
    %3948 = vrot.lane.b32.xlu0 %v3934, 98
    %v3949 = vpop.permute.xlu0 %3948
    %v3951 = vmul.f32 %v3947, %v3949
    %3953 = vrot.lane.b32.xlu0 %v3951, 12
    %v3954 = vpop.permute.xlu0 %3953
    %v3956 = vadd.f32 %v3934, %v3954
    %v3957 = vtanh.pop %v3956
    %v3958 = vsub.f32 1.0, %v3947
    %3960 = vrot.lane.b32.xlu0 %v3957, 122
    %v3961 = vpop.permute.xlu0 %3960
    %v3963 = vmul.f32 %v3958, %v3961
    %v3964 = vmul.f32 %v3947, %v3492
    %v3965 = vadd.f32 %v3963, %v3964
    %vm3966 = vcmp.eq.s32.totalorder %v63, 7
    %v3967 = vsel %vm3966, 1, 0
    %3968 = vset.pattern.permute.xlu0 0
    %3969 = vperm.xlu0 %3968, %v3967
    %v3970 = vpop.permute.xlu0 %3969
    %vm3971 = vcmp.eq.s32.totalorder %v3970, 1
    %v3972 = vsel %vm3971, %v3965, %v3499
    %v3973 = vtanh.pop %v3972
    %v3974 = vld [vmem:[%s8] sm:$0x3f]
    %v3975 = vld [vmem:[%s9] sm:$0x1]
    %v3977 = vlaneseq
    %v3978 = vshrl.u32 %v3977, 7
    %v3979 = vsub.s32 0, %v3978
    %v3980 = vrot.slane %v3975, %v3979
    %3983 = vrot.lane.b32.xlu0 %v3973, 122
    %v3984 = vpop.permute.xlu0 %3983
    %v3985 = vsel %vm215, %v3984, 0
    %v3988 = vsel %vm219, %v3974, 0
    %3990 = vmatprep.subr.mxu0 0.0
    %3991 = vmatpush1.msra.mxu0 %v3988
    %3992 = vmatprep.subr.mxu0 0.0
    %3993 = vmatpush1.msra.mxu0 0.0
    %3994 = vmatprep.subr.mxu0 0.0
    %3995 = vmatpush1.msra.mxu0 0.0
    %3996 = vmatprep.subr.mxu0 0.0
    %3997 = vmatpush1.msra.mxu0 0.0
    %3998 = vmatprep.subr.mxu0 0.0
    %3999 = vmatpush1.msra.mxu0 0.0
    %4000 = vmatprep.subr.mxu0 0.0
    %4001 = vmatpush1.msra.mxu0 0.0
    %4002 = vmatprep.subr.mxu0 0.0
    %4003 = vmatpush1.msra.mxu0 0.0
    %4004 = vmatprep.subr.mxu0 0.0
    %4005 = vmatpush1.msra.mxu0 0.0
    %4006 = vmatprep.subr.mxu0 0.0
    %4007 = vmatpush1.msra.mxu0 0.0
    %4008 = vmatprep.subr.mxu0 0.0
    %4009 = vmatpush1.msra.mxu0 0.0
    %4010 = vmatprep.subr.mxu0 0.0
    %4011 = vmatpush1.msra.mxu0 0.0
    %4012 = vmatprep.subr.mxu0 0.0
    %4013 = vmatpush1.msra.mxu0 0.0
    %4014 = vmatprep.subr.mxu0 0.0
    %4015 = vmatpush1.msra.mxu0 0.0
    %4016 = vmatprep.subr.mxu0 0.0
    %4017 = vmatpush1.msra.mxu0 0.0
    %4018 = vmatprep.subr.mxu0 0.0
    %4019 = vmatpush1.msra.mxu0 0.0
    %4020 = vmatprep.subr.mxu0 0.0
    %4021 = vmatpush1.msra.mxu0 0.0
    %4022 = vmatprep.subr.mxu0 0.0
    %4023 = vmatpush1.msra.mxu0 0.0
    %4024 = vmatprep.subr.mxu0 0.0
    %4025 = vmatpush1.msra.mxu0 0.0
    %4026 = vmatprep.subr.mxu0 0.0
    %4027 = vmatpush1.msra.mxu0 0.0
    %4028 = vmatprep.subr.mxu0 0.0
    %4029 = vmatpush1.msra.mxu0 0.0
    %4030 = vmatprep.subr.mxu0 0.0
    %4031 = vmatpush1.msra.mxu0 0.0
    %4032 = vmatprep.subr.mxu0 0.0
    %4033 = vmatpush1.msra.mxu0 0.0
    %4034 = vmatprep.subr.mxu0 0.0
    %4035 = vmatpush1.msra.mxu0 0.0
    %4036 = vmatprep.subr.mxu0 0.0
    %4037 = vmatpush1.msra.mxu0 0.0
    %4038 = vmatprep.subr.mxu0 0.0
    %4039 = vmatpush1.msra.mxu0 0.0
    %4040 = vmatprep.subr.mxu0 0.0
    %4041 = vmatpush1.msra.mxu0 0.0
    %4042 = vmatprep.subr.mxu0 0.0
    %4043 = vmatpush1.msra.mxu0 0.0
    %4044 = vmatprep.subr.mxu0 0.0
    %4045 = vmatpush1.msra.mxu0 0.0
    %4046 = vmatprep.subr.mxu0 0.0
    %4047 = vmatpush1.msra.mxu0 0.0
    %4048 = vmatprep.subr.mxu0 0.0
    %4049 = vmatpush1.msra.mxu0 0.0
    %4050 = vmatprep.subr.mxu0 0.0
    %4051 = vmatpush1.msra.mxu0 0.0
    %4052 = vmatprep.subr.mxu0 0.0
    %4053 = vmatpush1.msra.mxu0 0.0
    %4054 = vmatprep.mubr.f32.mxu0 0.0
    %4055 = vmatmul.mubr.f32.gmra.mrb[0].mxu0 %v3985
    %v4056 = vpop.f32.mrb[0].mxu0
    %v4057 = vadd.f32 %v3980, %v4056
    %v4058 = vpop.f32.mrb[0].mxu0
    %4059 = vdwg.mxu0
    %4060 = vst [vmem:[#allocation7] sm:$0xff] %v4057
    // Predicated region
    $region50: #{tpu_custom_call.1} parent=1 // pred_check
      _
    $region51: #{tpu_custom_call.1} parent=1 // pred_check_branch
      %4062 = sbr.rel (0) target = $region53
    $region52: #{tpu_custom_call.1} parent=1 // pred_region
      %s4064 = ssub.s32 128, 128
      %4065 = vsyncadd [#allocation4], %s4064
      %s4067 = sshll.u32 [#allocation7], 4
      %s4068 = int_to_ptr.vmem [resolvable:$true] %s4067
      %4070 = dma.vmem_to_hbm [thread:$0]  %s4068, 128, %s10, [#allocation4]
    $region53: #{tpu_custom_call.1} parent=1 // pred_fallthru
      _
    // Predicated region
    $region54: #{tpu_custom_call.1} parent=1 // pred_check
      _
    $region55: #{tpu_custom_call.1} parent=1 // pred_check_branch
      %4072 = sbr.rel (0) target = $region57
    $region56: #{tpu_custom_call.1} parent=1 // pred_region
      %4073 = dma.done [#allocation4], 128
    $region57: #{tpu_custom_call.1} parent=1 // pred_fallthru
      _
    %4074 = vsyncpa [#allocation3], 1
    %4075 = vsyncpa [#allocation6], 1
    %4076 = vsyncpa [#allocation4], 1

</llo_original>
